<compile_context>
chip_gen: v7x
topology: tpu7x:2x2x1
jax: 0.10.0
libtpu: 0.0.40
codegen_flags: <defaults>
</compile_context>

<pallas_src>
import functools

import jax
import jax.numpy as jnp
from jax.experimental import pallas as pl
from jax.experimental.pallas import tpu as pltpu


LANE = 128           # lane width: last-dim alignment target
ROW_ALIGN = 16       # sublane alignment that is safe for bf16 (and f32) blocks
MAX_TILE_M = 256     # M tile (multiple of ROW_ALIGN), pipelined over the grid
VMEM_LIMIT = 48 * 1024 * 1024   # explicit budget, well under v7x's 64 MiB


def _round_up(x, m):
    return (x + m - 1) // m * m


# ----------------------------------------------------------------------------
# Pallas kernels
# ----------------------------------------------------------------------------
def _gemm_bias_relu_kernel(x_ref, w_ref, b_ref, o_ref, *, apply_relu: bool):
    # bf16 x bf16 -> f32 accumulate on the MXU; bias + ReLU in f32 on the VPU.
    acc = jnp.dot(x_ref[...], w_ref[...], preferred_element_type=jnp.float32)
    acc = acc + b_ref[...]                 # (1, N) broadcasts over rows
    if apply_relu:
        acc = jnp.maximum(acc, 0.0)
    o_ref[...] = acc.astype(o_ref.dtype)


def _mlp_head_kernel(x_ref, w1_ref, b1_ref, w2_ref, b2_ref, o_ref):
    # fc1 -> relu -> fc2 fused: the (tile_m, 512) hidden never leaves VMEM.
    h = jnp.dot(x_ref[...], w1_ref[...], preferred_element_type=jnp.float32)
    h = jnp.maximum(h + b1_ref[...], 0.0)
    out = jnp.dot(h.astype(w2_ref.dtype), w2_ref[...],
                  preferred_element_type=jnp.float32)
    o_ref[...] = (out + b2_ref[...]).astype(o_ref.dtype)


# ----------------------------------------------------------------------------
# Pallas wrappers
# ----------------------------------------------------------------------------
def pallas_linear(x, w, b_row, *, apply_relu, out_dtype):
    """Fused (relu)(x @ w + b). x: (M, K), w: (K, N) bf16, b_row: (1, N) f32.

    K and N must be multiples of 128 (weights are pre-padded at init). The M
    axis is tiled and pipelined; ragged final tiles are handled by zero-padding
    M and slicing the result.
    """
    M, K = x.shape
    Kw, N = w.shape
    assert K == Kw and K % LANE == 0 and N % LANE == 0

    tile_m = min(MAX_TILE_M, _round_up(M, ROW_ALIGN))
    m_pad = _round_up(M, tile_m)
    x = x.astype(jnp.bfloat16)
    if m_pad != M:
        x = jnp.pad(x, ((0, m_pad - M), (0, 0)))

    out = pl.pallas_call(
        functools.partial(_gemm_bias_relu_kernel, apply_relu=apply_relu),
        out_shape=jax.ShapeDtypeStruct((m_pad, N), out_dtype),
        grid=(m_pad // tile_m,),
        in_specs=[
            pl.BlockSpec((tile_m, K), lambda i: (i, 0)),   # X tile (pipelined)
            pl.BlockSpec((K, N), lambda i: (0, 0)),        # W resident in VMEM
            pl.BlockSpec((1, N), lambda i: (0, 0)),        # bias resident
        ],
        out_specs=pl.BlockSpec((tile_m, N), lambda i: (i, 0)),
        compiler_params=pltpu.CompilerParams(
            dimension_semantics=("parallel",),             # megacore-friendly
            vmem_limit_bytes=VMEM_LIMIT,
        ),
    )(x, w, b_row)
    return out if m_pad == M else out[:M]


def pallas_mlp_head(x, w1, b1, w2, b2):
    """Fused fc1 -> relu -> fc2. x: (B, K1); returns (B, N2) f32."""
    M, K1 = x.shape
    K1w, N1 = w1.shape
    N1w, N2 = w2.shape
    assert K1 == K1w and N1 == N1w
    assert K1 % LANE == 0 and N1 % LANE == 0 and N2 % LANE == 0

    tile_m = min(MAX_TILE_M, _round_up(M, ROW_ALIGN))
    m_pad = _round_up(M, tile_m)
    x = x.astype(jnp.bfloat16)
    if m_pad != M:
        x = jnp.pad(x, ((0, m_pad - M), (0, 0)))

    out = pl.pallas_call(
        _mlp_head_kernel,
        out_shape=jax.ShapeDtypeStruct((m_pad, N2), jnp.float32),
        grid=(m_pad // tile_m,),
        in_specs=[
            pl.BlockSpec((tile_m, K1), lambda i: (i, 0)),
            pl.BlockSpec((K1, N1), lambda i: (0, 0)),
            pl.BlockSpec((1, N1), lambda i: (0, 0)),
            pl.BlockSpec((N1, N2), lambda i: (0, 0)),
            pl.BlockSpec((1, N2), lambda i: (0, 0)),
        ],
        out_specs=pl.BlockSpec((tile_m, N2), lambda i: (i, 0)),
        compiler_params=pltpu.CompilerParams(
            dimension_semantics=("parallel",),
            vmem_limit_bytes=VMEM_LIMIT,
        ),
    )(x, w1, b1, w2, b2)
    return out[:M]


# ----------------------------------------------------------------------------
# NHWC patch extraction (XLA glue) + conv layer
# ----------------------------------------------------------------------------
def extract_patches_nhwc(x, kh, kw, stride):
    """x: (B, H, W, C) -> (B*OH*OW, KH*KW*C), column order = (kh, kw, c)."""
    B, H, W, C = x.shape
    oh = (H - kh) // stride + 1
    ow = (W - kw) // stride + 1
    slices = []
    for i in range(kh):
        for j in range(kw):
            slices.append(
                x[:, i:i + oh * stride:stride, j:j + ow * stride:stride, :])
    patches = jnp.stack(slices, axis=3)              # (B, oh, ow, kh*kw, C)
    return patches.reshape(B * oh * ow, kh * kw * C), oh, ow


def conv2d_relu(x_nhwc, w_mat, b_row, kh, kw, stride):
    """NHWC conv (valid padding) + ReLU via patch GEMM in Pallas.

    x_nhwc: (B, H, W, Cpad) bf16; w_mat: (KH*KW*Cpad padded to 128, OCpad) bf16.
    Returns (B, OH, OW, OCpad) bf16 (padded output channels are exactly zero).
    """
    B = x_nhwc.shape[0]
    patches, oh, ow = extract_patches_nhwc(x_nhwc, kh, kw, stride)
    k_pad = w_mat.shape[0]
    if patches.shape[1] != k_pad:                    # ragged K -> zero-pad cols
        patches = jnp.pad(patches, ((0, 0), (0, k_pad - patches.shape[1])))
    out = pallas_linear(patches, w_mat, b_row, apply_relu=True,
                        out_dtype=jnp.bfloat16)
    return out.reshape(B, oh, ow, w_mat.shape[1])


# ----------------------------------------------------------------------------
# Parameters: PyTorch-style init, then one-time kernel layout preparation
# ----------------------------------------------------------------------------
def _uniform(key, shape, fan_in):
    bound = 1.0 / jnp.sqrt(jnp.asarray(fan_in, jnp.float32))
    return jax.random.uniform(key, shape, jnp.float32, -bound, bound)


def _conv_out(n, k, s):
    return (n - k) // s + 1


def init_qrdqn_params(key, input_shape, num_actions, quantiles):
    """Raw parameters in PyTorch layout (for semantic parity with the spec)."""
    C, H, W = input_shape
    keys = jax.random.split(key, 10)

    h1, w1 = _conv_out(H, 8, 4), _conv_out(W, 8, 4)
    h2, w2 = _conv_out(h1, 4, 2), _conv_out(w1, 4, 2)
    h3, w3 = _conv_out(h2, 3, 1), _conv_out(w2, 3, 1)
    feat = 64 * h3 * w3

    p = {}
    p["conv1_w"] = _uniform(keys[0], (32, C, 8, 8), C * 8 * 8)
    p["conv1_b"] = _uniform(keys[1], (32,), C * 8 * 8)
    p["conv2_w"] = _uniform(keys[2], (64, 32, 4, 4), 32 * 4 * 4)
    p["conv2_b"] = _uniform(keys[3], (64,), 32 * 4 * 4)
    p["conv3_w"] = _uniform(keys[4], (64, 64, 3, 3), 64 * 3 * 3)
    p["conv3_b"] = _uniform(keys[5], (64,), 64 * 3 * 3)
    p["fc1_w"] = _uniform(keys[6], (512, feat), feat)     # PyTorch Linear (out, in)
    p["fc1_b"] = _uniform(keys[7], (512,), feat)
    p["fc2_w"] = _uniform(keys[8], (num_actions * quantiles, 512), 512)
    p["fc2_b"] = _uniform(keys[9], (num_actions * quantiles,), 512)
    return p, feat


def prepare_params(p, input_shape, num_actions, quantiles):
    """One-time layout prep: bf16 GEMM-ready weights, lane-padded, no per-call
    transposes inside the forward."""
    C, H, W = input_shape
    h1, w1 = _conv_out(H, 8, 4), _conv_out(W, 8, 4)
    h2, w2 = _conv_out(h1, 4, 2), _conv_out(w1, 4, 2)
    h3, w3 = _conv_out(h2, 3, 1), _conv_out(w2, 3, 1)

    def prep_conv(w, b, c_in_pad):
        OC, Ci, KH, KW = w.shape
        oc_pad = _round_up(OC, LANE)
        wt = jnp.transpose(w, (2, 3, 1, 0))                          # (KH,KW,Ci,OC)
        wt = jnp.pad(wt, ((0, 0), (0, 0),
                          (0, c_in_pad - Ci), (0, oc_pad - OC)))
        wmat = wt.reshape(KH * KW * c_in_pad, oc_pad)
        k_pad = _round_up(wmat.shape[0], LANE)
        if k_pad != wmat.shape[0]:
            wmat = jnp.pad(wmat, ((0, k_pad - wmat.shape[0]), (0, 0)))
        bias = jnp.pad(b, (0, oc_pad - OC)).reshape(1, oc_pad).astype(jnp.float32)
        return wmat.astype(jnp.bfloat16), bias, oc_pad

    kp = {}
    kp["conv1_w"], kp["conv1_b"], oc1 = prep_conv(p["conv1_w"], p["conv1_b"], C)
    kp["conv2_w"], kp["conv2_b"], oc2 = prep_conv(p["conv2_w"], p["conv2_b"], oc1)
    kp["conv3_w"], kp["conv3_b"], oc3 = prep_conv(p["conv3_w"], p["conv3_b"], oc2)

    # fc1: PyTorch weight is (512, 64*h3*w3) over a (c, h, w)-major flatten;
    # re-lay it out for our (h, w, c_pad)-major NHWC flatten.
    fc1_w = p["fc1_w"].reshape(512, 64, h3, w3)
    fc1_w = jnp.transpose(fc1_w, (2, 3, 1, 0))                       # (h3,w3,64,512)
    fc1_w = jnp.pad(fc1_w, ((0, 0), (0, 0), (0, oc3 - 64), (0, 0)))
    kp["fc1_w"] = fc1_w.reshape(h3 * w3 * oc3, 512).astype(jnp.bfloat16)
    kp["fc1_b"] = p["fc1_b"].reshape(1, 512).astype(jnp.float32)

    n_out = num_actions * quantiles
    n_out_pad = _round_up(n_out, LANE)
    fc2_w = jnp.pad(p["fc2_w"].T, ((0, 0), (0, n_out_pad - n_out)))  # (512, Npad)
    kp["fc2_w"] = fc2_w.astype(jnp.bfloat16)
    kp["fc2_b"] = jnp.pad(p["fc2_b"], (0, n_out_pad - n_out)) \
                     .reshape(1, n_out_pad).astype(jnp.float32)
    return kp


# ----------------------------------------------------------------------------
# Forward pass (semantics of QRDQN.forward)
# ----------------------------------------------------------------------------
def qrdqn_forward(kp, x, num_actions, quantiles):
    # x: (B, C, H, W) f32, NCHW at the model boundary (like PyTorch).
    x = jnp.transpose(x, (0, 2, 3, 1)).astype(jnp.bfloat16)   # -> NHWC, once
    x = conv2d_relu(x, kp["conv1_w"], kp["conv1_b"], 8, 8, 4)
    x = conv2d_relu(x, kp["conv2_w"], kp["conv2_b"], 4, 4, 2)
    x = conv2d_relu(x, kp["conv3_w"], kp["conv3_b"], 3, 3, 1)
    B = x.shape[0]
    feats = x.reshape(B, -1)              # (B, h3*w3*128): matches fc1 layout
    out = pallas_mlp_head(feats, kp["fc1_w"], kp["fc1_b"],
                          kp["fc2_w"], kp["fc2_b"])
    out = out[:, :num_actions * quantiles]
    return out.reshape(-1, num_actions, quantiles)


if __name__ == "__main__":
    # Smallest non-degenerate shapes for the conv stack (8/4 -> 4/2 -> 3/1).
    input_shape = (4, 36, 36)
    num_actions = 4
    quantiles = 51
    batch = 2

    key = jax.random.PRNGKey(0)
    pkey, xkey = jax.random.split(key)
    params, feat = init_qrdqn_params(pkey, input_shape, num_actions, quantiles)
    kparams = prepare_params(params, input_shape, num_actions, quantiles)

    x = jax.random.normal(xkey, (batch,) + input_shape, jnp.float32)

    fwd = jax.jit(functools.partial(qrdqn_forward,
                                    num_actions=num_actions,
                                    quantiles=quantiles))
    out = fwd(kparams, x)
    jax.block_until_ready(out)

    assert out.shape == (batch, num_actions, quantiles), out.shape
    assert out.dtype == jnp.float32
    print("KERNEL_OK")
</pallas_src>

<mosaic_0001>
module attributes {stable_mosaic.version = 11 : i64} {
  func.func @_gemm_bias_relu_kernel(%arg0: i32, %arg1: memref<128x256xbf16, #tpu.memory_space<vmem>>, %arg2: memref<256x128xbf16, #tpu.memory_space<vmem>>, %arg3: memref<1x128xf32, #tpu.memory_space<vmem>>, %arg4: memref<128x128xbf16, #tpu.memory_space<vmem>>) attributes {dimension_semantics = [#tpu.dimension_semantics<parallel>], iteration_bounds = array<i64: 1>, scalar_prefetch = 0 : i64, scratch_operands = 0 : i64, tpu.core_type = #tpu.core_type<tc>, window_params = [{transform_indices = @transform_0, window_bounds = array<i64: 128, 256>}, {pipeline_mode = #tpu.pipeline_mode<synchronous>, transform_indices = @transform_1, window_bounds = array<i64: 256, 128>}, {pipeline_mode = #tpu.pipeline_mode<synchronous>, transform_indices = @transform_2, window_bounds = array<i64: 1, 128>}, {transform_indices = @transform_3, window_bounds = array<i64: 128, 128>}]} {
    %c0 = arith.constant 0 : index
    %c0_0 = arith.constant 0 : index
    %0 = vector.load %arg1[%c0, %c0_0] : memref<128x256xbf16, #tpu.memory_space<vmem>>, vector<128x256xbf16>
    %c0_1 = arith.constant 0 : index
    %c0_2 = arith.constant 0 : index
    %1 = vector.load %arg2[%c0_1, %c0_2] : memref<256x128xbf16, #tpu.memory_space<vmem>>, vector<256x128xbf16>
    %cst = arith.constant dense<0.000000e+00> : vector<128x128xf32>
    %2 = tpu.matmul %0, %1, %cst {dimension_numbers = #tpu.dot_dimension_numbers<[1], [0], [0], [1], [0, 0, 1, 1], [], []>} : vector<128x256xbf16>, vector<256x128xbf16>, vector<128x128xf32> -> vector<128x128xf32>
    %c0_3 = arith.constant 0 : index
    %c0_4 = arith.constant 0 : index
    %3 = vector.load %arg3[%c0_3, %c0_4] : memref<1x128xf32, #tpu.memory_space<vmem>>, vector<1x128xf32>
    %4 = vector.broadcast %3 : vector<1x128xf32> to vector<128x128xf32>
    %5 = arith.addf %2, %4 : vector<128x128xf32>
    %cst_5 = arith.constant 0.000000e+00 : f32
    %6 = vector.broadcast %cst_5 : f32 to vector<128x128xf32>
    %7 = arith.maximumf %5, %6 : vector<128x128xf32>
    %8 = arith.truncf %7 : vector<128x128xf32> to vector<128x128xbf16>
    %c0_6 = arith.constant 0 : index
    %c0_7 = arith.constant 0 : index
    %9 = vector.load %arg4[%c0_6, %c0_7] : memref<128x128xbf16, #tpu.memory_space<vmem>>, vector<128x128xbf16>
    tpu.vector_store %arg4[%c0_6, %c0_7], %8 {strides = array<i32>} : memref<128x128xbf16, #tpu.memory_space<vmem>>, vector<128x128xbf16>,
    return
  }
  func.func @transform_0(%arg0: i32) -> (i32, i32) {
    %c0_i32 = arith.constant 0 : i32
    %c0_i32_0 = arith.constant 0 : i32
    return %arg0, %c0_i32 : i32, i32
  }
  func.func @transform_1(%arg0: i32) -> (i32, i32) {
    %c0_i32 = arith.constant 0 : i32
    %c0_i32_0 = arith.constant 0 : i32
    %c0_i32_1 = arith.constant 0 : i32
    return %c0_i32, %c0_i32_0 : i32, i32
  }
  func.func @transform_2(%arg0: i32) -> (i32, i32) {
    %c0_i32 = arith.constant 0 : i32
    %c0_i32_0 = arith.constant 0 : i32
    %c0_i32_1 = arith.constant 0 : i32
    return %c0_i32, %c0_i32_0 : i32, i32
  }
  func.func @transform_3(%arg0: i32) -> (i32, i32) {
    %c0_i32 = arith.constant 0 : i32
    %c0_i32_0 = arith.constant 0 : i32
    return %arg0, %c0_i32 : i32, i32
  }
}

module attributes {stable_mosaic.version = 11 : i64} {
  func.func @_gemm_bias_relu_kernel(%arg0: i32, %arg1: memref<16x1152xbf16, #tpu.memory_space<vmem>>, %arg2: memref<1152x128xbf16, #tpu.memory_space<vmem>>, %arg3: memref<1x128xf32, #tpu.memory_space<vmem>>, %arg4: memref<16x128xbf16, #tpu.memory_space<vmem>>) attributes {dimension_semantics = [#tpu.dimension_semantics<parallel>], iteration_bounds = array<i64: 1>, scalar_prefetch = 0 : i64, scratch_operands = 0 : i64, tpu.core_type = #tpu.core_type<tc>, window_params = [{transform_indices = @transform_0, window_bounds = array<i64: 16, 1152>}, {pipeline_mode = #tpu.pipeline_mode<synchronous>, transform_indices = @transform_1, window_bounds = array<i64: 1152, 128>}, {pipeline_mode = #tpu.pipeline_mode<synchronous>, transform_indices = @transform_2, window_bounds = array<i64: 1, 128>}, {transform_indices = @transform_3, window_bounds = array<i64: 16, 128>}]} {
    %c0 = arith.constant 0 : index
    %c0_0 = arith.constant 0 : index
    %0 = vector.load %arg1[%c0, %c0_0] : memref<16x1152xbf16, #tpu.memory_space<vmem>>, vector<16x1152xbf16>
    %c0_1 = arith.constant 0 : index
    %c0_2 = arith.constant 0 : index
    %1 = vector.load %arg2[%c0_1, %c0_2] : memref<1152x128xbf16, #tpu.memory_space<vmem>>, vector<1152x128xbf16>
    %cst = arith.constant dense<0.000000e+00> : vector<16x128xf32>
    %2 = tpu.matmul %0, %1, %cst {dimension_numbers = #tpu.dot_dimension_numbers<[1], [0], [0], [1], [0, 0, 1, 1], [], []>} : vector<16x1152xbf16>, vector<1152x128xbf16>, vector<16x128xf32> -> vector<16x128xf32>
    %c0_3 = arith.constant 0 : index
    %c0_4 = arith.constant 0 : index
    %3 = vector.load %arg3[%c0_3, %c0_4] : memref<1x128xf32, #tpu.memory_space<vmem>>, vector<1x128xf32>
    %4 = vector.broadcast %3 : vector<1x128xf32> to vector<16x128xf32>
    %5 = arith.addf %2, %4 : vector<16x128xf32>
    %cst_5 = arith.constant 0.000000e+00 : f32
    %6 = vector.broadcast %cst_5 : f32 to vector<16x128xf32>
    %7 = arith.maximumf %5, %6 : vector<16x128xf32>
    %8 = arith.truncf %7 : vector<16x128xf32> to vector<16x128xbf16>
    %c0_6 = arith.constant 0 : index
    %c0_7 = arith.constant 0 : index
    %9 = vector.load %arg4[%c0_6, %c0_7] : memref<16x128xbf16, #tpu.memory_space<vmem>>, vector<16x128xbf16>
    tpu.vector_store %arg4[%c0_6, %c0_7], %8 {strides = array<i32>} : memref<16x128xbf16, #tpu.memory_space<vmem>>, vector<16x128xbf16>,
    return
  }
  func.func @transform_0(%arg0: i32) -> (i32, i32) {
    %c0_i32 = arith.constant 0 : i32
    %c0_i32_0 = arith.constant 0 : i32
    return %arg0, %c0_i32 : i32, i32
  }
  func.func @transform_1(%arg0: i32) -> (i32, i32) {
    %c0_i32 = arith.constant 0 : i32
    %c0_i32_0 = arith.constant 0 : i32
    %c0_i32_1 = arith.constant 0 : i32
    return %c0_i32, %c0_i32_0 : i32, i32
  }
  func.func @transform_2(%arg0: i32) -> (i32, i32) {
    %c0_i32 = arith.constant 0 : i32
    %c0_i32_0 = arith.constant 0 : i32
    %c0_i32_1 = arith.constant 0 : i32
    return %c0_i32, %c0_i32_0 : i32, i32
  }
  func.func @transform_3(%arg0: i32) -> (i32, i32) {
    %c0_i32 = arith.constant 0 : i32
    %c0_i32_0 = arith.constant 0 : i32
    return %arg0, %c0_i32 : i32, i32
  }
}

module attributes {stable_mosaic.version = 11 : i64} {
  func.func @_gemm_bias_relu_kernel(%arg0: i32, %arg1: memref<32x2048xbf16, #tpu.memory_space<vmem>>, %arg2: memref<2048x128xbf16, #tpu.memory_space<vmem>>, %arg3: memref<1x128xf32, #tpu.memory_space<vmem>>, %arg4: memref<32x128xbf16, #tpu.memory_space<vmem>>) attributes {dimension_semantics = [#tpu.dimension_semantics<parallel>], iteration_bounds = array<i64: 1>, scalar_prefetch = 0 : i64, scratch_operands = 0 : i64, tpu.core_type = #tpu.core_type<tc>, window_params = [{transform_indices = @transform_0, window_bounds = array<i64: 32, 2048>}, {pipeline_mode = #tpu.pipeline_mode<synchronous>, transform_indices = @transform_1, window_bounds = array<i64: 2048, 128>}, {pipeline_mode = #tpu.pipeline_mode<synchronous>, transform_indices = @transform_2, window_bounds = array<i64: 1, 128>}, {transform_indices = @transform_3, window_bounds = array<i64: 32, 128>}]} {
    %c0 = arith.constant 0 : index
    %c0_0 = arith.constant 0 : index
    %0 = vector.load %arg1[%c0, %c0_0] : memref<32x2048xbf16, #tpu.memory_space<vmem>>, vector<32x2048xbf16>
    %c0_1 = arith.constant 0 : index
    %c0_2 = arith.constant 0 : index
    %1 = vector.load %arg2[%c0_1, %c0_2] : memref<2048x128xbf16, #tpu.memory_space<vmem>>, vector<2048x128xbf16>
    %cst = arith.constant dense<0.000000e+00> : vector<32x128xf32>
    %2 = tpu.matmul %0, %1, %cst {dimension_numbers = #tpu.dot_dimension_numbers<[1], [0], [0], [1], [0, 0, 1, 1], [], []>} : vector<32x2048xbf16>, vector<2048x128xbf16>, vector<32x128xf32> -> vector<32x128xf32>
    %c0_3 = arith.constant 0 : index
    %c0_4 = arith.constant 0 : index
    %3 = vector.load %arg3[%c0_3, %c0_4] : memref<1x128xf32, #tpu.memory_space<vmem>>, vector<1x128xf32>
    %4 = vector.broadcast %3 : vector<1x128xf32> to vector<32x128xf32>
    %5 = arith.addf %2, %4 : vector<32x128xf32>
    %cst_5 = arith.constant 0.000000e+00 : f32
    %6 = vector.broadcast %cst_5 : f32 to vector<32x128xf32>
    %7 = arith.maximumf %5, %6 : vector<32x128xf32>
    %8 = arith.truncf %7 : vector<32x128xf32> to vector<32x128xbf16>
    %c0_6 = arith.constant 0 : index
    %c0_7 = arith.constant 0 : index
    %9 = vector.load %arg4[%c0_6, %c0_7] : memref<32x128xbf16, #tpu.memory_space<vmem>>, vector<32x128xbf16>
    tpu.vector_store %arg4[%c0_6, %c0_7], %8 {strides = array<i32>} : memref<32x128xbf16, #tpu.memory_space<vmem>>, vector<32x128xbf16>,
    return
  }
  func.func @transform_0(%arg0: i32) -> (i32, i32) {
    %c0_i32 = arith.constant 0 : i32
    %c0_i32_0 = arith.constant 0 : i32
    return %arg0, %c0_i32 : i32, i32
  }
  func.func @transform_1(%arg0: i32) -> (i32, i32) {
    %c0_i32 = arith.constant 0 : i32
    %c0_i32_0 = arith.constant 0 : i32
    %c0_i32_1 = arith.constant 0 : i32
    return %c0_i32, %c0_i32_0 : i32, i32
  }
  func.func @transform_2(%arg0: i32) -> (i32, i32) {
    %c0_i32 = arith.constant 0 : i32
    %c0_i32_0 = arith.constant 0 : i32
    %c0_i32_1 = arith.constant 0 : i32
    return %c0_i32, %c0_i32_0 : i32, i32
  }
  func.func @transform_3(%arg0: i32) -> (i32, i32) {
    %c0_i32 = arith.constant 0 : i32
    %c0_i32_0 = arith.constant 0 : i32
    return %arg0, %c0_i32 : i32, i32
  }
}

module attributes {stable_mosaic.version = 11 : i64} {
  func.func @_mlp_head_kernel(%arg0: i32, %arg1: memref<16x128xbf16, #tpu.memory_space<vmem>>, %arg2: memref<128x512xbf16, #tpu.memory_space<vmem>>, %arg3: memref<1x512xf32, #tpu.memory_space<vmem>>, %arg4: memref<512x256xbf16, #tpu.memory_space<vmem>>, %arg5: memref<1x256xf32, #tpu.memory_space<vmem>>, %arg6: memref<16x256xf32, #tpu.memory_space<vmem>>) attributes {dimension_semantics = [#tpu.dimension_semantics<parallel>], iteration_bounds = array<i64: 1>, scalar_prefetch = 0 : i64, scratch_operands = 0 : i64, tpu.core_type = #tpu.core_type<tc>, window_params = [{transform_indices = @transform_0, window_bounds = array<i64: 16, 128>}, {pipeline_mode = #tpu.pipeline_mode<synchronous>, transform_indices = @transform_1, window_bounds = array<i64: 128, 512>}, {pipeline_mode = #tpu.pipeline_mode<synchronous>, transform_indices = @transform_2, window_bounds = array<i64: 1, 512>}, {pipeline_mode = #tpu.pipeline_mode<synchronous>, transform_indices = @transform_3, window_bounds = array<i64: 512, 256>}, {pipeline_mode = #tpu.pipeline_mode<synchronous>, transform_indices = @transform_4, window_bounds = array<i64: 1, 256>}, {transform_indices = @transform_5, window_bounds = array<i64: 16, 256>}]} {
    %c0 = arith.constant 0 : index
    %c0_0 = arith.constant 0 : index
    %0 = vector.load %arg1[%c0, %c0_0] : memref<16x128xbf16, #tpu.memory_space<vmem>>, vector<16x128xbf16>
    %c0_1 = arith.constant 0 : index
    %c0_2 = arith.constant 0 : index
    %1 = vector.load %arg2[%c0_1, %c0_2] : memref<128x512xbf16, #tpu.memory_space<vmem>>, vector<128x512xbf16>
    %cst = arith.constant dense<0.000000e+00> : vector<16x512xf32>
    %2 = tpu.matmul %0, %1, %cst {dimension_numbers = #tpu.dot_dimension_numbers<[1], [0], [0], [1], [0, 0, 1, 1], [], []>} : vector<16x128xbf16>, vector<128x512xbf16>, vector<16x512xf32> -> vector<16x512xf32>
    %c0_3 = arith.constant 0 : index
    %c0_4 = arith.constant 0 : index
    %3 = vector.load %arg3[%c0_3, %c0_4] : memref<1x512xf32, #tpu.memory_space<vmem>>, vector<1x512xf32>
    %4 = vector.broadcast %3 : vector<1x512xf32> to vector<16x512xf32>
    %5 = arith.addf %2, %4 : vector<16x512xf32>
    %cst_5 = arith.constant 0.000000e+00 : f32
    %6 = vector.broadcast %cst_5 : f32 to vector<16x512xf32>
    %7 = arith.maximumf %5, %6 : vector<16x512xf32>
    %8 = arith.truncf %7 : vector<16x512xf32> to vector<16x512xbf16>
    %c0_6 = arith.constant 0 : index
    %c0_7 = arith.constant 0 : index
    %9 = vector.load %arg4[%c0_6, %c0_7] : memref<512x256xbf16, #tpu.memory_space<vmem>>, vector<512x256xbf16>
    %cst_8 = arith.constant dense<0.000000e+00> : vector<16x256xf32>
    %10 = tpu.matmul %8, %9, %cst_8 {dimension_numbers = #tpu.dot_dimension_numbers<[1], [0], [0], [1], [0, 0, 1, 1], [], []>} : vector<16x512xbf16>, vector<512x256xbf16>, vector<16x256xf32> -> vector<16x256xf32>
    %c0_9 = arith.constant 0 : index
    %c0_10 = arith.constant 0 : index
    %11 = vector.load %arg5[%c0_9, %c0_10] : memref<1x256xf32, #tpu.memory_space<vmem>>, vector<1x256xf32>
    %12 = vector.broadcast %11 : vector<1x256xf32> to vector<16x256xf32>
    %13 = arith.addf %10, %12 : vector<16x256xf32>
    %c0_11 = arith.constant 0 : index
    %c0_12 = arith.constant 0 : index
    %14 = vector.load %arg6[%c0_11, %c0_12] : memref<16x256xf32, #tpu.memory_space<vmem>>, vector<16x256xf32>
    tpu.vector_store %arg6[%c0_11, %c0_12], %13 {strides = array<i32>} : memref<16x256xf32, #tpu.memory_space<vmem>>, vector<16x256xf32>,
    return
  }
  func.func @transform_0(%arg0: i32) -> (i32, i32) {
    %c0_i32 = arith.constant 0 : i32
    %c0_i32_0 = arith.constant 0 : i32
    return %arg0, %c0_i32 : i32, i32
  }
  func.func @transform_1(%arg0: i32) -> (i32, i32) {
    %c0_i32 = arith.constant 0 : i32
    %c0_i32_0 = arith.constant 0 : i32
    %c0_i32_1 = arith.constant 0 : i32
    return %c0_i32, %c0_i32_0 : i32, i32
  }
  func.func @transform_2(%arg0: i32) -> (i32, i32) {
    %c0_i32 = arith.constant 0 : i32
    %c0_i32_0 = arith.constant 0 : i32
    %c0_i32_1 = arith.constant 0 : i32
    return %c0_i32, %c0_i32_0 : i32, i32
  }
  func.func @transform_3(%arg0: i32) -> (i32, i32) {
    %c0_i32 = arith.constant 0 : i32
    %c0_i32_0 = arith.constant 0 : i32
    %c0_i32_1 = arith.constant 0 : i32
    return %c0_i32, %c0_i32_0 : i32, i32
  }
  func.func @transform_4(%arg0: i32) -> (i32, i32) {
    %c0_i32 = arith.constant 0 : i32
    %c0_i32_0 = arith.constant 0 : i32
    %c0_i32_1 = arith.constant 0 : i32
    return %c0_i32, %c0_i32_0 : i32, i32
  }
  func.func @transform_5(%arg0: i32) -> (i32, i32) {
    %c0_i32 = arith.constant 0 : i32
    %c0_i32_0 = arith.constant 0 : i32
    return %arg0, %c0_i32 : i32, i32
  }
}

</mosaic_0001>

<llo_original>
// kernel: qrdqn_forward.4
$region0: #{qrdqn_forward.4}
  #allocation0 [shape = 'u32[]', space=smem, size = 0x4, offset = 0x4, fixed_abs, tag = 'smem constant byte address 0x4 - core index']
  #allocation1 [shape = 'u32[144,128]{1,0:T(1,128)}', space=vmem, size = 0x12000, scoped, tag = 'internal scratch']
  %s0 = inlined_call_operand.vmem [shape: bf16[128,256], index: 0, kind: input, shape index: {}]
  %s1 = inlined_call_operand.vmem [shape: bf16[256,128], index: 1, kind: input, shape index: {}]
  %s2 = inlined_call_operand.vmem [shape: f32[1,128], index: 2, kind: input, shape index: {}]
  %s3 = inlined_call_operand.vmem [shape: bf16[128,128], index: 3, kind: output, shape index: {}]
  %s4 = sld [smem:[#allocation0]]
  $region22: #{qrdqn_forward.4} parent=0
    _
  %s6 = ssub.s32 1, %s4
  %s7 = scalar_select 0, %s6, %s4
  // Predicated region
  $region2: #{qrdqn_forward.4} parent=0 // pred_check
    _
  $region3: #{qrdqn_forward.4} parent=0 // pred_check_branch
    %9 = sbr.rel (0) target = $region5
  $region4: #{qrdqn_forward.4} parent=0 // pred_region
    _
  $region5: #{qrdqn_forward.4} parent=0 // pred_fallthru
    _
  // Predicated region
  $region6: #{qrdqn_forward.4} parent=0 // pred_check
    _
  $region7: #{qrdqn_forward.4} parent=0 // pred_check_branch
    %11 = sbr.rel (0) target = $region9
  $region8: #{qrdqn_forward.4} parent=0 // pred_region
    _
  $region9: #{qrdqn_forward.4} parent=0 // pred_fallthru
    _
  // Predicated region
  $region10: #{qrdqn_forward.4} parent=0 // pred_check
    _
  $region11: #{qrdqn_forward.4} parent=0 // pred_check_branch
    %13 = sbr.rel (0) target = $region13
  $region12: #{qrdqn_forward.4} parent=0 // pred_region
    _
  $region13: #{qrdqn_forward.4} parent=0 // pred_fallthru
    _
  %v15 = vld [vmem:[%s0] sm:$0xff]
  %v16 = vld [vmem:[%s0 + $0x8] sm:$0xff]
  %v17 = vld [vmem:[%s0 + $0x10] sm:$0xff]
  %v18 = vld [vmem:[%s0 + $0x18] sm:$0xff]
  %v19 = vld [vmem:[%s0 + $0x20] sm:$0xff]
  %v20 = vld [vmem:[%s0 + $0x28] sm:$0xff]
  %v21 = vld [vmem:[%s0 + $0x30] sm:$0xff]
  %v22 = vld [vmem:[%s0 + $0x38] sm:$0xff]
  %v23 = vld [vmem:[%s0 + $0x40] sm:$0xff]
  %v24 = vld [vmem:[%s0 + $0x48] sm:$0xff]
  %v25 = vld [vmem:[%s0 + $0x50] sm:$0xff]
  %v26 = vld [vmem:[%s0 + $0x58] sm:$0xff]
  %v27 = vld [vmem:[%s0 + $0x60] sm:$0xff]
  %v28 = vld [vmem:[%s0 + $0x68] sm:$0xff]
  %v29 = vld [vmem:[%s0 + $0x70] sm:$0xff]
  %v30 = vld [vmem:[%s0 + $0x78] sm:$0xff]
  %v31 = vld [vmem:[%s1] sm:$0xf]
  %v32 = vld [vmem:[%s1 + $0x4] sm:$0xf]
  %v33 = vld [vmem:[%s1 + $0x8] sm:$0xf]
  %v34 = vld [vmem:[%s1 + $0xc] sm:$0xf]
  %v35 = vld [vmem:[%s1 + $0x10] sm:$0xf]
  %v36 = vld [vmem:[%s1 + $0x14] sm:$0xf]
  %v37 = vld [vmem:[%s1 + $0x18] sm:$0xf]
  %v38 = vld [vmem:[%s1 + $0x1c] sm:$0xf]
  %v39 = vld [vmem:[%s1 + $0x20] sm:$0xf]
  %v40 = vld [vmem:[%s1 + $0x24] sm:$0xf]
  %v41 = vld [vmem:[%s1 + $0x28] sm:$0xf]
  %v42 = vld [vmem:[%s1 + $0x2c] sm:$0xf]
  %v43 = vld [vmem:[%s1 + $0x30] sm:$0xf]
  %v44 = vld [vmem:[%s1 + $0x34] sm:$0xf]
  %v45 = vld [vmem:[%s1 + $0x38] sm:$0xf]
  %v46 = vld [vmem:[%s1 + $0x3c] sm:$0xf]
  %v47 = vld [vmem:[%s1 + $0x40] sm:$0xf]
  %v48 = vld [vmem:[%s1 + $0x44] sm:$0xf]
  %v49 = vld [vmem:[%s1 + $0x48] sm:$0xf]
  %v50 = vld [vmem:[%s1 + $0x4c] sm:$0xf]
  %v51 = vld [vmem:[%s1 + $0x50] sm:$0xf]
  %v52 = vld [vmem:[%s1 + $0x54] sm:$0xf]
  %v53 = vld [vmem:[%s1 + $0x58] sm:$0xf]
  %v54 = vld [vmem:[%s1 + $0x5c] sm:$0xf]
  %v55 = vld [vmem:[%s1 + $0x60] sm:$0xf]
  %v56 = vld [vmem:[%s1 + $0x64] sm:$0xf]
  %v57 = vld [vmem:[%s1 + $0x68] sm:$0xf]
  %v58 = vld [vmem:[%s1 + $0x6c] sm:$0xf]
  %v59 = vld [vmem:[%s1 + $0x70] sm:$0xf]
  %v60 = vld [vmem:[%s1 + $0x74] sm:$0xf]
  %v61 = vld [vmem:[%s1 + $0x78] sm:$0xf]
  %v62 = vld [vmem:[%s1 + $0x7c] sm:$0xf]
  %v63 = vld [vmem:[%s2] sm:$0x1]
  %v65 = vlaneseq
  %v66 = vshrl.u32 %v65, 7
  %v67 = vsub.s32 0, %v66
  %v68 = vrot.slane %v63, %v67
  %v86 = vunpack.c.l.b16 %v15
  %v87 = vunpack.c.h.b16 %v15
  %v88 = vunpack.c.l.b16 %v16
  %v89 = vunpack.c.h.b16 %v16
  %v90 = vunpack.c.l.b16 %v17
  %v91 = vunpack.c.h.b16 %v17
  %v92 = vunpack.c.l.b16 %v18
  %v93 = vunpack.c.h.b16 %v18
  %v94 = vunpack.c.l.b16 %v19
  %v95 = vunpack.c.h.b16 %v19
  %v96 = vunpack.c.l.b16 %v20
  %v97 = vunpack.c.h.b16 %v20
  %v98 = vunpack.c.l.b16 %v21
  %v99 = vunpack.c.h.b16 %v21
  %v100 = vunpack.c.l.b16 %v22
  %v101 = vunpack.c.h.b16 %v22
  %v102 = vunpack.c.l.b16 %v23
  %v103 = vunpack.c.h.b16 %v23
  %v104 = vunpack.c.l.b16 %v24
  %v105 = vunpack.c.h.b16 %v24
  %v106 = vunpack.c.l.b16 %v25
  %v107 = vunpack.c.h.b16 %v25
  %v108 = vunpack.c.l.b16 %v26
  %v109 = vunpack.c.h.b16 %v26
  %v110 = vunpack.c.l.b16 %v27
  %v111 = vunpack.c.h.b16 %v27
  %v112 = vunpack.c.l.b16 %v28
  %v113 = vunpack.c.h.b16 %v28
  %v114 = vunpack.c.l.b16 %v29
  %v115 = vunpack.c.h.b16 %v29
  %v116 = vunpack.c.l.b16 %v30
  %v117 = vunpack.c.h.b16 %v30
  %v118 = vpack.c.b16 %v88, %v86
  %v119 = vpack.c.b16 %v89, %v87
  %v120 = vpack.c.b16 %v92, %v90
  %v121 = vpack.c.b16 %v93, %v91
  %v122 = vpack.c.b16 %v96, %v94
  %v123 = vpack.c.b16 %v97, %v95
  %v124 = vpack.c.b16 %v100, %v98
  %v125 = vpack.c.b16 %v101, %v99
  %v126 = vpack.c.b16 %v104, %v102
  %v127 = vpack.c.b16 %v105, %v103
  %v128 = vpack.c.b16 %v108, %v106
  %v129 = vpack.c.b16 %v109, %v107
  %v130 = vpack.c.b16 %v112, %v110
  %v131 = vpack.c.b16 %v113, %v111
  %v132 = vpack.c.b16 %v116, %v114
  %v133 = vpack.c.b16 %v117, %v115
  %v182 = vunpack.c.l.b16 %v31
  %v183 = vunpack.c.l.b16 %v32
  %v184 = vunpack.c.l.b16 %v33
  %v185 = vunpack.c.l.b16 %v34
  %v186 = vunpack.c.l.b16 %v35
  %v187 = vunpack.c.l.b16 %v36
  %v188 = vunpack.c.l.b16 %v37
  %v189 = vunpack.c.l.b16 %v38
  %v190 = vunpack.c.l.b16 %v39
  %v191 = vunpack.c.l.b16 %v40
  %v192 = vunpack.c.l.b16 %v41
  %v193 = vunpack.c.l.b16 %v42
  %v194 = vunpack.c.l.b16 %v43
  %v195 = vunpack.c.l.b16 %v44
  %v196 = vunpack.c.l.b16 %v45
  %v197 = vunpack.c.l.b16 %v46
  %v198 = vunpack.c.l.b16 %v47
  %v199 = vunpack.c.l.b16 %v48
  %v200 = vunpack.c.l.b16 %v49
  %v201 = vunpack.c.l.b16 %v50
  %v202 = vunpack.c.l.b16 %v51
  %v203 = vunpack.c.l.b16 %v52
  %v204 = vunpack.c.l.b16 %v53
  %v205 = vunpack.c.l.b16 %v54
  %v206 = vunpack.c.l.b16 %v55
  %v207 = vunpack.c.l.b16 %v56
  %v208 = vunpack.c.l.b16 %v57
  %v209 = vunpack.c.l.b16 %v58
  %v210 = vunpack.c.l.b16 %v59
  %v211 = vunpack.c.l.b16 %v60
  %v212 = vunpack.c.l.b16 %v61
  %v213 = vunpack.c.l.b16 %v62
  %v214 = vpack.c.b16 %v183, %v182
  %v215 = vpack.c.b16 %v185, %v184
  %v216 = vpack.c.b16 %v187, %v186
  %v217 = vpack.c.b16 %v189, %v188
  %v218 = vpack.c.b16 %v191, %v190
  %v219 = vpack.c.b16 %v193, %v192
  %v220 = vpack.c.b16 %v195, %v194
  %v221 = vpack.c.b16 %v197, %v196
  %v222 = vpack.c.b16 %v199, %v198
  %v223 = vpack.c.b16 %v201, %v200
  %v224 = vpack.c.b16 %v203, %v202
  %v225 = vpack.c.b16 %v205, %v204
  %v226 = vpack.c.b16 %v207, %v206
  %v227 = vpack.c.b16 %v209, %v208
  %v228 = vpack.c.b16 %v211, %v210
  %v229 = vpack.c.b16 %v213, %v212
  %246 = vmatprep.subr.bf16.mxu0 0
  %247 = vmatpush1.bf16.msra.mxu0 %v214
  %248 = vmatprep.subr.bf16.mxu0 0
  %249 = vmatpush1.bf16.msra.mxu0 %v215
  %250 = vmatprep.subr.bf16.mxu0 0
  %251 = vmatpush1.bf16.msra.mxu0 %v216
  %252 = vmatprep.subr.bf16.mxu0 0
  %253 = vmatpush1.bf16.msra.mxu0 %v217
  %254 = vmatprep.subr.bf16.mxu0 0
  %255 = vmatpush1.bf16.msra.mxu0 %v218
  %256 = vmatprep.subr.bf16.mxu0 0
  %257 = vmatpush1.bf16.msra.mxu0 %v219
  %258 = vmatprep.subr.bf16.mxu0 0
  %259 = vmatpush1.bf16.msra.mxu0 %v220
  %260 = vmatprep.subr.bf16.mxu0 0
  %261 = vmatpush1.bf16.msra.mxu0 %v221
  %262 = vmatprep.subr.bf16.mxu0 0
  %263 = vmatpush1.bf16.msra.mxu0 %v222
  %264 = vmatprep.subr.bf16.mxu0 0
  %265 = vmatpush1.bf16.msra.mxu0 %v223
  %266 = vmatprep.subr.bf16.mxu0 0
  %267 = vmatpush1.bf16.msra.mxu0 %v224
  %268 = vmatprep.subr.bf16.mxu0 0
  %269 = vmatpush1.bf16.msra.mxu0 %v225
  %270 = vmatprep.subr.bf16.mxu0 0
  %271 = vmatpush1.bf16.msra.mxu0 %v226
  %272 = vmatprep.subr.bf16.mxu0 0
  %273 = vmatpush1.bf16.msra.mxu0 %v227
  %274 = vmatprep.subr.bf16.mxu0 0
  %275 = vmatpush1.bf16.msra.mxu0 %v228
  %276 = vmatprep.subr.bf16.mxu0 0
  %277 = vmatpush1.bf16.msra.mxu0 %v229
  %278 = vmatprep.mubr.bf16.mxu0 %v119
  %279 = vmatmul.mubr.bf16.gmra.mrb[0].mxu0 %v118
  %v280 = vpop.f32.mrb[0].mxu0
  %v281 = vadd.f32 %v68, %v280
  %v282 = vpop.f32.mrb[0].mxu0
  %v283 = vpop.f32.mrb[0].mxu0
  %v284 = vadd.f32 %v68, %v283
  %v285 = vpop.f32.mrb[0].mxu0
  %286 = vmatprep.mubr.bf16.mxu0 %v121
  %287 = vmatmul.mubr.bf16.gmra.mrb[0].mxu0 %v120
  %v288 = vpop.f32.mrb[0].mxu0
  %v289 = vadd.f32 %v68, %v288
  %v290 = vpop.f32.mrb[0].mxu0
  %v291 = vpop.f32.mrb[0].mxu0
  %v292 = vadd.f32 %v68, %v291
  %v293 = vpop.f32.mrb[0].mxu0
  %294 = vmatprep.mubr.bf16.mxu0 %v123
  %295 = vmatmul.mubr.bf16.gmra.mrb[0].mxu0 %v122
  %v296 = vpop.f32.mrb[0].mxu0
  %v297 = vadd.f32 %v68, %v296
  %v298 = vpop.f32.mrb[0].mxu0
  %v299 = vpop.f32.mrb[0].mxu0
  %v300 = vadd.f32 %v68, %v299
  %v301 = vpop.f32.mrb[0].mxu0
  %302 = vmatprep.mubr.bf16.mxu0 %v125
  %303 = vmatmul.mubr.bf16.gmra.mrb[0].mxu0 %v124
  %v304 = vpop.f32.mrb[0].mxu0
  %v305 = vadd.f32 %v68, %v304
  %v306 = vpop.f32.mrb[0].mxu0
  %v307 = vpop.f32.mrb[0].mxu0
  %v308 = vadd.f32 %v68, %v307
  %v309 = vpop.f32.mrb[0].mxu0
  %310 = vmatprep.mubr.bf16.mxu0 %v127
  %311 = vmatmul.mubr.bf16.gmra.mrb[0].mxu0 %v126
  %v312 = vpop.f32.mrb[0].mxu0
  %v313 = vadd.f32 %v68, %v312
  %v314 = vpop.f32.mrb[0].mxu0
  %v315 = vpop.f32.mrb[0].mxu0
  %v316 = vadd.f32 %v68, %v315
  %v317 = vpop.f32.mrb[0].mxu0
  %318 = vmatprep.mubr.bf16.mxu0 %v129
  %319 = vmatmul.mubr.bf16.gmra.mrb[0].mxu0 %v128
  %v320 = vpop.f32.mrb[0].mxu0
  %v321 = vadd.f32 %v68, %v320
  %v322 = vpop.f32.mrb[0].mxu0
  %v323 = vpop.f32.mrb[0].mxu0
  %v324 = vadd.f32 %v68, %v323
  %v325 = vpop.f32.mrb[0].mxu0
  %326 = vmatprep.mubr.bf16.mxu0 %v131
  %327 = vmatmul.mubr.bf16.gmra.mrb[0].mxu0 %v130
  %v328 = vpop.f32.mrb[0].mxu0
  %v329 = vadd.f32 %v68, %v328
  %v330 = vpop.f32.mrb[0].mxu0
  %v331 = vpop.f32.mrb[0].mxu0
  %v332 = vadd.f32 %v68, %v331
  %v333 = vpop.f32.mrb[0].mxu0
  %334 = vmatprep.mubr.bf16.mxu0 %v133
  %335 = vmatmul.mubr.bf16.gmra.mrb[0].mxu0 %v132
  %v336 = vpop.f32.mrb[0].mxu0
  %v337 = vadd.f32 %v68, %v336
  %v338 = vpop.f32.mrb[0].mxu0
  %v339 = vpop.f32.mrb[0].mxu0
  %v340 = vadd.f32 %v68, %v339
  %v341 = vpop.f32.mrb[0].mxu0
  %342 = vdwg.mxu0
  %v343 = vmax.f32 %v281, 0.0
  %v344 = vmax.f32 %v284, 0.0
  %v345 = vmax.f32 %v289, 0.0
  %v346 = vmax.f32 %v292, 0.0
  %v347 = vmax.f32 %v297, 0.0
  %v348 = vmax.f32 %v300, 0.0
  %v349 = vmax.f32 %v305, 0.0
  %v350 = vmax.f32 %v308, 0.0
  %v351 = vmax.f32 %v313, 0.0
  %v352 = vmax.f32 %v316, 0.0
  %v353 = vmax.f32 %v321, 0.0
  %v354 = vmax.f32 %v324, 0.0
  %v355 = vmax.f32 %v329, 0.0
  %v356 = vmax.f32 %v332, 0.0
  %v357 = vmax.f32 %v337, 0.0
  %v358 = vmax.f32 %v340, 0.0
  %v359 = vpack.c.bf16 %v344, %v343
  %v360 = vpack.c.bf16 %v346, %v345
  %v361 = vpack.c.bf16 %v348, %v347
  %v362 = vpack.c.bf16 %v350, %v349
  %v363 = vpack.c.bf16 %v352, %v351
  %v364 = vpack.c.bf16 %v354, %v353
  %v365 = vpack.c.bf16 %v356, %v355
  %v366 = vpack.c.bf16 %v358, %v357
  %v375 = vunpack.c.l.b16 %v359
  %v376 = vunpack.c.h.b16 %v359
  %v377 = vunpack.c.l.b16 %v360
  %v378 = vunpack.c.h.b16 %v360
  %v379 = vunpack.c.l.b16 %v361
  %v380 = vunpack.c.h.b16 %v361
  %v381 = vunpack.c.l.b16 %v362
  %v382 = vunpack.c.h.b16 %v362
  %v383 = vunpack.c.l.b16 %v363
  %v384 = vunpack.c.h.b16 %v363
  %v385 = vunpack.c.l.b16 %v364
  %v386 = vunpack.c.h.b16 %v364
  %v387 = vunpack.c.l.b16 %v365
  %v388 = vunpack.c.h.b16 %v365
  %v389 = vunpack.c.l.b16 %v366
  %v390 = vunpack.c.h.b16 %v366
  %v391 = vpack.c.b16 %v375, %v375
  %v392 = vpack.c.b16 %v376, %v376
  %v393 = vpack.c.b16 %v377, %v377
  %v394 = vpack.c.b16 %v378, %v378
  %v395 = vpack.c.b16 %v379, %v379
  %v396 = vpack.c.b16 %v380, %v380
  %v397 = vpack.c.b16 %v381, %v381
  %v398 = vpack.c.b16 %v382, %v382
  %v399 = vpack.c.b16 %v383, %v383
  %v400 = vpack.c.b16 %v384, %v384
  %v401 = vpack.c.b16 %v385, %v385
  %v402 = vpack.c.b16 %v386, %v386
  %v403 = vpack.c.b16 %v387, %v387
  %v404 = vpack.c.b16 %v388, %v388
  %v405 = vpack.c.b16 %v389, %v389
  %v406 = vpack.c.b16 %v390, %v390
  %423 = vst [vmem:[%s3] sm:$0xf] %v391
  %424 = vst [vmem:[%s3 + $0x4] sm:$0xf] %v392
  %425 = vst [vmem:[%s3 + $0x8] sm:$0xf] %v393
  %426 = vst [vmem:[%s3 + $0xc] sm:$0xf] %v394
  %427 = vst [vmem:[%s3 + $0x10] sm:$0xf] %v395
  %428 = vst [vmem:[%s3 + $0x14] sm:$0xf] %v396
  %429 = vst [vmem:[%s3 + $0x18] sm:$0xf] %v397
  %430 = vst [vmem:[%s3 + $0x1c] sm:$0xf] %v398
  %431 = vst [vmem:[%s3 + $0x20] sm:$0xf] %v399
  %432 = vst [vmem:[%s3 + $0x24] sm:$0xf] %v400
  %433 = vst [vmem:[%s3 + $0x28] sm:$0xf] %v401
  %434 = vst [vmem:[%s3 + $0x2c] sm:$0xf] %v402
  %435 = vst [vmem:[%s3 + $0x30] sm:$0xf] %v403
  %436 = vst [vmem:[%s3 + $0x34] sm:$0xf] %v404
  %437 = vst [vmem:[%s3 + $0x38] sm:$0xf] %v405
  %438 = vst [vmem:[%s3 + $0x3c] sm:$0xf] %v406
  // Predicated region
  $region14: #{qrdqn_forward.4} parent=0 // pred_check
    _
  $region15: #{qrdqn_forward.4} parent=0 // pred_check_branch
    %440 = sbr.rel (0) target = $region17
  $region16: #{qrdqn_forward.4} parent=0 // pred_region
    _
  $region17: #{qrdqn_forward.4} parent=0 // pred_fallthru
    _
  // Predicated region
  $region18: #{qrdqn_forward.4} parent=0 // pred_check
    _
  $region19: #{qrdqn_forward.4} parent=0 // pred_check_branch
    %442 = sbr.rel (0) target = $region21
  $region20: #{qrdqn_forward.4} parent=0 // pred_region
    _
  $region21: #{qrdqn_forward.4} parent=0 // pred_fallthru
    _

// kernel: qrdqn_forward.6
$region0: #{qrdqn_forward.6}
  #allocation0 [shape = 'u32[]', space=smem, size = 0x4, offset = 0x4, fixed_abs, tag = 'smem constant byte address 0x4 - core index']
  #allocation1 [shape = 'u32[144,128]{1,0:T(1,128)}', space=vmem, size = 0x12000, scoped, tag = 'internal scratch']
  %s0 = inlined_call_operand.vmem [shape: bf16[16,1152], index: 0, kind: input, shape index: {}]
  %s1 = inlined_call_operand.vmem [shape: bf16[1152,128], index: 1, kind: input, shape index: {}]
  %s2 = inlined_call_operand.vmem [shape: f32[1,128], index: 2, kind: input, shape index: {}]
  %s3 = inlined_call_operand.vmem [shape: bf16[16,128], index: 3, kind: output, shape index: {}]
  %s4 = sld [smem:[#allocation0]]
  $region22: #{qrdqn_forward.6} parent=0
    _
  %s6 = ssub.s32 1, %s4
  %s7 = scalar_select 0, %s6, %s4
  // Predicated region
  $region2: #{qrdqn_forward.6} parent=0 // pred_check
    _
  $region3: #{qrdqn_forward.6} parent=0 // pred_check_branch
    %9 = sbr.rel (0) target = $region5
  $region4: #{qrdqn_forward.6} parent=0 // pred_region
    _
  $region5: #{qrdqn_forward.6} parent=0 // pred_fallthru
    _
  // Predicated region
  $region6: #{qrdqn_forward.6} parent=0 // pred_check
    _
  $region7: #{qrdqn_forward.6} parent=0 // pred_check_branch
    %11 = sbr.rel (0) target = $region9
  $region8: #{qrdqn_forward.6} parent=0 // pred_region
    _
  $region9: #{qrdqn_forward.6} parent=0 // pred_fallthru
    _
  // Predicated region
  $region10: #{qrdqn_forward.6} parent=0 // pred_check
    _
  $region11: #{qrdqn_forward.6} parent=0 // pred_check_branch
    %13 = sbr.rel (0) target = $region13
  $region12: #{qrdqn_forward.6} parent=0 // pred_region
    _
  $region13: #{qrdqn_forward.6} parent=0 // pred_fallthru
    _
  %v15 = vld [vmem:[%s0] sm:$0xff]
  %v16 = vld [vmem:[%s0 + $0x8] sm:$0xff]
  %v17 = vld [vmem:[%s0 + $0x10] sm:$0xff]
  %v18 = vld [vmem:[%s0 + $0x18] sm:$0xff]
  %v19 = vld [vmem:[%s0 + $0x20] sm:$0xf]
  %v20 = vld [vmem:[%s0 + $0x24] sm:$0xff]
  %v21 = vld [vmem:[%s0 + $0x2c] sm:$0xff]
  %v22 = vld [vmem:[%s0 + $0x34] sm:$0xff]
  %v23 = vld [vmem:[%s0 + $0x3c] sm:$0xff]
  %v24 = vld [vmem:[%s0 + $0x44] sm:$0xf]
  %v25 = vld [vmem:[%s1] sm:$0xf]
  %v26 = vld [vmem:[%s1 + $0x4] sm:$0xf]
  %v27 = vld [vmem:[%s1 + $0x8] sm:$0xf]
  %v28 = vld [vmem:[%s1 + $0xc] sm:$0xf]
  %v29 = vld [vmem:[%s1 + $0x10] sm:$0xf]
  %v30 = vld [vmem:[%s1 + $0x14] sm:$0xf]
  %v31 = vld [vmem:[%s1 + $0x18] sm:$0xf]
  %v32 = vld [vmem:[%s1 + $0x1c] sm:$0xf]
  %v33 = vld [vmem:[%s1 + $0x20] sm:$0xf]
  %v34 = vld [vmem:[%s1 + $0x24] sm:$0xf]
  %v35 = vld [vmem:[%s1 + $0x28] sm:$0xf]
  %v36 = vld [vmem:[%s1 + $0x2c] sm:$0xf]
  %v37 = vld [vmem:[%s1 + $0x30] sm:$0xf]
  %v38 = vld [vmem:[%s1 + $0x34] sm:$0xf]
  %v39 = vld [vmem:[%s1 + $0x38] sm:$0xf]
  %v40 = vld [vmem:[%s1 + $0x3c] sm:$0xf]
  %v41 = vld [vmem:[%s1 + $0x40] sm:$0xf]
  %v42 = vld [vmem:[%s1 + $0x44] sm:$0xf]
  %v43 = vld [vmem:[%s1 + $0x48] sm:$0xf]
  %v44 = vld [vmem:[%s1 + $0x4c] sm:$0xf]
  %v45 = vld [vmem:[%s1 + $0x50] sm:$0xf]
  %v46 = vld [vmem:[%s1 + $0x54] sm:$0xf]
  %v47 = vld [vmem:[%s1 + $0x58] sm:$0xf]
  %v48 = vld [vmem:[%s1 + $0x5c] sm:$0xf]
  %v49 = vld [vmem:[%s1 + $0x60] sm:$0xf]
  %v50 = vld [vmem:[%s1 + $0x64] sm:$0xf]
  %v51 = vld [vmem:[%s1 + $0x68] sm:$0xf]
  %v52 = vld [vmem:[%s1 + $0x6c] sm:$0xf]
  %v53 = vld [vmem:[%s1 + $0x70] sm:$0xf]
  %v54 = vld [vmem:[%s1 + $0x74] sm:$0xf]
  %v55 = vld [vmem:[%s1 + $0x78] sm:$0xf]
  %v56 = vld [vmem:[%s1 + $0x7c] sm:$0xf]
  %v57 = vld [vmem:[%s1 + $0x80] sm:$0xf]
  %v58 = vld [vmem:[%s1 + $0x84] sm:$0xf]
  %v59 = vld [vmem:[%s1 + $0x88] sm:$0xf]
  %v60 = vld [vmem:[%s1 + $0x8c] sm:$0xf]
  %v61 = vld [vmem:[%s1 + $0x90] sm:$0xf]
  %v62 = vld [vmem:[%s1 + $0x94] sm:$0xf]
  %v63 = vld [vmem:[%s1 + $0x98] sm:$0xf]
  %v64 = vld [vmem:[%s1 + $0x9c] sm:$0xf]
  %v65 = vld [vmem:[%s1 + $0xa0] sm:$0xf]
  %v66 = vld [vmem:[%s1 + $0xa4] sm:$0xf]
  %v67 = vld [vmem:[%s1 + $0xa8] sm:$0xf]
  %v68 = vld [vmem:[%s1 + $0xac] sm:$0xf]
  %v69 = vld [vmem:[%s1 + $0xb0] sm:$0xf]
  %v70 = vld [vmem:[%s1 + $0xb4] sm:$0xf]
  %v71 = vld [vmem:[%s1 + $0xb8] sm:$0xf]
  %v72 = vld [vmem:[%s1 + $0xbc] sm:$0xf]
  %v73 = vld [vmem:[%s1 + $0xc0] sm:$0xf]
  %v74 = vld [vmem:[%s1 + $0xc4] sm:$0xf]
  %v75 = vld [vmem:[%s1 + $0xc8] sm:$0xf]
  %v76 = vld [vmem:[%s1 + $0xcc] sm:$0xf]
  %v77 = vld [vmem:[%s1 + $0xd0] sm:$0xf]
  %v78 = vld [vmem:[%s1 + $0xd4] sm:$0xf]
  %v79 = vld [vmem:[%s1 + $0xd8] sm:$0xf]
  %v80 = vld [vmem:[%s1 + $0xdc] sm:$0xf]
  %v81 = vld [vmem:[%s1 + $0xe0] sm:$0xf]
  %v82 = vld [vmem:[%s1 + $0xe4] sm:$0xf]
  %v83 = vld [vmem:[%s1 + $0xe8] sm:$0xf]
  %v84 = vld [vmem:[%s1 + $0xec] sm:$0xf]
  %v85 = vld [vmem:[%s1 + $0xf0] sm:$0xf]
  %v86 = vld [vmem:[%s1 + $0xf4] sm:$0xf]
  %v87 = vld [vmem:[%s1 + $0xf8] sm:$0xf]
  %v88 = vld [vmem:[%s1 + $0xfc] sm:$0xf]
  %v89 = vld [vmem:[%s1 + $0x100] sm:$0xf]
  %v90 = vld [vmem:[%s1 + $0x104] sm:$0xf]
  %v91 = vld [vmem:[%s1 + $0x108] sm:$0xf]
  %v92 = vld [vmem:[%s1 + $0x10c] sm:$0xf]
  %v93 = vld [vmem:[%s1 + $0x110] sm:$0xf]
  %v94 = vld [vmem:[%s1 + $0x114] sm:$0xf]
  %v95 = vld [vmem:[%s1 + $0x118] sm:$0xf]
  %v96 = vld [vmem:[%s1 + $0x11c] sm:$0xf]
  %v97 = vld [vmem:[%s1 + $0x120] sm:$0xf]
  %v98 = vld [vmem:[%s1 + $0x124] sm:$0xf]
  %v99 = vld [vmem:[%s1 + $0x128] sm:$0xf]
  %v100 = vld [vmem:[%s1 + $0x12c] sm:$0xf]
  %v101 = vld [vmem:[%s1 + $0x130] sm:$0xf]
  %v102 = vld [vmem:[%s1 + $0x134] sm:$0xf]
  %v103 = vld [vmem:[%s1 + $0x138] sm:$0xf]
  %v104 = vld [vmem:[%s1 + $0x13c] sm:$0xf]
  %v105 = vld [vmem:[%s1 + $0x140] sm:$0xf]
  %v106 = vld [vmem:[%s1 + $0x144] sm:$0xf]
  %v107 = vld [vmem:[%s1 + $0x148] sm:$0xf]
  %v108 = vld [vmem:[%s1 + $0x14c] sm:$0xf]
  %v109 = vld [vmem:[%s1 + $0x150] sm:$0xf]
  %v110 = vld [vmem:[%s1 + $0x154] sm:$0xf]
  %v111 = vld [vmem:[%s1 + $0x158] sm:$0xf]
  %v112 = vld [vmem:[%s1 + $0x15c] sm:$0xf]
  %v113 = vld [vmem:[%s1 + $0x160] sm:$0xf]
  %v114 = vld [vmem:[%s1 + $0x164] sm:$0xf]
  %v115 = vld [vmem:[%s1 + $0x168] sm:$0xf]
  %v116 = vld [vmem:[%s1 + $0x16c] sm:$0xf]
  %v117 = vld [vmem:[%s1 + $0x170] sm:$0xf]
  %v118 = vld [vmem:[%s1 + $0x174] sm:$0xf]
  %v119 = vld [vmem:[%s1 + $0x178] sm:$0xf]
  %v120 = vld [vmem:[%s1 + $0x17c] sm:$0xf]
  %v121 = vld [vmem:[%s1 + $0x180] sm:$0xf]
  %v122 = vld [vmem:[%s1 + $0x184] sm:$0xf]
  %v123 = vld [vmem:[%s1 + $0x188] sm:$0xf]
  %v124 = vld [vmem:[%s1 + $0x18c] sm:$0xf]
  %v125 = vld [vmem:[%s1 + $0x190] sm:$0xf]
  %v126 = vld [vmem:[%s1 + $0x194] sm:$0xf]
  %v127 = vld [vmem:[%s1 + $0x198] sm:$0xf]
  %v128 = vld [vmem:[%s1 + $0x19c] sm:$0xf]
  %v129 = vld [vmem:[%s1 + $0x1a0] sm:$0xf]
  %v130 = vld [vmem:[%s1 + $0x1a4] sm:$0xf]
  %v131 = vld [vmem:[%s1 + $0x1a8] sm:$0xf]
  %v132 = vld [vmem:[%s1 + $0x1ac] sm:$0xf]
  %v133 = vld [vmem:[%s1 + $0x1b0] sm:$0xf]
  %v134 = vld [vmem:[%s1 + $0x1b4] sm:$0xf]
  %v135 = vld [vmem:[%s1 + $0x1b8] sm:$0xf]
  %v136 = vld [vmem:[%s1 + $0x1bc] sm:$0xf]
  %v137 = vld [vmem:[%s1 + $0x1c0] sm:$0xf]
  %v138 = vld [vmem:[%s1 + $0x1c4] sm:$0xf]
  %v139 = vld [vmem:[%s1 + $0x1c8] sm:$0xf]
  %v140 = vld [vmem:[%s1 + $0x1cc] sm:$0xf]
  %v141 = vld [vmem:[%s1 + $0x1d0] sm:$0xf]
  %v142 = vld [vmem:[%s1 + $0x1d4] sm:$0xf]
  %v143 = vld [vmem:[%s1 + $0x1d8] sm:$0xf]
  %v144 = vld [vmem:[%s1 + $0x1dc] sm:$0xf]
  %v145 = vld [vmem:[%s1 + $0x1e0] sm:$0xf]
  %v146 = vld [vmem:[%s1 + $0x1e4] sm:$0xf]
  %v147 = vld [vmem:[%s1 + $0x1e8] sm:$0xf]
  %v148 = vld [vmem:[%s1 + $0x1ec] sm:$0xf]
  %v149 = vld [vmem:[%s1 + $0x1f0] sm:$0xf]
  %v150 = vld [vmem:[%s1 + $0x1f4] sm:$0xf]
  %v151 = vld [vmem:[%s1 + $0x1f8] sm:$0xf]
  %v152 = vld [vmem:[%s1 + $0x1fc] sm:$0xf]
  %v153 = vld [vmem:[%s1 + $0x200] sm:$0xf]
  %v154 = vld [vmem:[%s1 + $0x204] sm:$0xf]
  %v155 = vld [vmem:[%s1 + $0x208] sm:$0xf]
  %v156 = vld [vmem:[%s1 + $0x20c] sm:$0xf]
  %v157 = vld [vmem:[%s1 + $0x210] sm:$0xf]
  %v158 = vld [vmem:[%s1 + $0x214] sm:$0xf]
  %v159 = vld [vmem:[%s1 + $0x218] sm:$0xf]
  %v160 = vld [vmem:[%s1 + $0x21c] sm:$0xf]
  %v161 = vld [vmem:[%s1 + $0x220] sm:$0xf]
  %v162 = vld [vmem:[%s1 + $0x224] sm:$0xf]
  %v163 = vld [vmem:[%s1 + $0x228] sm:$0xf]
  %v164 = vld [vmem:[%s1 + $0x22c] sm:$0xf]
  %v165 = vld [vmem:[%s1 + $0x230] sm:$0xf]
  %v166 = vld [vmem:[%s1 + $0x234] sm:$0xf]
  %v167 = vld [vmem:[%s1 + $0x238] sm:$0xf]
  %v168 = vld [vmem:[%s1 + $0x23c] sm:$0xf]
  %v169 = vld [vmem:[%s2] sm:$0x1]
  %v171 = vlaneseq
  %v172 = vshrl.u32 %v171, 7
  %v173 = vsub.s32 0, %v172
  %v174 = vrot.slane %v169, %v173
  %v186 = vunpack.c.l.b16 %v15
  %v187 = vunpack.c.h.b16 %v15
  %v188 = vunpack.c.l.b16 %v16
  %v189 = vunpack.c.h.b16 %v16
  %v190 = vunpack.c.l.b16 %v17
  %v191 = vunpack.c.h.b16 %v17
  %v192 = vunpack.c.l.b16 %v18
  %v193 = vunpack.c.h.b16 %v18
  %v194 = vunpack.c.l.b16 %v19
  %v195 = vunpack.c.l.b16 %v20
  %v196 = vunpack.c.h.b16 %v20
  %v197 = vunpack.c.l.b16 %v21
  %v198 = vunpack.c.h.b16 %v21
  %v199 = vunpack.c.l.b16 %v22
  %v200 = vunpack.c.h.b16 %v22
  %v201 = vunpack.c.l.b16 %v23
  %v202 = vunpack.c.h.b16 %v23
  %v203 = vunpack.c.l.b16 %v24
  %v204 = vpack.c.b16 %v195, %v186
  %v205 = vpack.c.b16 %v196, %v187
  %v206 = vpack.c.b16 %v197, %v188
  %v207 = vpack.c.b16 %v198, %v189
  %v208 = vpack.c.b16 %v199, %v190
  %v209 = vpack.c.b16 %v200, %v191
  %v210 = vpack.c.b16 %v201, %v192
  %v211 = vpack.c.b16 %v202, %v193
  %v212 = vpack.c.b16 %v203, %v194
  %v366 = vunpack.c.l.b16 %v25
  %v367 = vunpack.c.l.b16 %v26
  %v368 = vunpack.c.l.b16 %v27
  %v369 = vunpack.c.l.b16 %v28
  %v370 = vunpack.c.l.b16 %v29
  %v371 = vunpack.c.l.b16 %v30
  %v372 = vunpack.c.l.b16 %v31
  %v373 = vunpack.c.l.b16 %v32
  %v374 = vunpack.c.l.b16 %v33
  %v375 = vunpack.c.l.b16 %v34
  %v376 = vunpack.c.l.b16 %v35
  %v377 = vunpack.c.l.b16 %v36
  %v378 = vunpack.c.l.b16 %v37
  %v379 = vunpack.c.l.b16 %v38
  %v380 = vunpack.c.l.b16 %v39
  %v381 = vunpack.c.l.b16 %v40
  %v382 = vunpack.c.l.b16 %v41
  %v383 = vunpack.c.l.b16 %v42
  %v384 = vunpack.c.l.b16 %v43
  %v385 = vunpack.c.l.b16 %v44
  %v386 = vunpack.c.l.b16 %v45
  %v387 = vunpack.c.l.b16 %v46
  %v388 = vunpack.c.l.b16 %v47
  %v389 = vunpack.c.l.b16 %v48
  %v390 = vunpack.c.l.b16 %v49
  %v391 = vunpack.c.l.b16 %v50
  %v392 = vunpack.c.l.b16 %v51
  %v393 = vunpack.c.l.b16 %v52
  %v394 = vunpack.c.l.b16 %v53
  %v395 = vunpack.c.l.b16 %v54
  %v396 = vunpack.c.l.b16 %v55
  %v397 = vunpack.c.l.b16 %v56
  %v398 = vunpack.c.l.b16 %v57
  %v399 = vunpack.c.l.b16 %v58
  %v400 = vunpack.c.l.b16 %v59
  %v401 = vunpack.c.l.b16 %v60
  %v402 = vunpack.c.l.b16 %v61
  %v403 = vunpack.c.l.b16 %v62
  %v404 = vunpack.c.l.b16 %v63
  %v405 = vunpack.c.l.b16 %v64
  %v406 = vunpack.c.l.b16 %v65
  %v407 = vunpack.c.l.b16 %v66
  %v408 = vunpack.c.l.b16 %v67
  %v409 = vunpack.c.l.b16 %v68
  %v410 = vunpack.c.l.b16 %v69
  %v411 = vunpack.c.l.b16 %v70
  %v412 = vunpack.c.l.b16 %v71
  %v413 = vunpack.c.l.b16 %v72
  %v414 = vunpack.c.l.b16 %v73
  %v415 = vunpack.c.l.b16 %v74
  %v416 = vunpack.c.l.b16 %v75
  %v417 = vunpack.c.l.b16 %v76
  %v418 = vunpack.c.l.b16 %v77
  %v419 = vunpack.c.l.b16 %v78
  %v420 = vunpack.c.l.b16 %v79
  %v421 = vunpack.c.l.b16 %v80
  %v422 = vunpack.c.l.b16 %v81
  %v423 = vunpack.c.l.b16 %v82
  %v424 = vunpack.c.l.b16 %v83
  %v425 = vunpack.c.l.b16 %v84
  %v426 = vunpack.c.l.b16 %v85
  %v427 = vunpack.c.l.b16 %v86
  %v428 = vunpack.c.l.b16 %v87
  %v429 = vunpack.c.l.b16 %v88
  %v430 = vunpack.c.l.b16 %v89
  %v431 = vunpack.c.l.b16 %v90
  %v432 = vunpack.c.l.b16 %v91
  %v433 = vunpack.c.l.b16 %v92
  %v434 = vunpack.c.l.b16 %v93
  %v435 = vunpack.c.l.b16 %v94
  %v436 = vunpack.c.l.b16 %v95
  %v437 = vunpack.c.l.b16 %v96
  %v438 = vunpack.c.l.b16 %v97
  %v439 = vunpack.c.l.b16 %v98
  %v440 = vunpack.c.l.b16 %v99
  %v441 = vunpack.c.l.b16 %v100
  %v442 = vunpack.c.l.b16 %v101
  %v443 = vunpack.c.l.b16 %v102
  %v444 = vunpack.c.l.b16 %v103
  %v445 = vunpack.c.l.b16 %v104
  %v446 = vunpack.c.l.b16 %v105
  %v447 = vunpack.c.l.b16 %v106
  %v448 = vunpack.c.l.b16 %v107
  %v449 = vunpack.c.l.b16 %v108
  %v450 = vunpack.c.l.b16 %v109
  %v451 = vunpack.c.l.b16 %v110
  %v452 = vunpack.c.l.b16 %v111
  %v453 = vunpack.c.l.b16 %v112
  %v454 = vunpack.c.l.b16 %v113
  %v455 = vunpack.c.l.b16 %v114
  %v456 = vunpack.c.l.b16 %v115
  %v457 = vunpack.c.l.b16 %v116
  %v458 = vunpack.c.l.b16 %v117
  %v459 = vunpack.c.l.b16 %v118
  %v460 = vunpack.c.l.b16 %v119
  %v461 = vunpack.c.l.b16 %v120
  %v462 = vunpack.c.l.b16 %v121
  %v463 = vunpack.c.l.b16 %v122
  %v464 = vunpack.c.l.b16 %v123
  %v465 = vunpack.c.l.b16 %v124
  %v466 = vunpack.c.l.b16 %v125
  %v467 = vunpack.c.l.b16 %v126
  %v468 = vunpack.c.l.b16 %v127
  %v469 = vunpack.c.l.b16 %v128
  %v470 = vunpack.c.l.b16 %v129
  %v471 = vunpack.c.l.b16 %v130
  %v472 = vunpack.c.l.b16 %v131
  %v473 = vunpack.c.l.b16 %v132
  %v474 = vunpack.c.l.b16 %v133
  %v475 = vunpack.c.l.b16 %v134
  %v476 = vunpack.c.l.b16 %v135
  %v477 = vunpack.c.l.b16 %v136
  %v478 = vunpack.c.l.b16 %v137
  %v479 = vunpack.c.l.b16 %v138
  %v480 = vunpack.c.l.b16 %v139
  %v481 = vunpack.c.l.b16 %v140
  %v482 = vunpack.c.l.b16 %v141
  %v483 = vunpack.c.l.b16 %v142
  %v484 = vunpack.c.l.b16 %v143
  %v485 = vunpack.c.l.b16 %v144
  %v486 = vunpack.c.l.b16 %v145
  %v487 = vunpack.c.l.b16 %v146
  %v488 = vunpack.c.l.b16 %v147
  %v489 = vunpack.c.l.b16 %v148
  %v490 = vunpack.c.l.b16 %v149
  %v491 = vunpack.c.l.b16 %v150
  %v492 = vunpack.c.l.b16 %v151
  %v493 = vunpack.c.l.b16 %v152
  %v494 = vunpack.c.l.b16 %v153
  %v495 = vunpack.c.l.b16 %v154
  %v496 = vunpack.c.l.b16 %v155
  %v497 = vunpack.c.l.b16 %v156
  %v498 = vunpack.c.l.b16 %v157
  %v499 = vunpack.c.l.b16 %v158
  %v500 = vunpack.c.l.b16 %v159
  %v501 = vunpack.c.l.b16 %v160
  %v502 = vunpack.c.l.b16 %v161
  %v503 = vunpack.c.l.b16 %v162
  %v504 = vunpack.c.l.b16 %v163
  %v505 = vunpack.c.l.b16 %v164
  %v506 = vunpack.c.l.b16 %v165
  %v507 = vunpack.c.l.b16 %v166
  %v508 = vunpack.c.l.b16 %v167
  %v509 = vunpack.c.l.b16 %v168
  %v510 = vpack.c.b16 %v367, %v366
  %v511 = vpack.c.b16 %v369, %v368
  %v512 = vpack.c.b16 %v371, %v370
  %v513 = vpack.c.b16 %v373, %v372
  %v514 = vpack.c.b16 %v375, %v374
  %v515 = vpack.c.b16 %v377, %v376
  %v516 = vpack.c.b16 %v379, %v378
  %v517 = vpack.c.b16 %v381, %v380
  %v518 = vpack.c.b16 %v383, %v382
  %v519 = vpack.c.b16 %v385, %v384
  %v520 = vpack.c.b16 %v387, %v386
  %v521 = vpack.c.b16 %v389, %v388
  %v522 = vpack.c.b16 %v391, %v390
  %v523 = vpack.c.b16 %v393, %v392
  %v524 = vpack.c.b16 %v395, %v394
  %v525 = vpack.c.b16 %v397, %v396
  %v526 = vpack.c.b16 %v399, %v398
  %v527 = vpack.c.b16 %v401, %v400
  %v528 = vpack.c.b16 %v403, %v402
  %v529 = vpack.c.b16 %v405, %v404
  %v530 = vpack.c.b16 %v407, %v406
  %v531 = vpack.c.b16 %v409, %v408
  %v532 = vpack.c.b16 %v411, %v410
  %v533 = vpack.c.b16 %v413, %v412
  %v534 = vpack.c.b16 %v415, %v414
  %v535 = vpack.c.b16 %v417, %v416
  %v536 = vpack.c.b16 %v419, %v418
  %v537 = vpack.c.b16 %v421, %v420
  %v538 = vpack.c.b16 %v423, %v422
  %v539 = vpack.c.b16 %v425, %v424
  %v540 = vpack.c.b16 %v427, %v426
  %v541 = vpack.c.b16 %v429, %v428
  %v542 = vpack.c.b16 %v431, %v430
  %v543 = vpack.c.b16 %v433, %v432
  %v544 = vpack.c.b16 %v435, %v434
  %v545 = vpack.c.b16 %v437, %v436
  %v546 = vpack.c.b16 %v439, %v438
  %v547 = vpack.c.b16 %v441, %v440
  %v548 = vpack.c.b16 %v443, %v442
  %v549 = vpack.c.b16 %v445, %v444
  %v550 = vpack.c.b16 %v447, %v446
  %v551 = vpack.c.b16 %v449, %v448
  %v552 = vpack.c.b16 %v451, %v450
  %v553 = vpack.c.b16 %v453, %v452
  %v554 = vpack.c.b16 %v455, %v454
  %v555 = vpack.c.b16 %v457, %v456
  %v556 = vpack.c.b16 %v459, %v458
  %v557 = vpack.c.b16 %v461, %v460
  %v558 = vpack.c.b16 %v463, %v462
  %v559 = vpack.c.b16 %v465, %v464
  %v560 = vpack.c.b16 %v467, %v466
  %v561 = vpack.c.b16 %v469, %v468
  %v562 = vpack.c.b16 %v471, %v470
  %v563 = vpack.c.b16 %v473, %v472
  %v564 = vpack.c.b16 %v475, %v474
  %v565 = vpack.c.b16 %v477, %v476
  %v566 = vpack.c.b16 %v479, %v478
  %v567 = vpack.c.b16 %v481, %v480
  %v568 = vpack.c.b16 %v483, %v482
  %v569 = vpack.c.b16 %v485, %v484
  %v570 = vpack.c.b16 %v487, %v486
  %v571 = vpack.c.b16 %v489, %v488
  %v572 = vpack.c.b16 %v491, %v490
  %v573 = vpack.c.b16 %v493, %v492
  %v574 = vpack.c.b16 %v495, %v494
  %v575 = vpack.c.b16 %v497, %v496
  %v576 = vpack.c.b16 %v499, %v498
  %v577 = vpack.c.b16 %v501, %v500
  %v578 = vpack.c.b16 %v503, %v502
  %v579 = vpack.c.b16 %v505, %v504
  %v580 = vpack.c.b16 %v507, %v506
  %v581 = vpack.c.b16 %v509, %v508
  %654 = vmatprep.subr.bf16.mxu0 0
  %655 = vmatpush1.bf16.msra.mxu0 %v510
  %656 = vmatprep.subr.bf16.mxu0 0
  %657 = vmatpush1.bf16.msra.mxu0 %v511
  %658 = vmatprep.subr.bf16.mxu0 0
  %659 = vmatpush1.bf16.msra.mxu0 %v512
  %660 = vmatprep.subr.bf16.mxu0 0
  %661 = vmatpush1.bf16.msra.mxu0 %v513
  %662 = vmatprep.subr.bf16.mxu0 0
  %663 = vmatpush1.bf16.msra.mxu0 %v514
  %664 = vmatprep.subr.bf16.mxu0 0
  %665 = vmatpush1.bf16.msra.mxu0 %v515
  %666 = vmatprep.subr.bf16.mxu0 0
  %667 = vmatpush1.bf16.msra.mxu0 %v516
  %668 = vmatprep.subr.bf16.mxu0 0
  %669 = vmatpush1.bf16.msra.mxu0 %v517
  %670 = vmatprep.subr.bf16.mxu0 0
  %671 = vmatpush1.bf16.msra.mxu0 %v518
  %672 = vmatprep.subr.bf16.mxu0 0
  %673 = vmatpush1.bf16.msra.mxu0 %v519
  %674 = vmatprep.subr.bf16.mxu0 0
  %675 = vmatpush1.bf16.msra.mxu0 %v520
  %676 = vmatprep.subr.bf16.mxu0 0
  %677 = vmatpush1.bf16.msra.mxu0 %v521
  %678 = vmatprep.subr.bf16.mxu0 0
  %679 = vmatpush1.bf16.msra.mxu0 %v522
  %680 = vmatprep.subr.bf16.mxu0 0
  %681 = vmatpush1.bf16.msra.mxu0 %v523
  %682 = vmatprep.subr.bf16.mxu0 0
  %683 = vmatpush1.bf16.msra.mxu0 %v524
  %684 = vmatprep.subr.bf16.mxu0 0
  %685 = vmatpush1.bf16.msra.mxu0 %v525
  %686 = vmatprep.mubr.bf16.mxu0 %v205
  %687 = vmatmul.mubr.bf16.gmra.mrb[0].mxu0 %v204
  %v688 = vpop.f32.mrb[0].mxu0
  %v689 = vadd.f32 %v174, %v688
  %v690 = vpop.f32.mrb[0].mxu0
  %v691 = vpop.f32.mrb[0].mxu0
  %v692 = vadd.f32 %v174, %v691
  %v693 = vpop.f32.mrb[0].mxu0
  %694 = vdwg.mxu0
  %695 = vmatprep.subr.bf16.mxu0 0
  %696 = vmatpush1.bf16.msra.mxu0 %v526
  %697 = vmatprep.subr.bf16.mxu0 0
  %698 = vmatpush1.bf16.msra.mxu0 %v527
  %699 = vmatprep.subr.bf16.mxu0 0
  %700 = vmatpush1.bf16.msra.mxu0 %v528
  %701 = vmatprep.subr.bf16.mxu0 0
  %702 = vmatpush1.bf16.msra.mxu0 %v529
  %703 = vmatprep.subr.bf16.mxu0 0
  %704 = vmatpush1.bf16.msra.mxu0 %v530
  %705 = vmatprep.subr.bf16.mxu0 0
  %706 = vmatpush1.bf16.msra.mxu0 %v531
  %707 = vmatprep.subr.bf16.mxu0 0
  %708 = vmatpush1.bf16.msra.mxu0 %v532
  %709 = vmatprep.subr.bf16.mxu0 0
  %710 = vmatpush1.bf16.msra.mxu0 %v533
  %711 = vmatprep.subr.bf16.mxu0 0
  %712 = vmatpush1.bf16.msra.mxu0 %v534
  %713 = vmatprep.subr.bf16.mxu0 0
  %714 = vmatpush1.bf16.msra.mxu0 %v535
  %715 = vmatprep.subr.bf16.mxu0 0
  %716 = vmatpush1.bf16.msra.mxu0 %v536
  %717 = vmatprep.subr.bf16.mxu0 0
  %718 = vmatpush1.bf16.msra.mxu0 %v537
  %719 = vmatprep.subr.bf16.mxu0 0
  %720 = vmatpush1.bf16.msra.mxu0 %v538
  %721 = vmatprep.subr.bf16.mxu0 0
  %722 = vmatpush1.bf16.msra.mxu0 %v539
  %723 = vmatprep.subr.bf16.mxu0 0
  %724 = vmatpush1.bf16.msra.mxu0 %v540
  %725 = vmatprep.subr.bf16.mxu0 0
  %726 = vmatpush1.bf16.msra.mxu0 %v541
  %727 = vmatprep.mubr.bf16.mxu0 %v207
  %728 = vmatmul.mubr.bf16.gmra.mrb[0].mxu0 %v206
  %v729 = vpop.f32.mrb[0].mxu0
  %v730 = vadd.f32 %v689, %v729
  %v731 = vpop.f32.mrb[0].mxu0
  %v732 = vpop.f32.mrb[0].mxu0
  %v733 = vadd.f32 %v692, %v732
  %v734 = vpop.f32.mrb[0].mxu0
  %735 = vdwg.mxu0
  %736 = vmatprep.subr.bf16.mxu0 0
  %737 = vmatpush1.bf16.msra.mxu0 %v542
  %738 = vmatprep.subr.bf16.mxu0 0
  %739 = vmatpush1.bf16.msra.mxu0 %v543
  %740 = vmatprep.subr.bf16.mxu0 0
  %741 = vmatpush1.bf16.msra.mxu0 %v544
  %742 = vmatprep.subr.bf16.mxu0 0
  %743 = vmatpush1.bf16.msra.mxu0 %v545
  %744 = vmatprep.subr.bf16.mxu0 0
  %745 = vmatpush1.bf16.msra.mxu0 %v546
  %746 = vmatprep.subr.bf16.mxu0 0
  %747 = vmatpush1.bf16.msra.mxu0 %v547
  %748 = vmatprep.subr.bf16.mxu0 0
  %749 = vmatpush1.bf16.msra.mxu0 %v548
  %750 = vmatprep.subr.bf16.mxu0 0
  %751 = vmatpush1.bf16.msra.mxu0 %v549
  %752 = vmatprep.subr.bf16.mxu0 0
  %753 = vmatpush1.bf16.msra.mxu0 %v550
  %754 = vmatprep.subr.bf16.mxu0 0
  %755 = vmatpush1.bf16.msra.mxu0 %v551
  %756 = vmatprep.subr.bf16.mxu0 0
  %757 = vmatpush1.bf16.msra.mxu0 %v552
  %758 = vmatprep.subr.bf16.mxu0 0
  %759 = vmatpush1.bf16.msra.mxu0 %v553
  %760 = vmatprep.subr.bf16.mxu0 0
  %761 = vmatpush1.bf16.msra.mxu0 %v554
  %762 = vmatprep.subr.bf16.mxu0 0
  %763 = vmatpush1.bf16.msra.mxu0 %v555
  %764 = vmatprep.subr.bf16.mxu0 0
  %765 = vmatpush1.bf16.msra.mxu0 %v556
  %766 = vmatprep.subr.bf16.mxu0 0
  %767 = vmatpush1.bf16.msra.mxu0 %v557
  %768 = vmatprep.mubr.bf16.mxu0 %v209
  %769 = vmatmul.mubr.bf16.gmra.mrb[0].mxu0 %v208
  %v770 = vpop.f32.mrb[0].mxu0
  %v771 = vadd.f32 %v730, %v770
  %v772 = vpop.f32.mrb[0].mxu0
  %v773 = vpop.f32.mrb[0].mxu0
  %v774 = vadd.f32 %v733, %v773
  %v775 = vpop.f32.mrb[0].mxu0
  %776 = vdwg.mxu0
  %777 = vmatprep.subr.bf16.mxu0 0
  %778 = vmatpush1.bf16.msra.mxu0 %v558
  %779 = vmatprep.subr.bf16.mxu0 0
  %780 = vmatpush1.bf16.msra.mxu0 %v559
  %781 = vmatprep.subr.bf16.mxu0 0
  %782 = vmatpush1.bf16.msra.mxu0 %v560
  %783 = vmatprep.subr.bf16.mxu0 0
  %784 = vmatpush1.bf16.msra.mxu0 %v561
  %785 = vmatprep.subr.bf16.mxu0 0
  %786 = vmatpush1.bf16.msra.mxu0 %v562
  %787 = vmatprep.subr.bf16.mxu0 0
  %788 = vmatpush1.bf16.msra.mxu0 %v563
  %789 = vmatprep.subr.bf16.mxu0 0
  %790 = vmatpush1.bf16.msra.mxu0 %v564
  %791 = vmatprep.subr.bf16.mxu0 0
  %792 = vmatpush1.bf16.msra.mxu0 %v565
  %793 = vmatprep.subr.bf16.mxu0 0
  %794 = vmatpush1.bf16.msra.mxu0 %v566
  %795 = vmatprep.subr.bf16.mxu0 0
  %796 = vmatpush1.bf16.msra.mxu0 %v567
  %797 = vmatprep.subr.bf16.mxu0 0
  %798 = vmatpush1.bf16.msra.mxu0 %v568
  %799 = vmatprep.subr.bf16.mxu0 0
  %800 = vmatpush1.bf16.msra.mxu0 %v569
  %801 = vmatprep.subr.bf16.mxu0 0
  %802 = vmatpush1.bf16.msra.mxu0 %v570
  %803 = vmatprep.subr.bf16.mxu0 0
  %804 = vmatpush1.bf16.msra.mxu0 %v571
  %805 = vmatprep.subr.bf16.mxu0 0
  %806 = vmatpush1.bf16.msra.mxu0 %v572
  %807 = vmatprep.subr.bf16.mxu0 0
  %808 = vmatpush1.bf16.msra.mxu0 %v573
  %809 = vmatprep.mubr.bf16.mxu0 %v211
  %810 = vmatmul.mubr.bf16.gmra.mrb[0].mxu0 %v210
  %v811 = vpop.f32.mrb[0].mxu0
  %v812 = vadd.f32 %v771, %v811
  %v813 = vpop.f32.mrb[0].mxu0
  %v814 = vpop.f32.mrb[0].mxu0
  %v815 = vadd.f32 %v774, %v814
  %v816 = vpop.f32.mrb[0].mxu0
  %817 = vdwg.mxu0
  %818 = vmatprep.subr.bf16.mxu0 0
  %819 = vmatpush1.bf16.msra.mxu0 %v574
  %820 = vmatprep.subr.bf16.mxu0 0
  %821 = vmatpush1.bf16.msra.mxu0 %v575
  %822 = vmatprep.subr.bf16.mxu0 0
  %823 = vmatpush1.bf16.msra.mxu0 %v576
  %824 = vmatprep.subr.bf16.mxu0 0
  %825 = vmatpush1.bf16.msra.mxu0 %v577
  %826 = vmatprep.subr.bf16.mxu0 0
  %827 = vmatpush1.bf16.msra.mxu0 %v578
  %828 = vmatprep.subr.bf16.mxu0 0
  %829 = vmatpush1.bf16.msra.mxu0 %v579
  %830 = vmatprep.subr.bf16.mxu0 0
  %831 = vmatpush1.bf16.msra.mxu0 %v580
  %832 = vmatprep.subr.bf16.mxu0 0
  %833 = vmatpush1.bf16.msra.mxu0 %v581
  %834 = vmatprep.subr.bf16.mxu0 0
  %835 = vmatpush1.bf16.msra.mxu0 0
  %836 = vmatprep.subr.bf16.mxu0 0
  %837 = vmatpush1.bf16.msra.mxu0 0
  %838 = vmatprep.subr.bf16.mxu0 0
  %839 = vmatpush1.bf16.msra.mxu0 0
  %840 = vmatprep.subr.bf16.mxu0 0
  %841 = vmatpush1.bf16.msra.mxu0 0
  %842 = vmatprep.subr.bf16.mxu0 0
  %843 = vmatpush1.bf16.msra.mxu0 0
  %844 = vmatprep.subr.bf16.mxu0 0
  %845 = vmatpush1.bf16.msra.mxu0 0
  %846 = vmatprep.subr.bf16.mxu0 0
  %847 = vmatpush1.bf16.msra.mxu0 0
  %848 = vmatprep.subr.bf16.mxu0 0
  %849 = vmatpush1.bf16.msra.mxu0 0
  %850 = vmatprep.mubr.bf16.mxu0 0
  %851 = vmatmul.mubr.bf16.gmra.mrb[0].mxu0 %v212
  %v852 = vpop.f32.mrb[0].mxu0
  %v853 = vadd.f32 %v812, %v852
  %v854 = vpop.f32.mrb[0].mxu0
  %v855 = vpop.f32.mrb[0].mxu0
  %v856 = vadd.f32 %v815, %v855
  %v857 = vpop.f32.mrb[0].mxu0
  %858 = vdwg.mxu0
  %v859 = vmax.f32 %v853, 0.0
  %v860 = vmax.f32 %v856, 0.0
  %v861 = vpack.c.bf16 %v860, %v859
  %v863 = vunpack.c.l.b16 %v861
  %v864 = vunpack.c.h.b16 %v861
  %v865 = vpack.c.b16 %v863, %v863
  %v866 = vpack.c.b16 %v864, %v864
  %869 = vst [vmem:[%s3] sm:$0xf] %v865
  %870 = vst [vmem:[%s3 + $0x4] sm:$0xf] %v866
  // Predicated region
  $region14: #{qrdqn_forward.6} parent=0 // pred_check
    _
  $region15: #{qrdqn_forward.6} parent=0 // pred_check_branch
    %872 = sbr.rel (0) target = $region17
  $region16: #{qrdqn_forward.6} parent=0 // pred_region
    _
  $region17: #{qrdqn_forward.6} parent=0 // pred_fallthru
    _
  // Predicated region
  $region18: #{qrdqn_forward.6} parent=0 // pred_check
    _
  $region19: #{qrdqn_forward.6} parent=0 // pred_check_branch
    %874 = sbr.rel (0) target = $region21
  $region20: #{qrdqn_forward.6} parent=0 // pred_region
    _
  $region21: #{qrdqn_forward.6} parent=0 // pred_fallthru
    _

// kernel: qrdqn_forward.7
$region0: #{qrdqn_forward.7}
  #allocation0 [shape = 'u32[]', space=smem, size = 0x4, offset = 0x4, fixed_abs, tag = 'smem constant byte address 0x4 - core index']
  #allocation1 [shape = 'u32[144,128]{1,0:T(1,128)}', space=vmem, size = 0x12000, scoped, tag = 'internal scratch']
  %s0 = inlined_call_operand.vmem [shape: bf16[16,128], index: 0, kind: input, shape index: {}]
  %s1 = inlined_call_operand.vmem [shape: bf16[128,512], index: 1, kind: input, shape index: {}]
  %s2 = inlined_call_operand.vmem [shape: f32[1,512], index: 2, kind: input, shape index: {}]
  %s3 = inlined_call_operand.vmem [shape: bf16[512,256], index: 3, kind: input, shape index: {}]
  %s4 = inlined_call_operand.vmem [shape: f32[1,256], index: 4, kind: input, shape index: {}]
  %s5 = inlined_call_operand.vmem [shape: f32[16,256], index: 5, kind: output, shape index: {}]
  %s6 = sld [smem:[#allocation0]]
  $region30: #{qrdqn_forward.7} parent=0
    _
  %s8 = ssub.s32 1, %s6
  %s9 = scalar_select 0, %s8, %s6
  // Predicated region
  $region2: #{qrdqn_forward.7} parent=0 // pred_check
    _
  $region3: #{qrdqn_forward.7} parent=0 // pred_check_branch
    %11 = sbr.rel (0) target = $region5
  $region4: #{qrdqn_forward.7} parent=0 // pred_region
    _
  $region5: #{qrdqn_forward.7} parent=0 // pred_fallthru
    _
  // Predicated region
  $region6: #{qrdqn_forward.7} parent=0 // pred_check
    _
  $region7: #{qrdqn_forward.7} parent=0 // pred_check_branch
    %13 = sbr.rel (0) target = $region9
  $region8: #{qrdqn_forward.7} parent=0 // pred_region
    _
  $region9: #{qrdqn_forward.7} parent=0 // pred_fallthru
    _
  // Predicated region
  $region10: #{qrdqn_forward.7} parent=0 // pred_check
    _
  $region11: #{qrdqn_forward.7} parent=0 // pred_check_branch
    %15 = sbr.rel (0) target = $region13
  $region12: #{qrdqn_forward.7} parent=0 // pred_region
    _
  $region13: #{qrdqn_forward.7} parent=0 // pred_fallthru
    _
  // Predicated region
  $region14: #{qrdqn_forward.7} parent=0 // pred_check
    _
  $region15: #{qrdqn_forward.7} parent=0 // pred_check_branch
    %17 = sbr.rel (0) target = $region17
  $region16: #{qrdqn_forward.7} parent=0 // pred_region
    _
  $region17: #{qrdqn_forward.7} parent=0 // pred_fallthru
    _
  // Predicated region
  $region18: #{qrdqn_forward.7} parent=0 // pred_check
    _
  $region19: #{qrdqn_forward.7} parent=0 // pred_check_branch
    %19 = sbr.rel (0) target = $region21
  $region20: #{qrdqn_forward.7} parent=0 // pred_region
    _
  $region21: #{qrdqn_forward.7} parent=0 // pred_fallthru
    _
  %v21 = vld [vmem:[%s0] sm:$0xf]
  %v22 = vld [vmem:[%s0 + $0x4] sm:$0xf]
  %v23 = vld [vmem:[%s1] sm:$0xff]
  %v24 = vld [vmem:[%s1 + $0x8] sm:$0xff]
  %v25 = vld [vmem:[%s1 + $0x10] sm:$0xff]
  %v26 = vld [vmem:[%s1 + $0x18] sm:$0xff]
  %v27 = vld [vmem:[%s1 + $0x20] sm:$0xff]
  %v28 = vld [vmem:[%s1 + $0x28] sm:$0xff]
  %v29 = vld [vmem:[%s1 + $0x30] sm:$0xff]
  %v30 = vld [vmem:[%s1 + $0x38] sm:$0xff]
  %v31 = vld [vmem:[%s1 + $0x40] sm:$0xff]
  %v32 = vld [vmem:[%s1 + $0x48] sm:$0xff]
  %v33 = vld [vmem:[%s1 + $0x50] sm:$0xff]
  %v34 = vld [vmem:[%s1 + $0x58] sm:$0xff]
  %v35 = vld [vmem:[%s1 + $0x60] sm:$0xff]
  %v36 = vld [vmem:[%s1 + $0x68] sm:$0xff]
  %v37 = vld [vmem:[%s1 + $0x70] sm:$0xff]
  %v38 = vld [vmem:[%s1 + $0x78] sm:$0xff]
  %v39 = vld [vmem:[%s1 + $0x80] sm:$0xff]
  %v40 = vld [vmem:[%s1 + $0x88] sm:$0xff]
  %v41 = vld [vmem:[%s1 + $0x90] sm:$0xff]
  %v42 = vld [vmem:[%s1 + $0x98] sm:$0xff]
  %v43 = vld [vmem:[%s1 + $0xa0] sm:$0xff]
  %v44 = vld [vmem:[%s1 + $0xa8] sm:$0xff]
  %v45 = vld [vmem:[%s1 + $0xb0] sm:$0xff]
  %v46 = vld [vmem:[%s1 + $0xb8] sm:$0xff]
  %v47 = vld [vmem:[%s1 + $0xc0] sm:$0xff]
  %v48 = vld [vmem:[%s1 + $0xc8] sm:$0xff]
  %v49 = vld [vmem:[%s1 + $0xd0] sm:$0xff]
  %v50 = vld [vmem:[%s1 + $0xd8] sm:$0xff]
  %v51 = vld [vmem:[%s1 + $0xe0] sm:$0xff]
  %v52 = vld [vmem:[%s1 + $0xe8] sm:$0xff]
  %v53 = vld [vmem:[%s1 + $0xf0] sm:$0xff]
  %v54 = vld [vmem:[%s1 + $0xf8] sm:$0xff]
  %v55 = vld [vmem:[%s2] sm:$0xf]
  %v57 = vlaneseq
  %v58 = vshrl.u32 %v57, 7
  %v59 = vsub.s32 0, %v58
  %v60 = vrot.slane %v55, %v59
  %v61 = vlaneseq
  %v62 = vshrl.u32 %v61, 7
  %v63 = vsub.s32 1, %v62
  %v64 = vrot.slane %v55, %v63
  %v65 = vlaneseq
  %v66 = vshrl.u32 %v65, 7
  %v67 = vsub.s32 2, %v66
  %v68 = vrot.slane %v55, %v67
  %v69 = vlaneseq
  %v70 = vshrl.u32 %v69, 7
  %v71 = vsub.s32 3, %v70
  %v72 = vrot.slane %v55, %v71
  %v79 = vunpack.c.l.b16 %v21
  %v80 = vunpack.c.l.b16 %v22
  %v81 = vpack.c.b16 %v80, %v79
  %v115 = vunpack.c.l.b16 %v23
  %v116 = vunpack.c.h.b16 %v23
  %v117 = vunpack.c.l.b16 %v24
  %v118 = vunpack.c.h.b16 %v24
  %v119 = vunpack.c.l.b16 %v25
  %v120 = vunpack.c.h.b16 %v25
  %v121 = vunpack.c.l.b16 %v26
  %v122 = vunpack.c.h.b16 %v26
  %v123 = vunpack.c.l.b16 %v27
  %v124 = vunpack.c.h.b16 %v27
  %v125 = vunpack.c.l.b16 %v28
  %v126 = vunpack.c.h.b16 %v28
  %v127 = vunpack.c.l.b16 %v29
  %v128 = vunpack.c.h.b16 %v29
  %v129 = vunpack.c.l.b16 %v30
  %v130 = vunpack.c.h.b16 %v30
  %v131 = vunpack.c.l.b16 %v31
  %v132 = vunpack.c.h.b16 %v31
  %v133 = vunpack.c.l.b16 %v32
  %v134 = vunpack.c.h.b16 %v32
  %v135 = vunpack.c.l.b16 %v33
  %v136 = vunpack.c.h.b16 %v33
  %v137 = vunpack.c.l.b16 %v34
  %v138 = vunpack.c.h.b16 %v34
  %v139 = vunpack.c.l.b16 %v35
  %v140 = vunpack.c.h.b16 %v35
  %v141 = vunpack.c.l.b16 %v36
  %v142 = vunpack.c.h.b16 %v36
  %v143 = vunpack.c.l.b16 %v37
  %v144 = vunpack.c.h.b16 %v37
  %v145 = vunpack.c.l.b16 %v38
  %v146 = vunpack.c.h.b16 %v38
  %v147 = vunpack.c.l.b16 %v39
  %v148 = vunpack.c.h.b16 %v39
  %v149 = vunpack.c.l.b16 %v40
  %v150 = vunpack.c.h.b16 %v40
  %v151 = vunpack.c.l.b16 %v41
  %v152 = vunpack.c.h.b16 %v41
  %v153 = vunpack.c.l.b16 %v42
  %v154 = vunpack.c.h.b16 %v42
  %v155 = vunpack.c.l.b16 %v43
  %v156 = vunpack.c.h.b16 %v43
  %v157 = vunpack.c.l.b16 %v44
  %v158 = vunpack.c.h.b16 %v44
  %v159 = vunpack.c.l.b16 %v45
  %v160 = vunpack.c.h.b16 %v45
  %v161 = vunpack.c.l.b16 %v46
  %v162 = vunpack.c.h.b16 %v46
  %v163 = vunpack.c.l.b16 %v47
  %v164 = vunpack.c.h.b16 %v47
  %v165 = vunpack.c.l.b16 %v48
  %v166 = vunpack.c.h.b16 %v48
  %v167 = vunpack.c.l.b16 %v49
  %v168 = vunpack.c.h.b16 %v49
  %v169 = vunpack.c.l.b16 %v50
  %v170 = vunpack.c.h.b16 %v50
  %v171 = vunpack.c.l.b16 %v51
  %v172 = vunpack.c.h.b16 %v51
  %v173 = vunpack.c.l.b16 %v52
  %v174 = vunpack.c.h.b16 %v52
  %v175 = vunpack.c.l.b16 %v53
  %v176 = vunpack.c.h.b16 %v53
  %v177 = vunpack.c.l.b16 %v54
  %v178 = vunpack.c.h.b16 %v54
  %v179 = vpack.c.b16 %v119, %v115
  %v180 = vpack.c.b16 %v120, %v116
  %v181 = vpack.c.b16 %v121, %v117
  %v182 = vpack.c.b16 %v122, %v118
  %v183 = vpack.c.b16 %v127, %v123
  %v184 = vpack.c.b16 %v128, %v124
  %v185 = vpack.c.b16 %v129, %v125
  %v186 = vpack.c.b16 %v130, %v126
  %v187 = vpack.c.b16 %v135, %v131
  %v188 = vpack.c.b16 %v136, %v132
  %v189 = vpack.c.b16 %v137, %v133
  %v190 = vpack.c.b16 %v138, %v134
  %v191 = vpack.c.b16 %v143, %v139
  %v192 = vpack.c.b16 %v144, %v140
  %v193 = vpack.c.b16 %v145, %v141
  %v194 = vpack.c.b16 %v146, %v142
  %v195 = vpack.c.b16 %v151, %v147
  %v196 = vpack.c.b16 %v152, %v148
  %v197 = vpack.c.b16 %v153, %v149
  %v198 = vpack.c.b16 %v154, %v150
  %v199 = vpack.c.b16 %v159, %v155
  %v200 = vpack.c.b16 %v160, %v156
  %v201 = vpack.c.b16 %v161, %v157
  %v202 = vpack.c.b16 %v162, %v158
  %v203 = vpack.c.b16 %v167, %v163
  %v204 = vpack.c.b16 %v168, %v164
  %v205 = vpack.c.b16 %v169, %v165
  %v206 = vpack.c.b16 %v170, %v166
  %v207 = vpack.c.b16 %v175, %v171
  %v208 = vpack.c.b16 %v176, %v172
  %v209 = vpack.c.b16 %v177, %v173
  %v210 = vpack.c.b16 %v178, %v174
  %243 = vmatprep.subr.bf16.mxu0 %v180
  %244 = vmatpush1.bf16.msra.mxu0 %v179
  %245 = vmatprep.subr.bf16.mxu0 %v184
  %246 = vmatpush1.bf16.msra.mxu0 %v183
  %247 = vmatprep.subr.bf16.mxu0 %v188
  %248 = vmatpush1.bf16.msra.mxu0 %v187
  %249 = vmatprep.subr.bf16.mxu0 %v192
  %250 = vmatpush1.bf16.msra.mxu0 %v191
  %251 = vmatprep.subr.bf16.mxu0 %v196
  %252 = vmatpush1.bf16.msra.mxu0 %v195
  %253 = vmatprep.subr.bf16.mxu0 %v200
  %254 = vmatpush1.bf16.msra.mxu0 %v199
  %255 = vmatprep.subr.bf16.mxu0 %v204
  %256 = vmatpush1.bf16.msra.mxu0 %v203
  %257 = vmatprep.subr.bf16.mxu0 %v208
  %258 = vmatpush1.bf16.msra.mxu0 %v207
  %259 = vmatprep.subr.bf16.mxu0 0
  %260 = vmatpush1.bf16.msra.mxu0 0
  %261 = vmatprep.subr.bf16.mxu0 0
  %262 = vmatpush1.bf16.msra.mxu0 0
  %263 = vmatprep.subr.bf16.mxu0 0
  %264 = vmatpush1.bf16.msra.mxu0 0
  %265 = vmatprep.subr.bf16.mxu0 0
  %266 = vmatpush1.bf16.msra.mxu0 0
  %267 = vmatprep.subr.bf16.mxu0 0
  %268 = vmatpush1.bf16.msra.mxu0 0
  %269 = vmatprep.subr.bf16.mxu0 0
  %270 = vmatpush1.bf16.msra.mxu0 0
  %271 = vmatprep.subr.bf16.mxu0 0
  %272 = vmatpush1.bf16.msra.mxu0 0
  %273 = vmatprep.subr.bf16.mxu0 0
  %274 = vmatpush1.bf16.msra.mxu0 0
  %275 = vmatprep.mubr.bf16.mxu0 0
  %276 = vmatmul.mubr.bf16.gmra.mrb[0].mxu0 %v81
  %v277 = vpop.f32.mrb[0].mxu0
  %v278 = vadd.f32 %v60, %v277
  %v279 = vpop.f32.mrb[0].mxu0
  %v280 = vadd.f32 %v64, %v279
  %v281 = vpop.f32.mrb[0].mxu0
  %v282 = vadd.f32 %v60, %v281
  %v283 = vpop.f32.mrb[0].mxu0
  %v284 = vadd.f32 %v64, %v283
  %285 = vdwg.mxu0
  %286 = vmatprep.subr.bf16.mxu0 %v182
  %287 = vmatpush1.bf16.msra.mxu0 %v181
  %288 = vmatprep.subr.bf16.mxu0 %v186
  %289 = vmatpush1.bf16.msra.mxu0 %v185
  %290 = vmatprep.subr.bf16.mxu0 %v190
  %291 = vmatpush1.bf16.msra.mxu0 %v189
  %292 = vmatprep.subr.bf16.mxu0 %v194
  %293 = vmatpush1.bf16.msra.mxu0 %v193
  %294 = vmatprep.subr.bf16.mxu0 %v198
  %295 = vmatpush1.bf16.msra.mxu0 %v197
  %296 = vmatprep.subr.bf16.mxu0 %v202
  %297 = vmatpush1.bf16.msra.mxu0 %v201
  %298 = vmatprep.subr.bf16.mxu0 %v206
  %299 = vmatpush1.bf16.msra.mxu0 %v205
  %300 = vmatprep.subr.bf16.mxu0 %v210
  %301 = vmatpush1.bf16.msra.mxu0 %v209
  %302 = vmatprep.subr.bf16.mxu0 0
  %303 = vmatpush1.bf16.msra.mxu0 0
  %304 = vmatprep.subr.bf16.mxu0 0
  %305 = vmatpush1.bf16.msra.mxu0 0
  %306 = vmatprep.subr.bf16.mxu0 0
  %307 = vmatpush1.bf16.msra.mxu0 0
  %308 = vmatprep.subr.bf16.mxu0 0
  %309 = vmatpush1.bf16.msra.mxu0 0
  %310 = vmatprep.subr.bf16.mxu0 0
  %311 = vmatpush1.bf16.msra.mxu0 0
  %312 = vmatprep.subr.bf16.mxu0 0
  %313 = vmatpush1.bf16.msra.mxu0 0
  %314 = vmatprep.subr.bf16.mxu0 0
  %315 = vmatpush1.bf16.msra.mxu0 0
  %316 = vmatprep.subr.bf16.mxu0 0
  %317 = vmatpush1.bf16.msra.mxu0 0
  %318 = vmatprep.mubr.bf16.mxu0 0
  %319 = vmatmul.mubr.bf16.gmra.mrb[0].mxu0 %v81
  %v320 = vpop.f32.mrb[0].mxu0
  %v321 = vadd.f32 %v68, %v320
  %v322 = vpop.f32.mrb[0].mxu0
  %v323 = vadd.f32 %v72, %v322
  %v324 = vpop.f32.mrb[0].mxu0
  %v325 = vadd.f32 %v68, %v324
  %v326 = vpop.f32.mrb[0].mxu0
  %v327 = vadd.f32 %v72, %v326
  %328 = vdwg.mxu0
  %v329 = vmax.f32 %v278, 0.0
  %v330 = vmax.f32 %v280, 0.0
  %v331 = vmax.f32 %v321, 0.0
  %v332 = vmax.f32 %v323, 0.0
  %v333 = vmax.f32 %v282, 0.0
  %v334 = vmax.f32 %v284, 0.0
  %v335 = vmax.f32 %v325, 0.0
  %v336 = vmax.f32 %v327, 0.0
  %v337 = vpack.c.bf16 %v333, %v329
  %v338 = vpack.c.bf16 %v334, %v330
  %v339 = vpack.c.bf16 %v335, %v331
  %v340 = vpack.c.bf16 %v336, %v332
  %v341 = vld [vmem:[%s3] sm:$0xff]
  %v342 = vld [vmem:[%s3 + $0x8] sm:$0xff]
  %v343 = vld [vmem:[%s3 + $0x10] sm:$0xff]
  %v344 = vld [vmem:[%s3 + $0x18] sm:$0xff]
  %v345 = vld [vmem:[%s3 + $0x20] sm:$0xff]
  %v346 = vld [vmem:[%s3 + $0x28] sm:$0xff]
  %v347 = vld [vmem:[%s3 + $0x30] sm:$0xff]
  %v348 = vld [vmem:[%s3 + $0x38] sm:$0xff]
  %v349 = vld [vmem:[%s3 + $0x40] sm:$0xff]
  %v350 = vld [vmem:[%s3 + $0x48] sm:$0xff]
  %v351 = vld [vmem:[%s3 + $0x50] sm:$0xff]
  %v352 = vld [vmem:[%s3 + $0x58] sm:$0xff]
  %v353 = vld [vmem:[%s3 + $0x60] sm:$0xff]
  %v354 = vld [vmem:[%s3 + $0x68] sm:$0xff]
  %v355 = vld [vmem:[%s3 + $0x70] sm:$0xff]
  %v356 = vld [vmem:[%s3 + $0x78] sm:$0xff]
  %v357 = vld [vmem:[%s3 + $0x80] sm:$0xff]
  %v358 = vld [vmem:[%s3 + $0x88] sm:$0xff]
  %v359 = vld [vmem:[%s3 + $0x90] sm:$0xff]
  %v360 = vld [vmem:[%s3 + $0x98] sm:$0xff]
  %v361 = vld [vmem:[%s3 + $0xa0] sm:$0xff]
  %v362 = vld [vmem:[%s3 + $0xa8] sm:$0xff]
  %v363 = vld [vmem:[%s3 + $0xb0] sm:$0xff]
  %v364 = vld [vmem:[%s3 + $0xb8] sm:$0xff]
  %v365 = vld [vmem:[%s3 + $0xc0] sm:$0xff]
  %v366 = vld [vmem:[%s3 + $0xc8] sm:$0xff]
  %v367 = vld [vmem:[%s3 + $0xd0] sm:$0xff]
  %v368 = vld [vmem:[%s3 + $0xd8] sm:$0xff]
  %v369 = vld [vmem:[%s3 + $0xe0] sm:$0xff]
  %v370 = vld [vmem:[%s3 + $0xe8] sm:$0xff]
  %v371 = vld [vmem:[%s3 + $0xf0] sm:$0xff]
  %v372 = vld [vmem:[%s3 + $0xf8] sm:$0xff]
  %v373 = vld [vmem:[%s3 + $0x100] sm:$0xff]
  %v374 = vld [vmem:[%s3 + $0x108] sm:$0xff]
  %v375 = vld [vmem:[%s3 + $0x110] sm:$0xff]
  %v376 = vld [vmem:[%s3 + $0x118] sm:$0xff]
  %v377 = vld [vmem:[%s3 + $0x120] sm:$0xff]
  %v378 = vld [vmem:[%s3 + $0x128] sm:$0xff]
  %v379 = vld [vmem:[%s3 + $0x130] sm:$0xff]
  %v380 = vld [vmem:[%s3 + $0x138] sm:$0xff]
  %v381 = vld [vmem:[%s3 + $0x140] sm:$0xff]
  %v382 = vld [vmem:[%s3 + $0x148] sm:$0xff]
  %v383 = vld [vmem:[%s3 + $0x150] sm:$0xff]
  %v384 = vld [vmem:[%s3 + $0x158] sm:$0xff]
  %v385 = vld [vmem:[%s3 + $0x160] sm:$0xff]
  %v386 = vld [vmem:[%s3 + $0x168] sm:$0xff]
  %v387 = vld [vmem:[%s3 + $0x170] sm:$0xff]
  %v388 = vld [vmem:[%s3 + $0x178] sm:$0xff]
  %v389 = vld [vmem:[%s3 + $0x180] sm:$0xff]
  %v390 = vld [vmem:[%s3 + $0x188] sm:$0xff]
  %v391 = vld [vmem:[%s3 + $0x190] sm:$0xff]
  %v392 = vld [vmem:[%s3 + $0x198] sm:$0xff]
  %v393 = vld [vmem:[%s3 + $0x1a0] sm:$0xff]
  %v394 = vld [vmem:[%s3 + $0x1a8] sm:$0xff]
  %v395 = vld [vmem:[%s3 + $0x1b0] sm:$0xff]
  %v396 = vld [vmem:[%s3 + $0x1b8] sm:$0xff]
  %v397 = vld [vmem:[%s3 + $0x1c0] sm:$0xff]
  %v398 = vld [vmem:[%s3 + $0x1c8] sm:$0xff]
  %v399 = vld [vmem:[%s3 + $0x1d0] sm:$0xff]
  %v400 = vld [vmem:[%s3 + $0x1d8] sm:$0xff]
  %v401 = vld [vmem:[%s3 + $0x1e0] sm:$0xff]
  %v402 = vld [vmem:[%s3 + $0x1e8] sm:$0xff]
  %v403 = vld [vmem:[%s3 + $0x1f0] sm:$0xff]
  %v404 = vld [vmem:[%s3 + $0x1f8] sm:$0xff]
  %v405 = vld [vmem:[%s4] sm:$0x3]
  %v407 = vlaneseq
  %v408 = vshrl.u32 %v407, 7
  %v409 = vsub.s32 0, %v408
  %v410 = vrot.slane %v405, %v409
  %v411 = vlaneseq
  %v412 = vshrl.u32 %v411, 7
  %v413 = vsub.s32 1, %v412
  %v414 = vrot.slane %v405, %v413
  %v481 = vunpack.c.l.b16 %v341
  %v482 = vunpack.c.h.b16 %v341
  %v483 = vunpack.c.l.b16 %v342
  %v484 = vunpack.c.h.b16 %v342
  %v485 = vunpack.c.l.b16 %v343
  %v486 = vunpack.c.h.b16 %v343
  %v487 = vunpack.c.l.b16 %v344
  %v488 = vunpack.c.h.b16 %v344
  %v489 = vunpack.c.l.b16 %v345
  %v490 = vunpack.c.h.b16 %v345
  %v491 = vunpack.c.l.b16 %v346
  %v492 = vunpack.c.h.b16 %v346
  %v493 = vunpack.c.l.b16 %v347
  %v494 = vunpack.c.h.b16 %v347
  %v495 = vunpack.c.l.b16 %v348
  %v496 = vunpack.c.h.b16 %v348
  %v497 = vunpack.c.l.b16 %v349
  %v498 = vunpack.c.h.b16 %v349
  %v499 = vunpack.c.l.b16 %v350
  %v500 = vunpack.c.h.b16 %v350
  %v501 = vunpack.c.l.b16 %v351
  %v502 = vunpack.c.h.b16 %v351
  %v503 = vunpack.c.l.b16 %v352
  %v504 = vunpack.c.h.b16 %v352
  %v505 = vunpack.c.l.b16 %v353
  %v506 = vunpack.c.h.b16 %v353
  %v507 = vunpack.c.l.b16 %v354
  %v508 = vunpack.c.h.b16 %v354
  %v509 = vunpack.c.l.b16 %v355
  %v510 = vunpack.c.h.b16 %v355
  %v511 = vunpack.c.l.b16 %v356
  %v512 = vunpack.c.h.b16 %v356
  %v513 = vunpack.c.l.b16 %v357
  %v514 = vunpack.c.h.b16 %v357
  %v515 = vunpack.c.l.b16 %v358
  %v516 = vunpack.c.h.b16 %v358
  %v517 = vunpack.c.l.b16 %v359
  %v518 = vunpack.c.h.b16 %v359
  %v519 = vunpack.c.l.b16 %v360
  %v520 = vunpack.c.h.b16 %v360
  %v521 = vunpack.c.l.b16 %v361
  %v522 = vunpack.c.h.b16 %v361
  %v523 = vunpack.c.l.b16 %v362
  %v524 = vunpack.c.h.b16 %v362
  %v525 = vunpack.c.l.b16 %v363
  %v526 = vunpack.c.h.b16 %v363
  %v527 = vunpack.c.l.b16 %v364
  %v528 = vunpack.c.h.b16 %v364
  %v529 = vunpack.c.l.b16 %v365
  %v530 = vunpack.c.h.b16 %v365
  %v531 = vunpack.c.l.b16 %v366
  %v532 = vunpack.c.h.b16 %v366
  %v533 = vunpack.c.l.b16 %v367
  %v534 = vunpack.c.h.b16 %v367
  %v535 = vunpack.c.l.b16 %v368
  %v536 = vunpack.c.h.b16 %v368
  %v537 = vunpack.c.l.b16 %v369
  %v538 = vunpack.c.h.b16 %v369
  %v539 = vunpack.c.l.b16 %v370
  %v540 = vunpack.c.h.b16 %v370
  %v541 = vunpack.c.l.b16 %v371
  %v542 = vunpack.c.h.b16 %v371
  %v543 = vunpack.c.l.b16 %v372
  %v544 = vunpack.c.h.b16 %v372
  %v545 = vunpack.c.l.b16 %v373
  %v546 = vunpack.c.h.b16 %v373
  %v547 = vunpack.c.l.b16 %v374
  %v548 = vunpack.c.h.b16 %v374
  %v549 = vunpack.c.l.b16 %v375
  %v550 = vunpack.c.h.b16 %v375
  %v551 = vunpack.c.l.b16 %v376
  %v552 = vunpack.c.h.b16 %v376
  %v553 = vunpack.c.l.b16 %v377
  %v554 = vunpack.c.h.b16 %v377
  %v555 = vunpack.c.l.b16 %v378
  %v556 = vunpack.c.h.b16 %v378
  %v557 = vunpack.c.l.b16 %v379
  %v558 = vunpack.c.h.b16 %v379
  %v559 = vunpack.c.l.b16 %v380
  %v560 = vunpack.c.h.b16 %v380
  %v561 = vunpack.c.l.b16 %v381
  %v562 = vunpack.c.h.b16 %v381
  %v563 = vunpack.c.l.b16 %v382
  %v564 = vunpack.c.h.b16 %v382
  %v565 = vunpack.c.l.b16 %v383
  %v566 = vunpack.c.h.b16 %v383
  %v567 = vunpack.c.l.b16 %v384
  %v568 = vunpack.c.h.b16 %v384
  %v569 = vunpack.c.l.b16 %v385
  %v570 = vunpack.c.h.b16 %v385
  %v571 = vunpack.c.l.b16 %v386
  %v572 = vunpack.c.h.b16 %v386
  %v573 = vunpack.c.l.b16 %v387
  %v574 = vunpack.c.h.b16 %v387
  %v575 = vunpack.c.l.b16 %v388
  %v576 = vunpack.c.h.b16 %v388
  %v577 = vunpack.c.l.b16 %v389
  %v578 = vunpack.c.h.b16 %v389
  %v579 = vunpack.c.l.b16 %v390
  %v580 = vunpack.c.h.b16 %v390
  %v581 = vunpack.c.l.b16 %v391
  %v582 = vunpack.c.h.b16 %v391
  %v583 = vunpack.c.l.b16 %v392
  %v584 = vunpack.c.h.b16 %v392
  %v585 = vunpack.c.l.b16 %v393
  %v586 = vunpack.c.h.b16 %v393
  %v587 = vunpack.c.l.b16 %v394
  %v588 = vunpack.c.h.b16 %v394
  %v589 = vunpack.c.l.b16 %v395
  %v590 = vunpack.c.h.b16 %v395
  %v591 = vunpack.c.l.b16 %v396
  %v592 = vunpack.c.h.b16 %v396
  %v593 = vunpack.c.l.b16 %v397
  %v594 = vunpack.c.h.b16 %v397
  %v595 = vunpack.c.l.b16 %v398
  %v596 = vunpack.c.h.b16 %v398
  %v597 = vunpack.c.l.b16 %v399
  %v598 = vunpack.c.h.b16 %v399
  %v599 = vunpack.c.l.b16 %v400
  %v600 = vunpack.c.h.b16 %v400
  %v601 = vunpack.c.l.b16 %v401
  %v602 = vunpack.c.h.b16 %v401
  %v603 = vunpack.c.l.b16 %v402
  %v604 = vunpack.c.h.b16 %v402
  %v605 = vunpack.c.l.b16 %v403
  %v606 = vunpack.c.h.b16 %v403
  %v607 = vunpack.c.l.b16 %v404
  %v608 = vunpack.c.h.b16 %v404
  %v609 = vpack.c.b16 %v483, %v481
  %v610 = vpack.c.b16 %v484, %v482
  %v611 = vpack.c.b16 %v487, %v485
  %v612 = vpack.c.b16 %v488, %v486
  %v613 = vpack.c.b16 %v491, %v489
  %v614 = vpack.c.b16 %v492, %v490
  %v615 = vpack.c.b16 %v495, %v493
  %v616 = vpack.c.b16 %v496, %v494
  %v617 = vpack.c.b16 %v499, %v497
  %v618 = vpack.c.b16 %v500, %v498
  %v619 = vpack.c.b16 %v503, %v501
  %v620 = vpack.c.b16 %v504, %v502
  %v621 = vpack.c.b16 %v507, %v505
  %v622 = vpack.c.b16 %v508, %v506
  %v623 = vpack.c.b16 %v511, %v509
  %v624 = vpack.c.b16 %v512, %v510
  %v625 = vpack.c.b16 %v515, %v513
  %v626 = vpack.c.b16 %v516, %v514
  %v627 = vpack.c.b16 %v519, %v517
  %v628 = vpack.c.b16 %v520, %v518
  %v629 = vpack.c.b16 %v523, %v521
  %v630 = vpack.c.b16 %v524, %v522
  %v631 = vpack.c.b16 %v527, %v525
  %v632 = vpack.c.b16 %v528, %v526
  %v633 = vpack.c.b16 %v531, %v529
  %v634 = vpack.c.b16 %v532, %v530
  %v635 = vpack.c.b16 %v535, %v533
  %v636 = vpack.c.b16 %v536, %v534
  %v637 = vpack.c.b16 %v539, %v537
  %v638 = vpack.c.b16 %v540, %v538
  %v639 = vpack.c.b16 %v543, %v541
  %v640 = vpack.c.b16 %v544, %v542
  %v641 = vpack.c.b16 %v547, %v545
  %v642 = vpack.c.b16 %v548, %v546
  %v643 = vpack.c.b16 %v551, %v549
  %v644 = vpack.c.b16 %v552, %v550
  %v645 = vpack.c.b16 %v555, %v553
  %v646 = vpack.c.b16 %v556, %v554
  %v647 = vpack.c.b16 %v559, %v557
  %v648 = vpack.c.b16 %v560, %v558
  %v649 = vpack.c.b16 %v563, %v561
  %v650 = vpack.c.b16 %v564, %v562
  %v651 = vpack.c.b16 %v567, %v565
  %v652 = vpack.c.b16 %v568, %v566
  %v653 = vpack.c.b16 %v571, %v569
  %v654 = vpack.c.b16 %v572, %v570
  %v655 = vpack.c.b16 %v575, %v573
  %v656 = vpack.c.b16 %v576, %v574
  %v657 = vpack.c.b16 %v579, %v577
  %v658 = vpack.c.b16 %v580, %v578
  %v659 = vpack.c.b16 %v583, %v581
  %v660 = vpack.c.b16 %v584, %v582
  %v661 = vpack.c.b16 %v587, %v585
  %v662 = vpack.c.b16 %v588, %v586
  %v663 = vpack.c.b16 %v591, %v589
  %v664 = vpack.c.b16 %v592, %v590
  %v665 = vpack.c.b16 %v595, %v593
  %v666 = vpack.c.b16 %v596, %v594
  %v667 = vpack.c.b16 %v599, %v597
  %v668 = vpack.c.b16 %v600, %v598
  %v669 = vpack.c.b16 %v603, %v601
  %v670 = vpack.c.b16 %v604, %v602
  %v671 = vpack.c.b16 %v607, %v605
  %v672 = vpack.c.b16 %v608, %v606
  %737 = vmatprep.subr.bf16.mxu0 %v610
  %738 = vmatpush1.bf16.msra.mxu0 %v609
  %739 = vmatprep.subr.bf16.mxu0 %v612
  %740 = vmatpush1.bf16.msra.mxu0 %v611
  %741 = vmatprep.subr.bf16.mxu0 %v614
  %742 = vmatpush1.bf16.msra.mxu0 %v613
  %743 = vmatprep.subr.bf16.mxu0 %v616
  %744 = vmatpush1.bf16.msra.mxu0 %v615
  %745 = vmatprep.subr.bf16.mxu0 %v618
  %746 = vmatpush1.bf16.msra.mxu0 %v617
  %747 = vmatprep.subr.bf16.mxu0 %v620
  %748 = vmatpush1.bf16.msra.mxu0 %v619
  %749 = vmatprep.subr.bf16.mxu0 %v622
  %750 = vmatpush1.bf16.msra.mxu0 %v621
  %751 = vmatprep.subr.bf16.mxu0 %v624
  %752 = vmatpush1.bf16.msra.mxu0 %v623
  %753 = vmatprep.subr.bf16.mxu0 %v626
  %754 = vmatpush1.bf16.msra.mxu0 %v625
  %755 = vmatprep.subr.bf16.mxu0 %v628
  %756 = vmatpush1.bf16.msra.mxu0 %v627
  %757 = vmatprep.subr.bf16.mxu0 %v630
  %758 = vmatpush1.bf16.msra.mxu0 %v629
  %759 = vmatprep.subr.bf16.mxu0 %v632
  %760 = vmatpush1.bf16.msra.mxu0 %v631
  %761 = vmatprep.subr.bf16.mxu0 %v634
  %762 = vmatpush1.bf16.msra.mxu0 %v633
  %763 = vmatprep.subr.bf16.mxu0 %v636
  %764 = vmatpush1.bf16.msra.mxu0 %v635
  %765 = vmatprep.subr.bf16.mxu0 %v638
  %766 = vmatpush1.bf16.msra.mxu0 %v637
  %767 = vmatprep.subr.bf16.mxu0 %v640
  %768 = vmatpush1.bf16.msra.mxu0 %v639
  %769 = vmatprep.mubr.bf16.mxu0 %v338
  %770 = vmatmul.mubr.bf16.gmra.mrb[0].mxu0 %v337
  %v771 = vpop.f32.mrb[0].mxu0
  %v772 = vadd.f32 %v410, %v771
  %v773 = vpop.f32.mrb[0].mxu0
  %v774 = vadd.f32 %v414, %v773
  %v775 = vpop.f32.mrb[0].mxu0
  %v776 = vadd.f32 %v410, %v775
  %v777 = vpop.f32.mrb[0].mxu0
  %v778 = vadd.f32 %v414, %v777
  %779 = vdwg.mxu0
  %780 = vmatprep.subr.bf16.mxu0 %v642
  %781 = vmatpush1.bf16.msra.mxu0 %v641
  %782 = vmatprep.subr.bf16.mxu0 %v644
  %783 = vmatpush1.bf16.msra.mxu0 %v643
  %784 = vmatprep.subr.bf16.mxu0 %v646
  %785 = vmatpush1.bf16.msra.mxu0 %v645
  %786 = vmatprep.subr.bf16.mxu0 %v648
  %787 = vmatpush1.bf16.msra.mxu0 %v647
  %788 = vmatprep.subr.bf16.mxu0 %v650
  %789 = vmatpush1.bf16.msra.mxu0 %v649
  %790 = vmatprep.subr.bf16.mxu0 %v652
  %791 = vmatpush1.bf16.msra.mxu0 %v651
  %792 = vmatprep.subr.bf16.mxu0 %v654
  %793 = vmatpush1.bf16.msra.mxu0 %v653
  %794 = vmatprep.subr.bf16.mxu0 %v656
  %795 = vmatpush1.bf16.msra.mxu0 %v655
  %796 = vmatprep.subr.bf16.mxu0 %v658
  %797 = vmatpush1.bf16.msra.mxu0 %v657
  %798 = vmatprep.subr.bf16.mxu0 %v660
  %799 = vmatpush1.bf16.msra.mxu0 %v659
  %800 = vmatprep.subr.bf16.mxu0 %v662
  %801 = vmatpush1.bf16.msra.mxu0 %v661
  %802 = vmatprep.subr.bf16.mxu0 %v664
  %803 = vmatpush1.bf16.msra.mxu0 %v663
  %804 = vmatprep.subr.bf16.mxu0 %v666
  %805 = vmatpush1.bf16.msra.mxu0 %v665
  %806 = vmatprep.subr.bf16.mxu0 %v668
  %807 = vmatpush1.bf16.msra.mxu0 %v667
  %808 = vmatprep.subr.bf16.mxu0 %v670
  %809 = vmatpush1.bf16.msra.mxu0 %v669
  %810 = vmatprep.subr.bf16.mxu0 %v672
  %811 = vmatpush1.bf16.msra.mxu0 %v671
  %812 = vmatprep.mubr.bf16.mxu0 %v340
  %813 = vmatmul.mubr.bf16.gmra.mrb[0].mxu0 %v339
  %v814 = vpop.f32.mrb[0].mxu0
  %v815 = vadd.f32 %v772, %v814
  %v816 = vpop.f32.mrb[0].mxu0
  %v817 = vadd.f32 %v774, %v816
  %v818 = vpop.f32.mrb[0].mxu0
  %v819 = vadd.f32 %v776, %v818
  %v820 = vpop.f32.mrb[0].mxu0
  %v821 = vadd.f32 %v778, %v820
  %822 = vdwg.mxu0
  %823 = vst [vmem:[%s5] sm:$0xff] %v815
  %824 = vst [vmem:[%s5 + $0x8] sm:$0xff] %v817
  %825 = vst [vmem:[%s5 + $0x10] sm:$0xff] %v819
  %826 = vst [vmem:[%s5 + $0x18] sm:$0xff] %v821
  // Predicated region
  $region22: #{qrdqn_forward.7} parent=0 // pred_check
    _
  $region23: #{qrdqn_forward.7} parent=0 // pred_check_branch
    %828 = sbr.rel (0) target = $region25
  $region24: #{qrdqn_forward.7} parent=0 // pred_region
    _
  $region25: #{qrdqn_forward.7} parent=0 // pred_fallthru
    _
  // Predicated region
  $region26: #{qrdqn_forward.7} parent=0 // pred_check
    _
  $region27: #{qrdqn_forward.7} parent=0 // pred_check_branch
    %830 = sbr.rel (0) target = $region29
  $region28: #{qrdqn_forward.7} parent=0 // pred_region
    _
  $region29: #{qrdqn_forward.7} parent=0 // pred_fallthru
    _

// kernel: qrdqn_forward.5
$region0: #{qrdqn_forward.5}
  #allocation0 [shape = 'u32[]', space=smem, size = 0x4, offset = 0x4, fixed_abs, tag = 'smem constant byte address 0x4 - core index']
  #allocation1 [shape = 'u32[144,128]{1,0:T(1,128)}', space=vmem, size = 0x12000, scoped, tag = 'internal scratch']
  %s0 = inlined_call_operand.vmem [shape: bf16[32,2048], index: 0, kind: input, shape index: {}]
  %s1 = inlined_call_operand.vmem [shape: bf16[2048,128], index: 1, kind: input, shape index: {}]
  %s2 = inlined_call_operand.vmem [shape: f32[1,128], index: 2, kind: input, shape index: {}]
  %s3 = inlined_call_operand.vmem [shape: bf16[32,128], index: 3, kind: output, shape index: {}]
  %s4 = sld [smem:[#allocation0]]
  $region22: #{qrdqn_forward.5} parent=0
    _
  %s6 = ssub.s32 1, %s4
  %s7 = scalar_select 0, %s6, %s4
  // Predicated region
  $region2: #{qrdqn_forward.5} parent=0 // pred_check
    _
  $region3: #{qrdqn_forward.5} parent=0 // pred_check_branch
    %9 = sbr.rel (0) target = $region5
  $region4: #{qrdqn_forward.5} parent=0 // pred_region
    _
  $region5: #{qrdqn_forward.5} parent=0 // pred_fallthru
    _
  // Predicated region
  $region6: #{qrdqn_forward.5} parent=0 // pred_check
    _
  $region7: #{qrdqn_forward.5} parent=0 // pred_check_branch
    %11 = sbr.rel (0) target = $region9
  $region8: #{qrdqn_forward.5} parent=0 // pred_region
    _
  $region9: #{qrdqn_forward.5} parent=0 // pred_fallthru
    _
  // Predicated region
  $region10: #{qrdqn_forward.5} parent=0 // pred_check
    _
  $region11: #{qrdqn_forward.5} parent=0 // pred_check_branch
    %13 = sbr.rel (0) target = $region13
  $region12: #{qrdqn_forward.5} parent=0 // pred_region
    _
  $region13: #{qrdqn_forward.5} parent=0 // pred_fallthru
    _
  %v15 = vld [vmem:[%s0] sm:$0xff]
  %v16 = vld [vmem:[%s0 + $0x8] sm:$0xff]
  %v17 = vld [vmem:[%s0 + $0x10] sm:$0xff]
  %v18 = vld [vmem:[%s0 + $0x18] sm:$0xff]
  %v19 = vld [vmem:[%s0 + $0x20] sm:$0xff]
  %v20 = vld [vmem:[%s0 + $0x28] sm:$0xff]
  %v21 = vld [vmem:[%s0 + $0x30] sm:$0xff]
  %v22 = vld [vmem:[%s0 + $0x38] sm:$0xff]
  %v23 = vld [vmem:[%s0 + $0x40] sm:$0xff]
  %v24 = vld [vmem:[%s0 + $0x48] sm:$0xff]
  %v25 = vld [vmem:[%s0 + $0x50] sm:$0xff]
  %v26 = vld [vmem:[%s0 + $0x58] sm:$0xff]
  %v27 = vld [vmem:[%s0 + $0x60] sm:$0xff]
  %v28 = vld [vmem:[%s0 + $0x68] sm:$0xff]
  %v29 = vld [vmem:[%s0 + $0x70] sm:$0xff]
  %v30 = vld [vmem:[%s0 + $0x78] sm:$0xff]
  %v31 = vld [vmem:[%s0 + $0x80] sm:$0xff]
  %v32 = vld [vmem:[%s0 + $0x88] sm:$0xff]
  %v33 = vld [vmem:[%s0 + $0x90] sm:$0xff]
  %v34 = vld [vmem:[%s0 + $0x98] sm:$0xff]
  %v35 = vld [vmem:[%s0 + $0xa0] sm:$0xff]
  %v36 = vld [vmem:[%s0 + $0xa8] sm:$0xff]
  %v37 = vld [vmem:[%s0 + $0xb0] sm:$0xff]
  %v38 = vld [vmem:[%s0 + $0xb8] sm:$0xff]
  %v39 = vld [vmem:[%s0 + $0xc0] sm:$0xff]
  %v40 = vld [vmem:[%s0 + $0xc8] sm:$0xff]
  %v41 = vld [vmem:[%s0 + $0xd0] sm:$0xff]
  %v42 = vld [vmem:[%s0 + $0xd8] sm:$0xff]
  %v43 = vld [vmem:[%s0 + $0xe0] sm:$0xff]
  %v44 = vld [vmem:[%s0 + $0xe8] sm:$0xff]
  %v45 = vld [vmem:[%s0 + $0xf0] sm:$0xff]
  %v46 = vld [vmem:[%s0 + $0xf8] sm:$0xff]
  %v47 = vld [vmem:[%s1] sm:$0xf]
  %v48 = vld [vmem:[%s1 + $0x4] sm:$0xf]
  %v49 = vld [vmem:[%s1 + $0x8] sm:$0xf]
  %v50 = vld [vmem:[%s1 + $0xc] sm:$0xf]
  %v51 = vld [vmem:[%s1 + $0x10] sm:$0xf]
  %v52 = vld [vmem:[%s1 + $0x14] sm:$0xf]
  %v53 = vld [vmem:[%s1 + $0x18] sm:$0xf]
  %v54 = vld [vmem:[%s1 + $0x1c] sm:$0xf]
  %v55 = vld [vmem:[%s1 + $0x20] sm:$0xf]
  %v56 = vld [vmem:[%s1 + $0x24] sm:$0xf]
  %v57 = vld [vmem:[%s1 + $0x28] sm:$0xf]
  %v58 = vld [vmem:[%s1 + $0x2c] sm:$0xf]
  %v59 = vld [vmem:[%s1 + $0x30] sm:$0xf]
  %v60 = vld [vmem:[%s1 + $0x34] sm:$0xf]
  %v61 = vld [vmem:[%s1 + $0x38] sm:$0xf]
  %v62 = vld [vmem:[%s1 + $0x3c] sm:$0xf]
  %v63 = vld [vmem:[%s1 + $0x40] sm:$0xf]
  %v64 = vld [vmem:[%s1 + $0x44] sm:$0xf]
  %v65 = vld [vmem:[%s1 + $0x48] sm:$0xf]
  %v66 = vld [vmem:[%s1 + $0x4c] sm:$0xf]
  %v67 = vld [vmem:[%s1 + $0x50] sm:$0xf]
  %v68 = vld [vmem:[%s1 + $0x54] sm:$0xf]
  %v69 = vld [vmem:[%s1 + $0x58] sm:$0xf]
  %v70 = vld [vmem:[%s1 + $0x5c] sm:$0xf]
  %v71 = vld [vmem:[%s1 + $0x60] sm:$0xf]
  %v72 = vld [vmem:[%s1 + $0x64] sm:$0xf]
  %v73 = vld [vmem:[%s1 + $0x68] sm:$0xf]
  %v74 = vld [vmem:[%s1 + $0x6c] sm:$0xf]
  %v75 = vld [vmem:[%s1 + $0x70] sm:$0xf]
  %v76 = vld [vmem:[%s1 + $0x74] sm:$0xf]
  %v77 = vld [vmem:[%s1 + $0x78] sm:$0xf]
  %v78 = vld [vmem:[%s1 + $0x7c] sm:$0xf]
  %v79 = vld [vmem:[%s1 + $0x80] sm:$0xf]
  %v80 = vld [vmem:[%s1 + $0x84] sm:$0xf]
  %v81 = vld [vmem:[%s1 + $0x88] sm:$0xf]
  %v82 = vld [vmem:[%s1 + $0x8c] sm:$0xf]
  %v83 = vld [vmem:[%s1 + $0x90] sm:$0xf]
  %v84 = vld [vmem:[%s1 + $0x94] sm:$0xf]
  %v85 = vld [vmem:[%s1 + $0x98] sm:$0xf]
  %v86 = vld [vmem:[%s1 + $0x9c] sm:$0xf]
  %v87 = vld [vmem:[%s1 + $0xa0] sm:$0xf]
  %v88 = vld [vmem:[%s1 + $0xa4] sm:$0xf]
  %v89 = vld [vmem:[%s1 + $0xa8] sm:$0xf]
  %v90 = vld [vmem:[%s1 + $0xac] sm:$0xf]
  %v91 = vld [vmem:[%s1 + $0xb0] sm:$0xf]
  %v92 = vld [vmem:[%s1 + $0xb4] sm:$0xf]
  %v93 = vld [vmem:[%s1 + $0xb8] sm:$0xf]
  %v94 = vld [vmem:[%s1 + $0xbc] sm:$0xf]
  %v95 = vld [vmem:[%s1 + $0xc0] sm:$0xf]
  %v96 = vld [vmem:[%s1 + $0xc4] sm:$0xf]
  %v97 = vld [vmem:[%s1 + $0xc8] sm:$0xf]
  %v98 = vld [vmem:[%s1 + $0xcc] sm:$0xf]
  %v99 = vld [vmem:[%s1 + $0xd0] sm:$0xf]
  %v100 = vld [vmem:[%s1 + $0xd4] sm:$0xf]
  %v101 = vld [vmem:[%s1 + $0xd8] sm:$0xf]
  %v102 = vld [vmem:[%s1 + $0xdc] sm:$0xf]
  %v103 = vld [vmem:[%s1 + $0xe0] sm:$0xf]
  %v104 = vld [vmem:[%s1 + $0xe4] sm:$0xf]
  %v105 = vld [vmem:[%s1 + $0xe8] sm:$0xf]
  %v106 = vld [vmem:[%s1 + $0xec] sm:$0xf]
  %v107 = vld [vmem:[%s1 + $0xf0] sm:$0xf]
  %v108 = vld [vmem:[%s1 + $0xf4] sm:$0xf]
  %v109 = vld [vmem:[%s1 + $0xf8] sm:$0xf]
  %v110 = vld [vmem:[%s1 + $0xfc] sm:$0xf]
  %v111 = vld [vmem:[%s1 + $0x100] sm:$0xf]
  %v112 = vld [vmem:[%s1 + $0x104] sm:$0xf]
  %v113 = vld [vmem:[%s1 + $0x108] sm:$0xf]
  %v114 = vld [vmem:[%s1 + $0x10c] sm:$0xf]
  %v115 = vld [vmem:[%s1 + $0x110] sm:$0xf]
  %v116 = vld [vmem:[%s1 + $0x114] sm:$0xf]
  %v117 = vld [vmem:[%s1 + $0x118] sm:$0xf]
  %v118 = vld [vmem:[%s1 + $0x11c] sm:$0xf]
  %v119 = vld [vmem:[%s1 + $0x120] sm:$0xf]
  %v120 = vld [vmem:[%s1 + $0x124] sm:$0xf]
  %v121 = vld [vmem:[%s1 + $0x128] sm:$0xf]
  %v122 = vld [vmem:[%s1 + $0x12c] sm:$0xf]
  %v123 = vld [vmem:[%s1 + $0x130] sm:$0xf]
  %v124 = vld [vmem:[%s1 + $0x134] sm:$0xf]
  %v125 = vld [vmem:[%s1 + $0x138] sm:$0xf]
  %v126 = vld [vmem:[%s1 + $0x13c] sm:$0xf]
  %v127 = vld [vmem:[%s1 + $0x140] sm:$0xf]
  %v128 = vld [vmem:[%s1 + $0x144] sm:$0xf]
  %v129 = vld [vmem:[%s1 + $0x148] sm:$0xf]
  %v130 = vld [vmem:[%s1 + $0x14c] sm:$0xf]
  %v131 = vld [vmem:[%s1 + $0x150] sm:$0xf]
  %v132 = vld [vmem:[%s1 + $0x154] sm:$0xf]
  %v133 = vld [vmem:[%s1 + $0x158] sm:$0xf]
  %v134 = vld [vmem:[%s1 + $0x15c] sm:$0xf]
  %v135 = vld [vmem:[%s1 + $0x160] sm:$0xf]
  %v136 = vld [vmem:[%s1 + $0x164] sm:$0xf]
  %v137 = vld [vmem:[%s1 + $0x168] sm:$0xf]
  %v138 = vld [vmem:[%s1 + $0x16c] sm:$0xf]
  %v139 = vld [vmem:[%s1 + $0x170] sm:$0xf]
  %v140 = vld [vmem:[%s1 + $0x174] sm:$0xf]
  %v141 = vld [vmem:[%s1 + $0x178] sm:$0xf]
  %v142 = vld [vmem:[%s1 + $0x17c] sm:$0xf]
  %v143 = vld [vmem:[%s1 + $0x180] sm:$0xf]
  %v144 = vld [vmem:[%s1 + $0x184] sm:$0xf]
  %v145 = vld [vmem:[%s1 + $0x188] sm:$0xf]
  %v146 = vld [vmem:[%s1 + $0x18c] sm:$0xf]
  %v147 = vld [vmem:[%s1 + $0x190] sm:$0xf]
  %v148 = vld [vmem:[%s1 + $0x194] sm:$0xf]
  %v149 = vld [vmem:[%s1 + $0x198] sm:$0xf]
  %v150 = vld [vmem:[%s1 + $0x19c] sm:$0xf]
  %v151 = vld [vmem:[%s1 + $0x1a0] sm:$0xf]
  %v152 = vld [vmem:[%s1 + $0x1a4] sm:$0xf]
  %v153 = vld [vmem:[%s1 + $0x1a8] sm:$0xf]
  %v154 = vld [vmem:[%s1 + $0x1ac] sm:$0xf]
  %v155 = vld [vmem:[%s1 + $0x1b0] sm:$0xf]
  %v156 = vld [vmem:[%s1 + $0x1b4] sm:$0xf]
  %v157 = vld [vmem:[%s1 + $0x1b8] sm:$0xf]
  %v158 = vld [vmem:[%s1 + $0x1bc] sm:$0xf]
  %v159 = vld [vmem:[%s1 + $0x1c0] sm:$0xf]
  %v160 = vld [vmem:[%s1 + $0x1c4] sm:$0xf]
  %v161 = vld [vmem:[%s1 + $0x1c8] sm:$0xf]
  %v162 = vld [vmem:[%s1 + $0x1cc] sm:$0xf]
  %v163 = vld [vmem:[%s1 + $0x1d0] sm:$0xf]
  %v164 = vld [vmem:[%s1 + $0x1d4] sm:$0xf]
  %v165 = vld [vmem:[%s1 + $0x1d8] sm:$0xf]
  %v166 = vld [vmem:[%s1 + $0x1dc] sm:$0xf]
  %v167 = vld [vmem:[%s1 + $0x1e0] sm:$0xf]
  %v168 = vld [vmem:[%s1 + $0x1e4] sm:$0xf]
  %v169 = vld [vmem:[%s1 + $0x1e8] sm:$0xf]
  %v170 = vld [vmem:[%s1 + $0x1ec] sm:$0xf]
  %v171 = vld [vmem:[%s1 + $0x1f0] sm:$0xf]
  %v172 = vld [vmem:[%s1 + $0x1f4] sm:$0xf]
  %v173 = vld [vmem:[%s1 + $0x1f8] sm:$0xf]
  %v174 = vld [vmem:[%s1 + $0x1fc] sm:$0xf]
  %v175 = vld [vmem:[%s1 + $0x200] sm:$0xf]
  %v176 = vld [vmem:[%s1 + $0x204] sm:$0xf]
  %v177 = vld [vmem:[%s1 + $0x208] sm:$0xf]
  %v178 = vld [vmem:[%s1 + $0x20c] sm:$0xf]
  %v179 = vld [vmem:[%s1 + $0x210] sm:$0xf]
  %v180 = vld [vmem:[%s1 + $0x214] sm:$0xf]
  %v181 = vld [vmem:[%s1 + $0x218] sm:$0xf]
  %v182 = vld [vmem:[%s1 + $0x21c] sm:$0xf]
  %v183 = vld [vmem:[%s1 + $0x220] sm:$0xf]
  %v184 = vld [vmem:[%s1 + $0x224] sm:$0xf]
  %v185 = vld [vmem:[%s1 + $0x228] sm:$0xf]
  %v186 = vld [vmem:[%s1 + $0x22c] sm:$0xf]
  %v187 = vld [vmem:[%s1 + $0x230] sm:$0xf]
  %v188 = vld [vmem:[%s1 + $0x234] sm:$0xf]
  %v189 = vld [vmem:[%s1 + $0x238] sm:$0xf]
  %v190 = vld [vmem:[%s1 + $0x23c] sm:$0xf]
  %v191 = vld [vmem:[%s1 + $0x240] sm:$0xf]
  %v192 = vld [vmem:[%s1 + $0x244] sm:$0xf]
  %v193 = vld [vmem:[%s1 + $0x248] sm:$0xf]
  %v194 = vld [vmem:[%s1 + $0x24c] sm:$0xf]
  %v195 = vld [vmem:[%s1 + $0x250] sm:$0xf]
  %v196 = vld [vmem:[%s1 + $0x254] sm:$0xf]
  %v197 = vld [vmem:[%s1 + $0x258] sm:$0xf]
  %v198 = vld [vmem:[%s1 + $0x25c] sm:$0xf]
  %v199 = vld [vmem:[%s1 + $0x260] sm:$0xf]
  %v200 = vld [vmem:[%s1 + $0x264] sm:$0xf]
  %v201 = vld [vmem:[%s1 + $0x268] sm:$0xf]
  %v202 = vld [vmem:[%s1 + $0x26c] sm:$0xf]
  %v203 = vld [vmem:[%s1 + $0x270] sm:$0xf]
  %v204 = vld [vmem:[%s1 + $0x274] sm:$0xf]
  %v205 = vld [vmem:[%s1 + $0x278] sm:$0xf]
  %v206 = vld [vmem:[%s1 + $0x27c] sm:$0xf]
  %v207 = vld [vmem:[%s1 + $0x280] sm:$0xf]
  %v208 = vld [vmem:[%s1 + $0x284] sm:$0xf]
  %v209 = vld [vmem:[%s1 + $0x288] sm:$0xf]
  %v210 = vld [vmem:[%s1 + $0x28c] sm:$0xf]
  %v211 = vld [vmem:[%s1 + $0x290] sm:$0xf]
  %v212 = vld [vmem:[%s1 + $0x294] sm:$0xf]
  %v213 = vld [vmem:[%s1 + $0x298] sm:$0xf]
  %v214 = vld [vmem:[%s1 + $0x29c] sm:$0xf]
  %v215 = vld [vmem:[%s1 + $0x2a0] sm:$0xf]
  %v216 = vld [vmem:[%s1 + $0x2a4] sm:$0xf]
  %v217 = vld [vmem:[%s1 + $0x2a8] sm:$0xf]
  %v218 = vld [vmem:[%s1 + $0x2ac] sm:$0xf]
  %v219 = vld [vmem:[%s1 + $0x2b0] sm:$0xf]
  %v220 = vld [vmem:[%s1 + $0x2b4] sm:$0xf]
  %v221 = vld [vmem:[%s1 + $0x2b8] sm:$0xf]
  %v222 = vld [vmem:[%s1 + $0x2bc] sm:$0xf]
  %v223 = vld [vmem:[%s1 + $0x2c0] sm:$0xf]
  %v224 = vld [vmem:[%s1 + $0x2c4] sm:$0xf]
  %v225 = vld [vmem:[%s1 + $0x2c8] sm:$0xf]
  %v226 = vld [vmem:[%s1 + $0x2cc] sm:$0xf]
  %v227 = vld [vmem:[%s1 + $0x2d0] sm:$0xf]
  %v228 = vld [vmem:[%s1 + $0x2d4] sm:$0xf]
  %v229 = vld [vmem:[%s1 + $0x2d8] sm:$0xf]
  %v230 = vld [vmem:[%s1 + $0x2dc] sm:$0xf]
  %v231 = vld [vmem:[%s1 + $0x2e0] sm:$0xf]
  %v232 = vld [vmem:[%s1 + $0x2e4] sm:$0xf]
  %v233 = vld [vmem:[%s1 + $0x2e8] sm:$0xf]
  %v234 = vld [vmem:[%s1 + $0x2ec] sm:$0xf]
  %v235 = vld [vmem:[%s1 + $0x2f0] sm:$0xf]
  %v236 = vld [vmem:[%s1 + $0x2f4] sm:$0xf]
  %v237 = vld [vmem:[%s1 + $0x2f8] sm:$0xf]
  %v238 = vld [vmem:[%s1 + $0x2fc] sm:$0xf]
  %v239 = vld [vmem:[%s1 + $0x300] sm:$0xf]
  %v240 = vld [vmem:[%s1 + $0x304] sm:$0xf]
  %v241 = vld [vmem:[%s1 + $0x308] sm:$0xf]
  %v242 = vld [vmem:[%s1 + $0x30c] sm:$0xf]
  %v243 = vld [vmem:[%s1 + $0x310] sm:$0xf]
  %v244 = vld [vmem:[%s1 + $0x314] sm:$0xf]
  %v245 = vld [vmem:[%s1 + $0x318] sm:$0xf]
  %v246 = vld [vmem:[%s1 + $0x31c] sm:$0xf]
  %v247 = vld [vmem:[%s1 + $0x320] sm:$0xf]
  %v248 = vld [vmem:[%s1 + $0x324] sm:$0xf]
  %v249 = vld [vmem:[%s1 + $0x328] sm:$0xf]
  %v250 = vld [vmem:[%s1 + $0x32c] sm:$0xf]
  %v251 = vld [vmem:[%s1 + $0x330] sm:$0xf]
  %v252 = vld [vmem:[%s1 + $0x334] sm:$0xf]
  %v253 = vld [vmem:[%s1 + $0x338] sm:$0xf]
  %v254 = vld [vmem:[%s1 + $0x33c] sm:$0xf]
  %v255 = vld [vmem:[%s1 + $0x340] sm:$0xf]
  %v256 = vld [vmem:[%s1 + $0x344] sm:$0xf]
  %v257 = vld [vmem:[%s1 + $0x348] sm:$0xf]
  %v258 = vld [vmem:[%s1 + $0x34c] sm:$0xf]
  %v259 = vld [vmem:[%s1 + $0x350] sm:$0xf]
  %v260 = vld [vmem:[%s1 + $0x354] sm:$0xf]
  %v261 = vld [vmem:[%s1 + $0x358] sm:$0xf]
  %v262 = vld [vmem:[%s1 + $0x35c] sm:$0xf]
  %v263 = vld [vmem:[%s1 + $0x360] sm:$0xf]
  %v264 = vld [vmem:[%s1 + $0x364] sm:$0xf]
  %v265 = vld [vmem:[%s1 + $0x368] sm:$0xf]
  %v266 = vld [vmem:[%s1 + $0x36c] sm:$0xf]
  %v267 = vld [vmem:[%s1 + $0x370] sm:$0xf]
  %v268 = vld [vmem:[%s1 + $0x374] sm:$0xf]
  %v269 = vld [vmem:[%s1 + $0x378] sm:$0xf]
  %v270 = vld [vmem:[%s1 + $0x37c] sm:$0xf]
  %v271 = vld [vmem:[%s1 + $0x380] sm:$0xf]
  %v272 = vld [vmem:[%s1 + $0x384] sm:$0xf]
  %v273 = vld [vmem:[%s1 + $0x388] sm:$0xf]
  %v274 = vld [vmem:[%s1 + $0x38c] sm:$0xf]
  %v275 = vld [vmem:[%s1 + $0x390] sm:$0xf]
  %v276 = vld [vmem:[%s1 + $0x394] sm:$0xf]
  %v277 = vld [vmem:[%s1 + $0x398] sm:$0xf]
  %v278 = vld [vmem:[%s1 + $0x39c] sm:$0xf]
  %v279 = vld [vmem:[%s1 + $0x3a0] sm:$0xf]
  %v280 = vld [vmem:[%s1 + $0x3a4] sm:$0xf]
  %v281 = vld [vmem:[%s1 + $0x3a8] sm:$0xf]
  %v282 = vld [vmem:[%s1 + $0x3ac] sm:$0xf]
  %v283 = vld [vmem:[%s1 + $0x3b0] sm:$0xf]
  %v284 = vld [vmem:[%s1 + $0x3b4] sm:$0xf]
  %v285 = vld [vmem:[%s1 + $0x3b8] sm:$0xf]
  %v286 = vld [vmem:[%s1 + $0x3bc] sm:$0xf]
  %v287 = vld [vmem:[%s1 + $0x3c0] sm:$0xf]
  %v288 = vld [vmem:[%s1 + $0x3c4] sm:$0xf]
  %v289 = vld [vmem:[%s1 + $0x3c8] sm:$0xf]
  %v290 = vld [vmem:[%s1 + $0x3cc] sm:$0xf]
  %v291 = vld [vmem:[%s1 + $0x3d0] sm:$0xf]
  %v292 = vld [vmem:[%s1 + $0x3d4] sm:$0xf]
  %v293 = vld [vmem:[%s1 + $0x3d8] sm:$0xf]
  %v294 = vld [vmem:[%s1 + $0x3dc] sm:$0xf]
  %v295 = vld [vmem:[%s1 + $0x3e0] sm:$0xf]
  %v296 = vld [vmem:[%s1 + $0x3e4] sm:$0xf]
  %v297 = vld [vmem:[%s1 + $0x3e8] sm:$0xf]
  %v298 = vld [vmem:[%s1 + $0x3ec] sm:$0xf]
  %v299 = vld [vmem:[%s1 + $0x3f0] sm:$0xf]
  %v300 = vld [vmem:[%s1 + $0x3f4] sm:$0xf]
  %v301 = vld [vmem:[%s1 + $0x3f8] sm:$0xf]
  %v302 = vld [vmem:[%s1 + $0x3fc] sm:$0xf]
  %v303 = vld [vmem:[%s2] sm:$0x1]
  %v305 = vlaneseq
  %v306 = vshrl.u32 %v305, 7
  %v307 = vsub.s32 0, %v306
  %v308 = vrot.slane %v303, %v307
  %v342 = vunpack.c.l.b16 %v15
  %v343 = vunpack.c.h.b16 %v15
  %v344 = vunpack.c.l.b16 %v16
  %v345 = vunpack.c.h.b16 %v16
  %v346 = vunpack.c.l.b16 %v17
  %v347 = vunpack.c.h.b16 %v17
  %v348 = vunpack.c.l.b16 %v18
  %v349 = vunpack.c.h.b16 %v18
  %v350 = vunpack.c.l.b16 %v19
  %v351 = vunpack.c.h.b16 %v19
  %v352 = vunpack.c.l.b16 %v20
  %v353 = vunpack.c.h.b16 %v20
  %v354 = vunpack.c.l.b16 %v21
  %v355 = vunpack.c.h.b16 %v21
  %v356 = vunpack.c.l.b16 %v22
  %v357 = vunpack.c.h.b16 %v22
  %v358 = vunpack.c.l.b16 %v23
  %v359 = vunpack.c.h.b16 %v23
  %v360 = vunpack.c.l.b16 %v24
  %v361 = vunpack.c.h.b16 %v24
  %v362 = vunpack.c.l.b16 %v25
  %v363 = vunpack.c.h.b16 %v25
  %v364 = vunpack.c.l.b16 %v26
  %v365 = vunpack.c.h.b16 %v26
  %v366 = vunpack.c.l.b16 %v27
  %v367 = vunpack.c.h.b16 %v27
  %v368 = vunpack.c.l.b16 %v28
  %v369 = vunpack.c.h.b16 %v28
  %v370 = vunpack.c.l.b16 %v29
  %v371 = vunpack.c.h.b16 %v29
  %v372 = vunpack.c.l.b16 %v30
  %v373 = vunpack.c.h.b16 %v30
  %v374 = vunpack.c.l.b16 %v31
  %v375 = vunpack.c.h.b16 %v31
  %v376 = vunpack.c.l.b16 %v32
  %v377 = vunpack.c.h.b16 %v32
  %v378 = vunpack.c.l.b16 %v33
  %v379 = vunpack.c.h.b16 %v33
  %v380 = vunpack.c.l.b16 %v34
  %v381 = vunpack.c.h.b16 %v34
  %v382 = vunpack.c.l.b16 %v35
  %v383 = vunpack.c.h.b16 %v35
  %v384 = vunpack.c.l.b16 %v36
  %v385 = vunpack.c.h.b16 %v36
  %v386 = vunpack.c.l.b16 %v37
  %v387 = vunpack.c.h.b16 %v37
  %v388 = vunpack.c.l.b16 %v38
  %v389 = vunpack.c.h.b16 %v38
  %v390 = vunpack.c.l.b16 %v39
  %v391 = vunpack.c.h.b16 %v39
  %v392 = vunpack.c.l.b16 %v40
  %v393 = vunpack.c.h.b16 %v40
  %v394 = vunpack.c.l.b16 %v41
  %v395 = vunpack.c.h.b16 %v41
  %v396 = vunpack.c.l.b16 %v42
  %v397 = vunpack.c.h.b16 %v42
  %v398 = vunpack.c.l.b16 %v43
  %v399 = vunpack.c.h.b16 %v43
  %v400 = vunpack.c.l.b16 %v44
  %v401 = vunpack.c.h.b16 %v44
  %v402 = vunpack.c.l.b16 %v45
  %v403 = vunpack.c.h.b16 %v45
  %v404 = vunpack.c.l.b16 %v46
  %v405 = vunpack.c.h.b16 %v46
  %v406 = vpack.c.b16 %v358, %v342
  %v407 = vpack.c.b16 %v359, %v343
  %v408 = vpack.c.b16 %v360, %v344
  %v409 = vpack.c.b16 %v361, %v345
  %v410 = vpack.c.b16 %v362, %v346
  %v411 = vpack.c.b16 %v363, %v347
  %v412 = vpack.c.b16 %v364, %v348
  %v413 = vpack.c.b16 %v365, %v349
  %v414 = vpack.c.b16 %v366, %v350
  %v415 = vpack.c.b16 %v367, %v351
  %v416 = vpack.c.b16 %v368, %v352
  %v417 = vpack.c.b16 %v369, %v353
  %v418 = vpack.c.b16 %v370, %v354
  %v419 = vpack.c.b16 %v371, %v355
  %v420 = vpack.c.b16 %v372, %v356
  %v421 = vpack.c.b16 %v373, %v357
  %v422 = vpack.c.b16 %v390, %v374
  %v423 = vpack.c.b16 %v391, %v375
  %v424 = vpack.c.b16 %v392, %v376
  %v425 = vpack.c.b16 %v393, %v377
  %v426 = vpack.c.b16 %v394, %v378
  %v427 = vpack.c.b16 %v395, %v379
  %v428 = vpack.c.b16 %v396, %v380
  %v429 = vpack.c.b16 %v397, %v381
  %v430 = vpack.c.b16 %v398, %v382
  %v431 = vpack.c.b16 %v399, %v383
  %v432 = vpack.c.b16 %v400, %v384
  %v433 = vpack.c.b16 %v401, %v385
  %v434 = vpack.c.b16 %v402, %v386
  %v435 = vpack.c.b16 %v403, %v387
  %v436 = vpack.c.b16 %v404, %v388
  %v437 = vpack.c.b16 %v405, %v389
  %v726 = vunpack.c.l.b16 %v47
  %v727 = vunpack.c.l.b16 %v48
  %v728 = vunpack.c.l.b16 %v49
  %v729 = vunpack.c.l.b16 %v50
  %v730 = vunpack.c.l.b16 %v51
  %v731 = vunpack.c.l.b16 %v52
  %v732 = vunpack.c.l.b16 %v53
  %v733 = vunpack.c.l.b16 %v54
  %v734 = vunpack.c.l.b16 %v55
  %v735 = vunpack.c.l.b16 %v56
  %v736 = vunpack.c.l.b16 %v57
  %v737 = vunpack.c.l.b16 %v58
  %v738 = vunpack.c.l.b16 %v59
  %v739 = vunpack.c.l.b16 %v60
  %v740 = vunpack.c.l.b16 %v61
  %v741 = vunpack.c.l.b16 %v62
  %v742 = vunpack.c.l.b16 %v63
  %v743 = vunpack.c.l.b16 %v64
  %v744 = vunpack.c.l.b16 %v65
  %v745 = vunpack.c.l.b16 %v66
  %v746 = vunpack.c.l.b16 %v67
  %v747 = vunpack.c.l.b16 %v68
  %v748 = vunpack.c.l.b16 %v69
  %v749 = vunpack.c.l.b16 %v70
  %v750 = vunpack.c.l.b16 %v71
  %v751 = vunpack.c.l.b16 %v72
  %v752 = vunpack.c.l.b16 %v73
  %v753 = vunpack.c.l.b16 %v74
  %v754 = vunpack.c.l.b16 %v75
  %v755 = vunpack.c.l.b16 %v76
  %v756 = vunpack.c.l.b16 %v77
  %v757 = vunpack.c.l.b16 %v78
  %v758 = vunpack.c.l.b16 %v79
  %v759 = vunpack.c.l.b16 %v80
  %v760 = vunpack.c.l.b16 %v81
  %v761 = vunpack.c.l.b16 %v82
  %v762 = vunpack.c.l.b16 %v83
  %v763 = vunpack.c.l.b16 %v84
  %v764 = vunpack.c.l.b16 %v85
  %v765 = vunpack.c.l.b16 %v86
  %v766 = vunpack.c.l.b16 %v87
  %v767 = vunpack.c.l.b16 %v88
  %v768 = vunpack.c.l.b16 %v89
  %v769 = vunpack.c.l.b16 %v90
  %v770 = vunpack.c.l.b16 %v91
  %v771 = vunpack.c.l.b16 %v92
  %v772 = vunpack.c.l.b16 %v93
  %v773 = vunpack.c.l.b16 %v94
  %v774 = vunpack.c.l.b16 %v95
  %v775 = vunpack.c.l.b16 %v96
  %v776 = vunpack.c.l.b16 %v97
  %v777 = vunpack.c.l.b16 %v98
  %v778 = vunpack.c.l.b16 %v99
  %v779 = vunpack.c.l.b16 %v100
  %v780 = vunpack.c.l.b16 %v101
  %v781 = vunpack.c.l.b16 %v102
  %v782 = vunpack.c.l.b16 %v103
  %v783 = vunpack.c.l.b16 %v104
  %v784 = vunpack.c.l.b16 %v105
  %v785 = vunpack.c.l.b16 %v106
  %v786 = vunpack.c.l.b16 %v107
  %v787 = vunpack.c.l.b16 %v108
  %v788 = vunpack.c.l.b16 %v109
  %v789 = vunpack.c.l.b16 %v110
  %v790 = vunpack.c.l.b16 %v111
  %v791 = vunpack.c.l.b16 %v112
  %v792 = vunpack.c.l.b16 %v113
  %v793 = vunpack.c.l.b16 %v114
  %v794 = vunpack.c.l.b16 %v115
  %v795 = vunpack.c.l.b16 %v116
  %v796 = vunpack.c.l.b16 %v117
  %v797 = vunpack.c.l.b16 %v118
  %v798 = vunpack.c.l.b16 %v119
  %v799 = vunpack.c.l.b16 %v120
  %v800 = vunpack.c.l.b16 %v121
  %v801 = vunpack.c.l.b16 %v122
  %v802 = vunpack.c.l.b16 %v123
  %v803 = vunpack.c.l.b16 %v124
  %v804 = vunpack.c.l.b16 %v125
  %v805 = vunpack.c.l.b16 %v126
  %v806 = vunpack.c.l.b16 %v127
  %v807 = vunpack.c.l.b16 %v128
  %v808 = vunpack.c.l.b16 %v129
  %v809 = vunpack.c.l.b16 %v130
  %v810 = vunpack.c.l.b16 %v131
  %v811 = vunpack.c.l.b16 %v132
  %v812 = vunpack.c.l.b16 %v133
  %v813 = vunpack.c.l.b16 %v134
  %v814 = vunpack.c.l.b16 %v135
  %v815 = vunpack.c.l.b16 %v136
  %v816 = vunpack.c.l.b16 %v137
  %v817 = vunpack.c.l.b16 %v138
  %v818 = vunpack.c.l.b16 %v139
  %v819 = vunpack.c.l.b16 %v140
  %v820 = vunpack.c.l.b16 %v141
  %v821 = vunpack.c.l.b16 %v142
  %v822 = vunpack.c.l.b16 %v143
  %v823 = vunpack.c.l.b16 %v144
  %v824 = vunpack.c.l.b16 %v145
  %v825 = vunpack.c.l.b16 %v146
  %v826 = vunpack.c.l.b16 %v147
  %v827 = vunpack.c.l.b16 %v148
  %v828 = vunpack.c.l.b16 %v149
  %v829 = vunpack.c.l.b16 %v150
  %v830 = vunpack.c.l.b16 %v151
  %v831 = vunpack.c.l.b16 %v152
  %v832 = vunpack.c.l.b16 %v153
  %v833 = vunpack.c.l.b16 %v154
  %v834 = vunpack.c.l.b16 %v155
  %v835 = vunpack.c.l.b16 %v156
  %v836 = vunpack.c.l.b16 %v157
  %v837 = vunpack.c.l.b16 %v158
  %v838 = vunpack.c.l.b16 %v159
  %v839 = vunpack.c.l.b16 %v160
  %v840 = vunpack.c.l.b16 %v161
  %v841 = vunpack.c.l.b16 %v162
  %v842 = vunpack.c.l.b16 %v163
  %v843 = vunpack.c.l.b16 %v164
  %v844 = vunpack.c.l.b16 %v165
  %v845 = vunpack.c.l.b16 %v166
  %v846 = vunpack.c.l.b16 %v167
  %v847 = vunpack.c.l.b16 %v168
  %v848 = vunpack.c.l.b16 %v169
  %v849 = vunpack.c.l.b16 %v170
  %v850 = vunpack.c.l.b16 %v171
  %v851 = vunpack.c.l.b16 %v172
  %v852 = vunpack.c.l.b16 %v173
  %v853 = vunpack.c.l.b16 %v174
  %v854 = vunpack.c.l.b16 %v175
  %v855 = vunpack.c.l.b16 %v176
  %v856 = vunpack.c.l.b16 %v177
  %v857 = vunpack.c.l.b16 %v178
  %v858 = vunpack.c.l.b16 %v179
  %v859 = vunpack.c.l.b16 %v180
  %v860 = vunpack.c.l.b16 %v181
  %v861 = vunpack.c.l.b16 %v182
  %v862 = vunpack.c.l.b16 %v183
  %v863 = vunpack.c.l.b16 %v184
  %v864 = vunpack.c.l.b16 %v185
  %v865 = vunpack.c.l.b16 %v186
  %v866 = vunpack.c.l.b16 %v187
  %v867 = vunpack.c.l.b16 %v188
  %v868 = vunpack.c.l.b16 %v189
  %v869 = vunpack.c.l.b16 %v190
  %v870 = vunpack.c.l.b16 %v191
  %v871 = vunpack.c.l.b16 %v192
  %v872 = vunpack.c.l.b16 %v193
  %v873 = vunpack.c.l.b16 %v194
  %v874 = vunpack.c.l.b16 %v195
  %v875 = vunpack.c.l.b16 %v196
  %v876 = vunpack.c.l.b16 %v197
  %v877 = vunpack.c.l.b16 %v198
  %v878 = vunpack.c.l.b16 %v199
  %v879 = vunpack.c.l.b16 %v200
  %v880 = vunpack.c.l.b16 %v201
  %v881 = vunpack.c.l.b16 %v202
  %v882 = vunpack.c.l.b16 %v203
  %v883 = vunpack.c.l.b16 %v204
  %v884 = vunpack.c.l.b16 %v205
  %v885 = vunpack.c.l.b16 %v206
  %v886 = vunpack.c.l.b16 %v207
  %v887 = vunpack.c.l.b16 %v208
  %v888 = vunpack.c.l.b16 %v209
  %v889 = vunpack.c.l.b16 %v210
  %v890 = vunpack.c.l.b16 %v211
  %v891 = vunpack.c.l.b16 %v212
  %v892 = vunpack.c.l.b16 %v213
  %v893 = vunpack.c.l.b16 %v214
  %v894 = vunpack.c.l.b16 %v215
  %v895 = vunpack.c.l.b16 %v216
  %v896 = vunpack.c.l.b16 %v217
  %v897 = vunpack.c.l.b16 %v218
  %v898 = vunpack.c.l.b16 %v219
  %v899 = vunpack.c.l.b16 %v220
  %v900 = vunpack.c.l.b16 %v221
  %v901 = vunpack.c.l.b16 %v222
  %v902 = vunpack.c.l.b16 %v223
  %v903 = vunpack.c.l.b16 %v224
  %v904 = vunpack.c.l.b16 %v225
  %v905 = vunpack.c.l.b16 %v226
  %v906 = vunpack.c.l.b16 %v227
  %v907 = vunpack.c.l.b16 %v228
  %v908 = vunpack.c.l.b16 %v229
  %v909 = vunpack.c.l.b16 %v230
  %v910 = vunpack.c.l.b16 %v231
  %v911 = vunpack.c.l.b16 %v232
  %v912 = vunpack.c.l.b16 %v233
  %v913 = vunpack.c.l.b16 %v234
  %v914 = vunpack.c.l.b16 %v235
  %v915 = vunpack.c.l.b16 %v236
  %v916 = vunpack.c.l.b16 %v237
  %v917 = vunpack.c.l.b16 %v238
  %v918 = vunpack.c.l.b16 %v239
  %v919 = vunpack.c.l.b16 %v240
  %v920 = vunpack.c.l.b16 %v241
  %v921 = vunpack.c.l.b16 %v242
  %v922 = vunpack.c.l.b16 %v243
  %v923 = vunpack.c.l.b16 %v244
  %v924 = vunpack.c.l.b16 %v245
  %v925 = vunpack.c.l.b16 %v246
  %v926 = vunpack.c.l.b16 %v247
  %v927 = vunpack.c.l.b16 %v248
  %v928 = vunpack.c.l.b16 %v249
  %v929 = vunpack.c.l.b16 %v250
  %v930 = vunpack.c.l.b16 %v251
  %v931 = vunpack.c.l.b16 %v252
  %v932 = vunpack.c.l.b16 %v253
  %v933 = vunpack.c.l.b16 %v254
  %v934 = vunpack.c.l.b16 %v255
  %v935 = vunpack.c.l.b16 %v256
  %v936 = vunpack.c.l.b16 %v257
  %v937 = vunpack.c.l.b16 %v258
  %v938 = vunpack.c.l.b16 %v259
  %v939 = vunpack.c.l.b16 %v260
  %v940 = vunpack.c.l.b16 %v261
  %v941 = vunpack.c.l.b16 %v262
  %v942 = vunpack.c.l.b16 %v263
  %v943 = vunpack.c.l.b16 %v264
  %v944 = vunpack.c.l.b16 %v265
  %v945 = vunpack.c.l.b16 %v266
  %v946 = vunpack.c.l.b16 %v267
  %v947 = vunpack.c.l.b16 %v268
  %v948 = vunpack.c.l.b16 %v269
  %v949 = vunpack.c.l.b16 %v270
  %v950 = vunpack.c.l.b16 %v271
  %v951 = vunpack.c.l.b16 %v272
  %v952 = vunpack.c.l.b16 %v273
  %v953 = vunpack.c.l.b16 %v274
  %v954 = vunpack.c.l.b16 %v275
  %v955 = vunpack.c.l.b16 %v276
  %v956 = vunpack.c.l.b16 %v277
  %v957 = vunpack.c.l.b16 %v278
  %v958 = vunpack.c.l.b16 %v279
  %v959 = vunpack.c.l.b16 %v280
  %v960 = vunpack.c.l.b16 %v281
  %v961 = vunpack.c.l.b16 %v282
  %v962 = vunpack.c.l.b16 %v283
  %v963 = vunpack.c.l.b16 %v284
  %v964 = vunpack.c.l.b16 %v285
  %v965 = vunpack.c.l.b16 %v286
  %v966 = vunpack.c.l.b16 %v287
  %v967 = vunpack.c.l.b16 %v288
  %v968 = vunpack.c.l.b16 %v289
  %v969 = vunpack.c.l.b16 %v290
  %v970 = vunpack.c.l.b16 %v291
  %v971 = vunpack.c.l.b16 %v292
  %v972 = vunpack.c.l.b16 %v293
  %v973 = vunpack.c.l.b16 %v294
  %v974 = vunpack.c.l.b16 %v295
  %v975 = vunpack.c.l.b16 %v296
  %v976 = vunpack.c.l.b16 %v297
  %v977 = vunpack.c.l.b16 %v298
  %v978 = vunpack.c.l.b16 %v299
  %v979 = vunpack.c.l.b16 %v300
  %v980 = vunpack.c.l.b16 %v301
  %v981 = vunpack.c.l.b16 %v302
  %v982 = vpack.c.b16 %v727, %v726
  %v983 = vpack.c.b16 %v729, %v728
  %v984 = vpack.c.b16 %v731, %v730
  %v985 = vpack.c.b16 %v733, %v732
  %v986 = vpack.c.b16 %v735, %v734
  %v987 = vpack.c.b16 %v737, %v736
  %v988 = vpack.c.b16 %v739, %v738
  %v989 = vpack.c.b16 %v741, %v740
  %v990 = vpack.c.b16 %v743, %v742
  %v991 = vpack.c.b16 %v745, %v744
  %v992 = vpack.c.b16 %v747, %v746
  %v993 = vpack.c.b16 %v749, %v748
  %v994 = vpack.c.b16 %v751, %v750
  %v995 = vpack.c.b16 %v753, %v752
  %v996 = vpack.c.b16 %v755, %v754
  %v997 = vpack.c.b16 %v757, %v756
  %v998 = vpack.c.b16 %v759, %v758
  %v999 = vpack.c.b16 %v761, %v760
  %v1000 = vpack.c.b16 %v763, %v762
  %v1001 = vpack.c.b16 %v765, %v764
  %v1002 = vpack.c.b16 %v767, %v766
  %v1003 = vpack.c.b16 %v769, %v768
  %v1004 = vpack.c.b16 %v771, %v770
  %v1005 = vpack.c.b16 %v773, %v772
  %v1006 = vpack.c.b16 %v775, %v774
  %v1007 = vpack.c.b16 %v777, %v776
  %v1008 = vpack.c.b16 %v779, %v778
  %v1009 = vpack.c.b16 %v781, %v780
  %v1010 = vpack.c.b16 %v783, %v782
  %v1011 = vpack.c.b16 %v785, %v784
  %v1012 = vpack.c.b16 %v787, %v786
  %v1013 = vpack.c.b16 %v789, %v788
  %v1014 = vpack.c.b16 %v791, %v790
  %v1015 = vpack.c.b16 %v793, %v792
  %v1016 = vpack.c.b16 %v795, %v794
  %v1017 = vpack.c.b16 %v797, %v796
  %v1018 = vpack.c.b16 %v799, %v798
  %v1019 = vpack.c.b16 %v801, %v800
  %v1020 = vpack.c.b16 %v803, %v802
  %v1021 = vpack.c.b16 %v805, %v804
  %v1022 = vpack.c.b16 %v807, %v806
  %v1023 = vpack.c.b16 %v809, %v808
  %v1024 = vpack.c.b16 %v811, %v810
  %v1025 = vpack.c.b16 %v813, %v812
  %v1026 = vpack.c.b16 %v815, %v814
  %v1027 = vpack.c.b16 %v817, %v816
  %v1028 = vpack.c.b16 %v819, %v818
  %v1029 = vpack.c.b16 %v821, %v820
  %v1030 = vpack.c.b16 %v823, %v822
  %v1031 = vpack.c.b16 %v825, %v824
  %v1032 = vpack.c.b16 %v827, %v826
  %v1033 = vpack.c.b16 %v829, %v828
  %v1034 = vpack.c.b16 %v831, %v830
  %v1035 = vpack.c.b16 %v833, %v832
  %v1036 = vpack.c.b16 %v835, %v834
  %v1037 = vpack.c.b16 %v837, %v836
  %v1038 = vpack.c.b16 %v839, %v838
  %v1039 = vpack.c.b16 %v841, %v840
  %v1040 = vpack.c.b16 %v843, %v842
  %v1041 = vpack.c.b16 %v845, %v844
  %v1042 = vpack.c.b16 %v847, %v846
  %v1043 = vpack.c.b16 %v849, %v848
  %v1044 = vpack.c.b16 %v851, %v850
  %v1045 = vpack.c.b16 %v853, %v852
  %v1046 = vpack.c.b16 %v855, %v854
  %v1047 = vpack.c.b16 %v857, %v856
  %v1048 = vpack.c.b16 %v859, %v858
  %v1049 = vpack.c.b16 %v861, %v860
  %v1050 = vpack.c.b16 %v863, %v862
  %v1051 = vpack.c.b16 %v865, %v864
  %v1052 = vpack.c.b16 %v867, %v866
  %v1053 = vpack.c.b16 %v869, %v868
  %v1054 = vpack.c.b16 %v871, %v870
  %v1055 = vpack.c.b16 %v873, %v872
  %v1056 = vpack.c.b16 %v875, %v874
  %v1057 = vpack.c.b16 %v877, %v876
  %v1058 = vpack.c.b16 %v879, %v878
  %v1059 = vpack.c.b16 %v881, %v880
  %v1060 = vpack.c.b16 %v883, %v882
  %v1061 = vpack.c.b16 %v885, %v884
  %v1062 = vpack.c.b16 %v887, %v886
  %v1063 = vpack.c.b16 %v889, %v888
  %v1064 = vpack.c.b16 %v891, %v890
  %v1065 = vpack.c.b16 %v893, %v892
  %v1066 = vpack.c.b16 %v895, %v894
  %v1067 = vpack.c.b16 %v897, %v896
  %v1068 = vpack.c.b16 %v899, %v898
  %v1069 = vpack.c.b16 %v901, %v900
  %v1070 = vpack.c.b16 %v903, %v902
  %v1071 = vpack.c.b16 %v905, %v904
  %v1072 = vpack.c.b16 %v907, %v906
  %v1073 = vpack.c.b16 %v909, %v908
  %v1074 = vpack.c.b16 %v911, %v910
  %v1075 = vpack.c.b16 %v913, %v912
  %v1076 = vpack.c.b16 %v915, %v914
  %v1077 = vpack.c.b16 %v917, %v916
  %v1078 = vpack.c.b16 %v919, %v918
  %v1079 = vpack.c.b16 %v921, %v920
  %v1080 = vpack.c.b16 %v923, %v922
  %v1081 = vpack.c.b16 %v925, %v924
  %v1082 = vpack.c.b16 %v927, %v926
  %v1083 = vpack.c.b16 %v929, %v928
  %v1084 = vpack.c.b16 %v931, %v930
  %v1085 = vpack.c.b16 %v933, %v932
  %v1086 = vpack.c.b16 %v935, %v934
  %v1087 = vpack.c.b16 %v937, %v936
  %v1088 = vpack.c.b16 %v939, %v938
  %v1089 = vpack.c.b16 %v941, %v940
  %v1090 = vpack.c.b16 %v943, %v942
  %v1091 = vpack.c.b16 %v945, %v944
  %v1092 = vpack.c.b16 %v947, %v946
  %v1093 = vpack.c.b16 %v949, %v948
  %v1094 = vpack.c.b16 %v951, %v950
  %v1095 = vpack.c.b16 %v953, %v952
  %v1096 = vpack.c.b16 %v955, %v954
  %v1097 = vpack.c.b16 %v957, %v956
  %v1098 = vpack.c.b16 %v959, %v958
  %v1099 = vpack.c.b16 %v961, %v960
  %v1100 = vpack.c.b16 %v963, %v962
  %v1101 = vpack.c.b16 %v965, %v964
  %v1102 = vpack.c.b16 %v967, %v966
  %v1103 = vpack.c.b16 %v969, %v968
  %v1104 = vpack.c.b16 %v971, %v970
  %v1105 = vpack.c.b16 %v973, %v972
  %v1106 = vpack.c.b16 %v975, %v974
  %v1107 = vpack.c.b16 %v977, %v976
  %v1108 = vpack.c.b16 %v979, %v978
  %v1109 = vpack.c.b16 %v981, %v980
  %1238 = vmatprep.subr.bf16.mxu0 0
  %1239 = vmatpush1.bf16.msra.mxu0 %v982
  %1240 = vmatprep.subr.bf16.mxu0 0
  %1241 = vmatpush1.bf16.msra.mxu0 %v983
  %1242 = vmatprep.subr.bf16.mxu0 0
  %1243 = vmatpush1.bf16.msra.mxu0 %v984
  %1244 = vmatprep.subr.bf16.mxu0 0
  %1245 = vmatpush1.bf16.msra.mxu0 %v985
  %1246 = vmatprep.subr.bf16.mxu0 0
  %1247 = vmatpush1.bf16.msra.mxu0 %v986
  %1248 = vmatprep.subr.bf16.mxu0 0
  %1249 = vmatpush1.bf16.msra.mxu0 %v987
  %1250 = vmatprep.subr.bf16.mxu0 0
  %1251 = vmatpush1.bf16.msra.mxu0 %v988
  %1252 = vmatprep.subr.bf16.mxu0 0
  %1253 = vmatpush1.bf16.msra.mxu0 %v989
  %1254 = vmatprep.subr.bf16.mxu0 0
  %1255 = vmatpush1.bf16.msra.mxu0 %v990
  %1256 = vmatprep.subr.bf16.mxu0 0
  %1257 = vmatpush1.bf16.msra.mxu0 %v991
  %1258 = vmatprep.subr.bf16.mxu0 0
  %1259 = vmatpush1.bf16.msra.mxu0 %v992
  %1260 = vmatprep.subr.bf16.mxu0 0
  %1261 = vmatpush1.bf16.msra.mxu0 %v993
  %1262 = vmatprep.subr.bf16.mxu0 0
  %1263 = vmatpush1.bf16.msra.mxu0 %v994
  %1264 = vmatprep.subr.bf16.mxu0 0
  %1265 = vmatpush1.bf16.msra.mxu0 %v995
  %1266 = vmatprep.subr.bf16.mxu0 0
  %1267 = vmatpush1.bf16.msra.mxu0 %v996
  %1268 = vmatprep.subr.bf16.mxu0 0
  %1269 = vmatpush1.bf16.msra.mxu0 %v997
  %1270 = vmatprep.mubr.bf16.mxu0 %v407
  %1271 = vmatmul.mubr.bf16.gmra.mrb[0].mxu0 %v406
  %v1272 = vpop.f32.mrb[0].mxu0
  %v1273 = vadd.f32 %v308, %v1272
  %v1274 = vpop.f32.mrb[0].mxu0
  %v1275 = vpop.f32.mrb[0].mxu0
  %v1276 = vadd.f32 %v308, %v1275
  %v1277 = vpop.f32.mrb[0].mxu0
  %1278 = vmatprep.mubr.bf16.mxu0 %v423
  %1279 = vmatmul.mubr.bf16.gmra.mrb[0].mxu0 %v422
  %v1280 = vpop.f32.mrb[0].mxu0
  %v1281 = vadd.f32 %v308, %v1280
  %v1282 = vpop.f32.mrb[0].mxu0
  %v1283 = vpop.f32.mrb[0].mxu0
  %v1284 = vadd.f32 %v308, %v1283
  %v1285 = vpop.f32.mrb[0].mxu0
  %1286 = vdwg.mxu0
  %1287 = vmatprep.subr.bf16.mxu0 0
  %1288 = vmatpush1.bf16.msra.mxu0 %v998
  %1289 = vmatprep.subr.bf16.mxu0 0
  %1290 = vmatpush1.bf16.msra.mxu0 %v999
  %1291 = vmatprep.subr.bf16.mxu0 0
  %1292 = vmatpush1.bf16.msra.mxu0 %v1000
  %1293 = vmatprep.subr.bf16.mxu0 0
  %1294 = vmatpush1.bf16.msra.mxu0 %v1001
  %1295 = vmatprep.subr.bf16.mxu0 0
  %1296 = vmatpush1.bf16.msra.mxu0 %v1002
  %1297 = vmatprep.subr.bf16.mxu0 0
  %1298 = vmatpush1.bf16.msra.mxu0 %v1003
  %1299 = vmatprep.subr.bf16.mxu0 0
  %1300 = vmatpush1.bf16.msra.mxu0 %v1004
  %1301 = vmatprep.subr.bf16.mxu0 0
  %1302 = vmatpush1.bf16.msra.mxu0 %v1005
  %1303 = vmatprep.subr.bf16.mxu0 0
  %1304 = vmatpush1.bf16.msra.mxu0 %v1006
  %1305 = vmatprep.subr.bf16.mxu0 0
  %1306 = vmatpush1.bf16.msra.mxu0 %v1007
  %1307 = vmatprep.subr.bf16.mxu0 0
  %1308 = vmatpush1.bf16.msra.mxu0 %v1008
  %1309 = vmatprep.subr.bf16.mxu0 0
  %1310 = vmatpush1.bf16.msra.mxu0 %v1009
  %1311 = vmatprep.subr.bf16.mxu0 0
  %1312 = vmatpush1.bf16.msra.mxu0 %v1010
  %1313 = vmatprep.subr.bf16.mxu0 0
  %1314 = vmatpush1.bf16.msra.mxu0 %v1011
  %1315 = vmatprep.subr.bf16.mxu0 0
  %1316 = vmatpush1.bf16.msra.mxu0 %v1012
  %1317 = vmatprep.subr.bf16.mxu0 0
  %1318 = vmatpush1.bf16.msra.mxu0 %v1013
  %1319 = vmatprep.mubr.bf16.mxu0 %v409
  %1320 = vmatmul.mubr.bf16.gmra.mrb[0].mxu0 %v408
  %v1321 = vpop.f32.mrb[0].mxu0
  %v1322 = vadd.f32 %v1273, %v1321
  %v1323 = vpop.f32.mrb[0].mxu0
  %v1324 = vpop.f32.mrb[0].mxu0
  %v1325 = vadd.f32 %v1276, %v1324
  %v1326 = vpop.f32.mrb[0].mxu0
  %1327 = vmatprep.mubr.bf16.mxu0 %v425
  %1328 = vmatmul.mubr.bf16.gmra.mrb[0].mxu0 %v424
  %v1329 = vpop.f32.mrb[0].mxu0
  %v1330 = vadd.f32 %v1281, %v1329
  %v1331 = vpop.f32.mrb[0].mxu0
  %v1332 = vpop.f32.mrb[0].mxu0
  %v1333 = vadd.f32 %v1284, %v1332
  %v1334 = vpop.f32.mrb[0].mxu0
  %1335 = vdwg.mxu0
  %1336 = vmatprep.subr.bf16.mxu0 0
  %1337 = vmatpush1.bf16.msra.mxu0 %v1014
  %1338 = vmatprep.subr.bf16.mxu0 0
  %1339 = vmatpush1.bf16.msra.mxu0 %v1015
  %1340 = vmatprep.subr.bf16.mxu0 0
  %1341 = vmatpush1.bf16.msra.mxu0 %v1016
  %1342 = vmatprep.subr.bf16.mxu0 0
  %1343 = vmatpush1.bf16.msra.mxu0 %v1017
  %1344 = vmatprep.subr.bf16.mxu0 0
  %1345 = vmatpush1.bf16.msra.mxu0 %v1018
  %1346 = vmatprep.subr.bf16.mxu0 0
  %1347 = vmatpush1.bf16.msra.mxu0 %v1019
  %1348 = vmatprep.subr.bf16.mxu0 0
  %1349 = vmatpush1.bf16.msra.mxu0 %v1020
  %1350 = vmatprep.subr.bf16.mxu0 0
  %1351 = vmatpush1.bf16.msra.mxu0 %v1021
  %1352 = vmatprep.subr.bf16.mxu0 0
  %1353 = vmatpush1.bf16.msra.mxu0 %v1022
  %1354 = vmatprep.subr.bf16.mxu0 0
  %1355 = vmatpush1.bf16.msra.mxu0 %v1023
  %1356 = vmatprep.subr.bf16.mxu0 0
  %1357 = vmatpush1.bf16.msra.mxu0 %v1024
  %1358 = vmatprep.subr.bf16.mxu0 0
  %1359 = vmatpush1.bf16.msra.mxu0 %v1025
  %1360 = vmatprep.subr.bf16.mxu0 0
  %1361 = vmatpush1.bf16.msra.mxu0 %v1026
  %1362 = vmatprep.subr.bf16.mxu0 0
  %1363 = vmatpush1.bf16.msra.mxu0 %v1027
  %1364 = vmatprep.subr.bf16.mxu0 0
  %1365 = vmatpush1.bf16.msra.mxu0 %v1028
  %1366 = vmatprep.subr.bf16.mxu0 0
  %1367 = vmatpush1.bf16.msra.mxu0 %v1029
  %1368 = vmatprep.mubr.bf16.mxu0 %v411
  %1369 = vmatmul.mubr.bf16.gmra.mrb[0].mxu0 %v410
  %v1370 = vpop.f32.mrb[0].mxu0
  %v1371 = vadd.f32 %v1322, %v1370
  %v1372 = vpop.f32.mrb[0].mxu0
  %v1373 = vpop.f32.mrb[0].mxu0
  %v1374 = vadd.f32 %v1325, %v1373
  %v1375 = vpop.f32.mrb[0].mxu0
  %1376 = vmatprep.mubr.bf16.mxu0 %v427
  %1377 = vmatmul.mubr.bf16.gmra.mrb[0].mxu0 %v426
  %v1378 = vpop.f32.mrb[0].mxu0
  %v1379 = vadd.f32 %v1330, %v1378
  %v1380 = vpop.f32.mrb[0].mxu0
  %v1381 = vpop.f32.mrb[0].mxu0
  %v1382 = vadd.f32 %v1333, %v1381
  %v1383 = vpop.f32.mrb[0].mxu0
  %1384 = vdwg.mxu0
  %1385 = vmatprep.subr.bf16.mxu0 0
  %1386 = vmatpush1.bf16.msra.mxu0 %v1030
  %1387 = vmatprep.subr.bf16.mxu0 0
  %1388 = vmatpush1.bf16.msra.mxu0 %v1031
  %1389 = vmatprep.subr.bf16.mxu0 0
  %1390 = vmatpush1.bf16.msra.mxu0 %v1032
  %1391 = vmatprep.subr.bf16.mxu0 0
  %1392 = vmatpush1.bf16.msra.mxu0 %v1033
  %1393 = vmatprep.subr.bf16.mxu0 0
  %1394 = vmatpush1.bf16.msra.mxu0 %v1034
  %1395 = vmatprep.subr.bf16.mxu0 0
  %1396 = vmatpush1.bf16.msra.mxu0 %v1035
  %1397 = vmatprep.subr.bf16.mxu0 0
  %1398 = vmatpush1.bf16.msra.mxu0 %v1036
  %1399 = vmatprep.subr.bf16.mxu0 0
  %1400 = vmatpush1.bf16.msra.mxu0 %v1037
  %1401 = vmatprep.subr.bf16.mxu0 0
  %1402 = vmatpush1.bf16.msra.mxu0 %v1038
  %1403 = vmatprep.subr.bf16.mxu0 0
  %1404 = vmatpush1.bf16.msra.mxu0 %v1039
  %1405 = vmatprep.subr.bf16.mxu0 0
  %1406 = vmatpush1.bf16.msra.mxu0 %v1040
  %1407 = vmatprep.subr.bf16.mxu0 0
  %1408 = vmatpush1.bf16.msra.mxu0 %v1041
  %1409 = vmatprep.subr.bf16.mxu0 0
  %1410 = vmatpush1.bf16.msra.mxu0 %v1042
  %1411 = vmatprep.subr.bf16.mxu0 0
  %1412 = vmatpush1.bf16.msra.mxu0 %v1043
  %1413 = vmatprep.subr.bf16.mxu0 0
  %1414 = vmatpush1.bf16.msra.mxu0 %v1044
  %1415 = vmatprep.subr.bf16.mxu0 0
  %1416 = vmatpush1.bf16.msra.mxu0 %v1045
  %1417 = vmatprep.mubr.bf16.mxu0 %v413
  %1418 = vmatmul.mubr.bf16.gmra.mrb[0].mxu0 %v412
  %v1419 = vpop.f32.mrb[0].mxu0
  %v1420 = vadd.f32 %v1371, %v1419
  %v1421 = vpop.f32.mrb[0].mxu0
  %v1422 = vpop.f32.mrb[0].mxu0
  %v1423 = vadd.f32 %v1374, %v1422
  %v1424 = vpop.f32.mrb[0].mxu0
  %1425 = vmatprep.mubr.bf16.mxu0 %v429
  %1426 = vmatmul.mubr.bf16.gmra.mrb[0].mxu0 %v428
  %v1427 = vpop.f32.mrb[0].mxu0
  %v1428 = vadd.f32 %v1379, %v1427
  %v1429 = vpop.f32.mrb[0].mxu0
  %v1430 = vpop.f32.mrb[0].mxu0
  %v1431 = vadd.f32 %v1382, %v1430
  %v1432 = vpop.f32.mrb[0].mxu0
  %1433 = vdwg.mxu0
  %1434 = vmatprep.subr.bf16.mxu0 0
  %1435 = vmatpush1.bf16.msra.mxu0 %v1046
  %1436 = vmatprep.subr.bf16.mxu0 0
  %1437 = vmatpush1.bf16.msra.mxu0 %v1047
  %1438 = vmatprep.subr.bf16.mxu0 0
  %1439 = vmatpush1.bf16.msra.mxu0 %v1048
  %1440 = vmatprep.subr.bf16.mxu0 0
  %1441 = vmatpush1.bf16.msra.mxu0 %v1049
  %1442 = vmatprep.subr.bf16.mxu0 0
  %1443 = vmatpush1.bf16.msra.mxu0 %v1050
  %1444 = vmatprep.subr.bf16.mxu0 0
  %1445 = vmatpush1.bf16.msra.mxu0 %v1051
  %1446 = vmatprep.subr.bf16.mxu0 0
  %1447 = vmatpush1.bf16.msra.mxu0 %v1052
  %1448 = vmatprep.subr.bf16.mxu0 0
  %1449 = vmatpush1.bf16.msra.mxu0 %v1053
  %1450 = vmatprep.subr.bf16.mxu0 0
  %1451 = vmatpush1.bf16.msra.mxu0 %v1054
  %1452 = vmatprep.subr.bf16.mxu0 0
  %1453 = vmatpush1.bf16.msra.mxu0 %v1055
  %1454 = vmatprep.subr.bf16.mxu0 0
  %1455 = vmatpush1.bf16.msra.mxu0 %v1056
  %1456 = vmatprep.subr.bf16.mxu0 0
  %1457 = vmatpush1.bf16.msra.mxu0 %v1057
  %1458 = vmatprep.subr.bf16.mxu0 0
  %1459 = vmatpush1.bf16.msra.mxu0 %v1058
  %1460 = vmatprep.subr.bf16.mxu0 0
  %1461 = vmatpush1.bf16.msra.mxu0 %v1059
  %1462 = vmatprep.subr.bf16.mxu0 0
  %1463 = vmatpush1.bf16.msra.mxu0 %v1060
  %1464 = vmatprep.subr.bf16.mxu0 0
  %1465 = vmatpush1.bf16.msra.mxu0 %v1061
  %1466 = vmatprep.mubr.bf16.mxu0 %v415
  %1467 = vmatmul.mubr.bf16.gmra.mrb[0].mxu0 %v414
  %v1468 = vpop.f32.mrb[0].mxu0
  %v1469 = vadd.f32 %v1420, %v1468
  %v1470 = vpop.f32.mrb[0].mxu0
  %v1471 = vpop.f32.mrb[0].mxu0
  %v1472 = vadd.f32 %v1423, %v1471
  %v1473 = vpop.f32.mrb[0].mxu0
  %1474 = vmatprep.mubr.bf16.mxu0 %v431
  %1475 = vmatmul.mubr.bf16.gmra.mrb[0].mxu0 %v430
  %v1476 = vpop.f32.mrb[0].mxu0
  %v1477 = vadd.f32 %v1428, %v1476
  %v1478 = vpop.f32.mrb[0].mxu0
  %v1479 = vpop.f32.mrb[0].mxu0
  %v1480 = vadd.f32 %v1431, %v1479
  %v1481 = vpop.f32.mrb[0].mxu0
  %1482 = vdwg.mxu0
  %1483 = vmatprep.subr.bf16.mxu0 0
  %1484 = vmatpush1.bf16.msra.mxu0 %v1062
  %1485 = vmatprep.subr.bf16.mxu0 0
  %1486 = vmatpush1.bf16.msra.mxu0 %v1063
  %1487 = vmatprep.subr.bf16.mxu0 0
  %1488 = vmatpush1.bf16.msra.mxu0 %v1064
  %1489 = vmatprep.subr.bf16.mxu0 0
  %1490 = vmatpush1.bf16.msra.mxu0 %v1065
  %1491 = vmatprep.subr.bf16.mxu0 0
  %1492 = vmatpush1.bf16.msra.mxu0 %v1066
  %1493 = vmatprep.subr.bf16.mxu0 0
  %1494 = vmatpush1.bf16.msra.mxu0 %v1067
  %1495 = vmatprep.subr.bf16.mxu0 0
  %1496 = vmatpush1.bf16.msra.mxu0 %v1068
  %1497 = vmatprep.subr.bf16.mxu0 0
  %1498 = vmatpush1.bf16.msra.mxu0 %v1069
  %1499 = vmatprep.subr.bf16.mxu0 0
  %1500 = vmatpush1.bf16.msra.mxu0 %v1070
  %1501 = vmatprep.subr.bf16.mxu0 0
  %1502 = vmatpush1.bf16.msra.mxu0 %v1071
  %1503 = vmatprep.subr.bf16.mxu0 0
  %1504 = vmatpush1.bf16.msra.mxu0 %v1072
  %1505 = vmatprep.subr.bf16.mxu0 0
  %1506 = vmatpush1.bf16.msra.mxu0 %v1073
  %1507 = vmatprep.subr.bf16.mxu0 0
  %1508 = vmatpush1.bf16.msra.mxu0 %v1074
  %1509 = vmatprep.subr.bf16.mxu0 0
  %1510 = vmatpush1.bf16.msra.mxu0 %v1075
  %1511 = vmatprep.subr.bf16.mxu0 0
  %1512 = vmatpush1.bf16.msra.mxu0 %v1076
  %1513 = vmatprep.subr.bf16.mxu0 0
  %1514 = vmatpush1.bf16.msra.mxu0 %v1077
  %1515 = vmatprep.mubr.bf16.mxu0 %v417
  %1516 = vmatmul.mubr.bf16.gmra.mrb[0].mxu0 %v416
  %v1517 = vpop.f32.mrb[0].mxu0
  %v1518 = vadd.f32 %v1469, %v1517
  %v1519 = vpop.f32.mrb[0].mxu0
  %v1520 = vpop.f32.mrb[0].mxu0
  %v1521 = vadd.f32 %v1472, %v1520
  %v1522 = vpop.f32.mrb[0].mxu0
  %1523 = vmatprep.mubr.bf16.mxu0 %v433
  %1524 = vmatmul.mubr.bf16.gmra.mrb[0].mxu0 %v432
  %v1525 = vpop.f32.mrb[0].mxu0
  %v1526 = vadd.f32 %v1477, %v1525
  %v1527 = vpop.f32.mrb[0].mxu0
  %v1528 = vpop.f32.mrb[0].mxu0
  %v1529 = vadd.f32 %v1480, %v1528
  %v1530 = vpop.f32.mrb[0].mxu0
  %1531 = vdwg.mxu0
  %1532 = vmatprep.subr.bf16.mxu0 0
  %1533 = vmatpush1.bf16.msra.mxu0 %v1078
  %1534 = vmatprep.subr.bf16.mxu0 0
  %1535 = vmatpush1.bf16.msra.mxu0 %v1079
  %1536 = vmatprep.subr.bf16.mxu0 0
  %1537 = vmatpush1.bf16.msra.mxu0 %v1080
  %1538 = vmatprep.subr.bf16.mxu0 0
  %1539 = vmatpush1.bf16.msra.mxu0 %v1081
  %1540 = vmatprep.subr.bf16.mxu0 0
  %1541 = vmatpush1.bf16.msra.mxu0 %v1082
  %1542 = vmatprep.subr.bf16.mxu0 0
  %1543 = vmatpush1.bf16.msra.mxu0 %v1083
  %1544 = vmatprep.subr.bf16.mxu0 0
  %1545 = vmatpush1.bf16.msra.mxu0 %v1084
  %1546 = vmatprep.subr.bf16.mxu0 0
  %1547 = vmatpush1.bf16.msra.mxu0 %v1085
  %1548 = vmatprep.subr.bf16.mxu0 0
  %1549 = vmatpush1.bf16.msra.mxu0 %v1086
  %1550 = vmatprep.subr.bf16.mxu0 0
  %1551 = vmatpush1.bf16.msra.mxu0 %v1087
  %1552 = vmatprep.subr.bf16.mxu0 0
  %1553 = vmatpush1.bf16.msra.mxu0 %v1088
  %1554 = vmatprep.subr.bf16.mxu0 0
  %1555 = vmatpush1.bf16.msra.mxu0 %v1089
  %1556 = vmatprep.subr.bf16.mxu0 0
  %1557 = vmatpush1.bf16.msra.mxu0 %v1090
  %1558 = vmatprep.subr.bf16.mxu0 0
  %1559 = vmatpush1.bf16.msra.mxu0 %v1091
  %1560 = vmatprep.subr.bf16.mxu0 0
  %1561 = vmatpush1.bf16.msra.mxu0 %v1092
  %1562 = vmatprep.subr.bf16.mxu0 0
  %1563 = vmatpush1.bf16.msra.mxu0 %v1093
  %1564 = vmatprep.mubr.bf16.mxu0 %v419
  %1565 = vmatmul.mubr.bf16.gmra.mrb[0].mxu0 %v418
  %v1566 = vpop.f32.mrb[0].mxu0
  %v1567 = vadd.f32 %v1518, %v1566
  %v1568 = vpop.f32.mrb[0].mxu0
  %v1569 = vpop.f32.mrb[0].mxu0
  %v1570 = vadd.f32 %v1521, %v1569
  %v1571 = vpop.f32.mrb[0].mxu0
  %1572 = vmatprep.mubr.bf16.mxu0 %v435
  %1573 = vmatmul.mubr.bf16.gmra.mrb[0].mxu0 %v434
  %v1574 = vpop.f32.mrb[0].mxu0
  %v1575 = vadd.f32 %v1526, %v1574
  %v1576 = vpop.f32.mrb[0].mxu0
  %v1577 = vpop.f32.mrb[0].mxu0
  %v1578 = vadd.f32 %v1529, %v1577
  %v1579 = vpop.f32.mrb[0].mxu0
  %1580 = vdwg.mxu0
  %1581 = vmatprep.subr.bf16.mxu0 0
  %1582 = vmatpush1.bf16.msra.mxu0 %v1094
  %1583 = vmatprep.subr.bf16.mxu0 0
  %1584 = vmatpush1.bf16.msra.mxu0 %v1095
  %1585 = vmatprep.subr.bf16.mxu0 0
  %1586 = vmatpush1.bf16.msra.mxu0 %v1096
  %1587 = vmatprep.subr.bf16.mxu0 0
  %1588 = vmatpush1.bf16.msra.mxu0 %v1097
  %1589 = vmatprep.subr.bf16.mxu0 0
  %1590 = vmatpush1.bf16.msra.mxu0 %v1098
  %1591 = vmatprep.subr.bf16.mxu0 0
  %1592 = vmatpush1.bf16.msra.mxu0 %v1099
  %1593 = vmatprep.subr.bf16.mxu0 0
  %1594 = vmatpush1.bf16.msra.mxu0 %v1100
  %1595 = vmatprep.subr.bf16.mxu0 0
  %1596 = vmatpush1.bf16.msra.mxu0 %v1101
  %1597 = vmatprep.subr.bf16.mxu0 0
  %1598 = vmatpush1.bf16.msra.mxu0 %v1102
  %1599 = vmatprep.subr.bf16.mxu0 0
  %1600 = vmatpush1.bf16.msra.mxu0 %v1103
  %1601 = vmatprep.subr.bf16.mxu0 0
  %1602 = vmatpush1.bf16.msra.mxu0 %v1104
  %1603 = vmatprep.subr.bf16.mxu0 0
  %1604 = vmatpush1.bf16.msra.mxu0 %v1105
  %1605 = vmatprep.subr.bf16.mxu0 0
  %1606 = vmatpush1.bf16.msra.mxu0 %v1106
  %1607 = vmatprep.subr.bf16.mxu0 0
  %1608 = vmatpush1.bf16.msra.mxu0 %v1107
  %1609 = vmatprep.subr.bf16.mxu0 0
  %1610 = vmatpush1.bf16.msra.mxu0 %v1108
  %1611 = vmatprep.subr.bf16.mxu0 0
  %1612 = vmatpush1.bf16.msra.mxu0 %v1109
  %1613 = vmatprep.mubr.bf16.mxu0 %v421
  %1614 = vmatmul.mubr.bf16.gmra.mrb[0].mxu0 %v420
  %v1615 = vpop.f32.mrb[0].mxu0
  %v1616 = vadd.f32 %v1567, %v1615
  %v1617 = vpop.f32.mrb[0].mxu0
  %v1618 = vpop.f32.mrb[0].mxu0
  %v1619 = vadd.f32 %v1570, %v1618
  %v1620 = vpop.f32.mrb[0].mxu0
  %1621 = vmatprep.mubr.bf16.mxu0 %v437
  %1622 = vmatmul.mubr.bf16.gmra.mrb[0].mxu0 %v436
  %v1623 = vpop.f32.mrb[0].mxu0
  %v1624 = vadd.f32 %v1575, %v1623
  %v1625 = vpop.f32.mrb[0].mxu0
  %v1626 = vpop.f32.mrb[0].mxu0
  %v1627 = vadd.f32 %v1578, %v1626
  %v1628 = vpop.f32.mrb[0].mxu0
  %1629 = vdwg.mxu0
  %v1630 = vmax.f32 %v1616, 0.0
  %v1631 = vmax.f32 %v1619, 0.0
  %v1632 = vmax.f32 %v1624, 0.0
  %v1633 = vmax.f32 %v1627, 0.0
  %v1634 = vpack.c.bf16 %v1631, %v1630
  %v1635 = vpack.c.bf16 %v1633, %v1632
  %v1638 = vunpack.c.l.b16 %v1634
  %v1639 = vunpack.c.h.b16 %v1634
  %v1640 = vunpack.c.l.b16 %v1635
  %v1641 = vunpack.c.h.b16 %v1635
  %v1642 = vpack.c.b16 %v1638, %v1638
  %v1643 = vpack.c.b16 %v1639, %v1639
  %v1644 = vpack.c.b16 %v1640, %v1640
  %v1645 = vpack.c.b16 %v1641, %v1641
  %1650 = vst [vmem:[%s3] sm:$0xf] %v1642
  %1651 = vst [vmem:[%s3 + $0x4] sm:$0xf] %v1643
  %1652 = vst [vmem:[%s3 + $0x8] sm:$0xf] %v1644
  %1653 = vst [vmem:[%s3 + $0xc] sm:$0xf] %v1645
  // Predicated region
  $region14: #{qrdqn_forward.5} parent=0 // pred_check
    _
  $region15: #{qrdqn_forward.5} parent=0 // pred_check_branch
    %1655 = sbr.rel (0) target = $region17
  $region16: #{qrdqn_forward.5} parent=0 // pred_region
    _
  $region17: #{qrdqn_forward.5} parent=0 // pred_fallthru
    _
  // Predicated region
  $region18: #{qrdqn_forward.5} parent=0 // pred_check
    _
  $region19: #{qrdqn_forward.5} parent=0 // pred_check_branch
    %1657 = sbr.rel (0) target = $region21
  $region20: #{qrdqn_forward.5} parent=0 // pred_region
    _
  $region21: #{qrdqn_forward.5} parent=0 // pred_fallthru
    _

</llo_original>
